<compile_context>
chip_gen: v7x
topology: tpu7x:2x2x1
jax: 0.10.0
libtpu: 0.0.40
codegen_flags: <defaults>
</compile_context>

<pallas_src>
import jax
import jax.numpy as jnp
from jax.experimental import pallas as pl
from jax.experimental.pallas import tpu as pltpu

LAYER_DIMS = [(28 * 28, 512), (512, 1024), (1024, 512), (512, 256), (256, 10)]

K1 = 28 * 28          # 784 contraction dim for layer 1 (Mosaic masks ragged lane tile)
NUM_CLASSES = 10
OUT_PAD = 128         # lane-dense output width
NEG_BIG = -1e30       # padded-logit bias; exp underflows to 0 and never wins the max (f32 only!)
TILE_CAP = 512        # max batch-tile rows (peak VMEM ~15 MiB << 32 MiB scoped limit)


def _round_up(x, m):
    return (x + m - 1) // m * m


def _cdiv(a, b):
    return (a + b - 1) // b


def mlp_kernel(x_ref,
               w1_ref, b1_ref,
               w2_ref, b2_ref,
               w3_ref, b3_ref,
               w4_ref, b4_ref,
               w5_ref, b5_ref,
               out_ref):
    """MLP forward + log_softmax for one (B_TILE, 784) activation tile."""

    def hidden_layer(h_bf16, w_ref, b_ref):
        # bf16 x bf16 -> f32 accumulate on the MXU; ReLU in f32 (v5e VPU has
        # no bf16); cast back to bf16 only as the next matmul's input.
        a = jnp.dot(h_bf16, w_ref[...],
                    preferred_element_type=jnp.float32) + b_ref[...]
        return jnp.maximum(a, 0.0).astype(jnp.bfloat16)

    # x arrives as raw f32; cast to bf16 in-kernel (no wrapper HBM copy).
    h = x_ref[...].astype(jnp.bfloat16)              # (BT, 784)
    h = hidden_layer(h, w1_ref, b1_ref)              # (BT, 512)
    h = hidden_layer(h, w2_ref, b2_ref)              # (BT, 1024)
    h = hidden_layer(h, w3_ref, b3_ref)              # (BT, 512)
    h = hidden_layer(h, w4_ref, b4_ref)              # (BT, 256)

    # Final Linear -> padded logits (BT, 128); cols >= 10 are ~ -1e30.
    # Invariant: logits MUST stay f32 for the -1e30 padded-bias trick to work.
    logits = jnp.dot(h, w5_ref[...],
                     preferred_element_type=jnp.float32) + b5_ref[...]

    # Numerically stable log_softmax; padded columns contribute exp(.) == 0
    # and never win the max, so real columns are unaffected.
    m = jnp.max(logits, axis=-1, keepdims=True)
    shifted = logits - m
    lse = jnp.log(jnp.sum(jnp.exp(shifted), axis=-1, keepdims=True))
    out_ref[...] = shifted - lse                     # lane-dense (BT, 128) store


@jax.jit
def mlp_forward(x_img, params):
    """x_img: (B, 1, 28, 28) float32 -> (B, 10) f32 log-probs."""
    b = x_img.shape[0]

    # x.view(-1, 784); stays f32 — no cast/pad copy in HBM.
    x = x_img.reshape(b, K1)

    # Pad batch only to a sublane multiple (tiny; usually a no-op). Any
    # remainder vs. the tile size is handled by a ragged last grid block
    # (OOB reads are discarded row-garbage, OOB output writes are dropped).
    b8 = _round_up(b, 8)
    if b8 != b:
        x = jnp.pad(x, ((0, b8 - b), (0, 0)))

    # Batch tile: big enough to bury the ~0.35 us/step pipeline overhead,
    # but ~half the batch so that multi-tile batches give >= 2 grid steps
    # and the "parallel" axis can use both v7x TensorCores.
    bt = max(8, min(TILE_CAP, _round_up(_cdiv(b8, 2), 8)))
    grid = (_cdiv(b8, bt),)

    (w1, b1), (w2, b2), (w3, b3), (w4, b4), (w5, b5) = params
    # Final layer: pad outputs 10 -> 128; zero weight cols + -1e30 bias cols.
    w5p = jnp.pad(w5, ((0, 0), (0, OUT_PAD - NUM_CLASSES)))
    b5p = jnp.pad(b5, ((0, 0), (0, OUT_PAD - NUM_CLASSES)),
                  constant_values=NEG_BIG)

    flat_params = [w1, b1, w2, b2, w3, b3, w4, b4, w5p, b5p]

    x_spec = pl.BlockSpec((bt, K1), lambda i: (i, 0))
    out_spec = pl.BlockSpec((bt, OUT_PAD), lambda i: (i, 0))
    # Constant index_map -> each weight/bias is DMA'd once and stays resident
    # in VMEM for every grid step.
    param_specs = [pl.BlockSpec(p.shape, lambda i: (0, 0)) for p in flat_params]

    out = pl.pallas_call(
        mlp_kernel,
        out_shape=jax.ShapeDtypeStruct((b8, OUT_PAD), jnp.float32),
        grid=grid,
        in_specs=[x_spec] + param_specs,
        out_specs=out_spec,
        compiler_params=pltpu.CompilerParams(
            dimension_semantics=("parallel",),   # megacore split on v7x
            vmem_limit_bytes=32 << 20,           # > v5e's 16 MiB default; legal on v7x
        ),
    )(x, *flat_params)

    return out[:b, :NUM_CLASSES]


def init_params(key):
    """Deterministic synthetic parameters.

    Weights stored transposed vs PyTorch, i.e. (in_features, out_features),
    in bf16 (halves weight-DMA bytes, native MXU input). Biases stay f32.
    """
    params = []
    for fan_in, fan_out in LAYER_DIMS:
        kw, kb, key = jax.random.split(key, 3)
        scale = 1.0 / jnp.sqrt(jnp.float32(fan_in))
        w = jax.random.uniform(kw, (fan_in, fan_out), jnp.float32, -scale, scale)
        bias = jax.random.uniform(kb, (1, fan_out), jnp.float32, -scale, scale)
        params.append((w.astype(jnp.bfloat16), bias))
    return params


def reference_forward(x_img, params):
    """Plain-JAX reference mirroring the kernel's numerics (bf16 in, f32 acc)."""
    h = x_img.reshape(x_img.shape[0], K1).astype(jnp.bfloat16)
    logits = None
    for i, (w, bias) in enumerate(params):
        a = jnp.dot(h, w, preferred_element_type=jnp.float32) + bias
        if i < len(params) - 1:
            h = jnp.maximum(a, 0.0).astype(jnp.bfloat16)
        else:
            logits = a
    return jax.nn.log_softmax(logits, axis=-1)


if __name__ == "__main__":
    key = jax.random.PRNGKey(0)
    kx, kx2, kp = jax.random.split(key, 3)
    params = init_params(kp)

    # Small case (single grid step).
    batch = 2
    x = jax.random.normal(kx, (batch, 1, 28, 28), jnp.float32)
    out = jax.block_until_ready(mlp_forward(x, params))
    ref = reference_forward(x, params)
    assert out.shape == (batch, NUM_CLASSES)
    assert bool(jnp.all(jnp.isfinite(out))), "non-finite output"
    assert jnp.allclose(out, ref, atol=2e-3, rtol=2e-3), "mismatch vs reference"

    # Multi-step grid + ragged last block + batch-pad path.
    batch2 = 20
    x2 = jax.random.normal(kx2, (batch2, 1, 28, 28), jnp.float32)
    out2 = jax.block_until_ready(mlp_forward(x2, params))
    ref2 = reference_forward(x2, params)
    assert out2.shape == (batch2, NUM_CLASSES)
    assert bool(jnp.all(jnp.isfinite(out2))), "non-finite output (multi-tile)"
    assert jnp.allclose(out2, ref2, atol=2e-3, rtol=2e-3), "mismatch vs reference (multi-tile)"

    print("KERNEL_OK")
</pallas_src>

<mosaic_0001>
module attributes {stable_mosaic.version = 11 : i64} {
  func.func @mlp_kernel(%arg0: i32, %arg1: memref<8x784xf32, #tpu.memory_space<vmem>>, %arg2: memref<784x512xbf16, #tpu.memory_space<vmem>>, %arg3: memref<1x512xf32, #tpu.memory_space<vmem>>, %arg4: memref<512x1024xbf16, #tpu.memory_space<vmem>>, %arg5: memref<1x1024xf32, #tpu.memory_space<vmem>>, %arg6: memref<1024x512xbf16, #tpu.memory_space<vmem>>, %arg7: memref<1x512xf32, #tpu.memory_space<vmem>>, %arg8: memref<512x256xbf16, #tpu.memory_space<vmem>>, %arg9: memref<1x256xf32, #tpu.memory_space<vmem>>, %arg10: memref<256x128xbf16, #tpu.memory_space<vmem>>, %arg11: memref<1x128xf32, #tpu.memory_space<vmem>>, %arg12: memref<8x128xf32, #tpu.memory_space<vmem>>) attributes {dimension_semantics = [#tpu.dimension_semantics<parallel>], iteration_bounds = array<i64: 1>, scalar_prefetch = 0 : i64, scratch_operands = 0 : i64, tpu.core_type = #tpu.core_type<tc>, window_params = [{transform_indices = @transform_0, window_bounds = array<i64: 8, 784>}, {pipeline_mode = #tpu.pipeline_mode<synchronous>, transform_indices = @transform_1, window_bounds = array<i64: 784, 512>}, {pipeline_mode = #tpu.pipeline_mode<synchronous>, transform_indices = @transform_2, window_bounds = array<i64: 1, 512>}, {pipeline_mode = #tpu.pipeline_mode<synchronous>, transform_indices = @transform_3, window_bounds = array<i64: 512, 1024>}, {pipeline_mode = #tpu.pipeline_mode<synchronous>, transform_indices = @transform_4, window_bounds = array<i64: 1, 1024>}, {pipeline_mode = #tpu.pipeline_mode<synchronous>, transform_indices = @transform_5, window_bounds = array<i64: 1024, 512>}, {pipeline_mode = #tpu.pipeline_mode<synchronous>, transform_indices = @transform_6, window_bounds = array<i64: 1, 512>}, {pipeline_mode = #tpu.pipeline_mode<synchronous>, transform_indices = @transform_7, window_bounds = array<i64: 512, 256>}, {pipeline_mode = #tpu.pipeline_mode<synchronous>, transform_indices = @transform_8, window_bounds = array<i64: 1, 256>}, {pipeline_mode = #tpu.pipeline_mode<synchronous>, transform_indices = @transform_9, window_bounds = array<i64: 256, 128>}, {pipeline_mode = #tpu.pipeline_mode<synchronous>, transform_indices = @transform_10, window_bounds = array<i64: 1, 128>}, {transform_indices = @transform_11, window_bounds = array<i64: 8, 128>}]} {
    %c0 = arith.constant 0 : index
    %c0_0 = arith.constant 0 : index
    %0 = vector.load %arg1[%c0, %c0_0] : memref<8x784xf32, #tpu.memory_space<vmem>>, vector<8x784xf32>
    %1 = arith.truncf %0 : vector<8x784xf32> to vector<8x784xbf16>
    %c0_1 = arith.constant 0 : index
    %c0_2 = arith.constant 0 : index
    %2 = vector.load %arg2[%c0_1, %c0_2] : memref<784x512xbf16, #tpu.memory_space<vmem>>, vector<784x512xbf16>
    %cst = arith.constant dense<0.000000e+00> : vector<8x512xf32>
    %3 = tpu.matmul %1, %2, %cst {dimension_numbers = #tpu.dot_dimension_numbers<[1], [0], [0], [1], [0, 0, 1, 1], [], []>} : vector<8x784xbf16>, vector<784x512xbf16>, vector<8x512xf32> -> vector<8x512xf32>
    %c0_3 = arith.constant 0 : index
    %c0_4 = arith.constant 0 : index
    %4 = vector.load %arg3[%c0_3, %c0_4] : memref<1x512xf32, #tpu.memory_space<vmem>>, vector<1x512xf32>
    %5 = vector.broadcast %4 : vector<1x512xf32> to vector<8x512xf32>
    %6 = arith.addf %3, %5 : vector<8x512xf32>
    %cst_5 = arith.constant 0.000000e+00 : f32
    %7 = vector.broadcast %cst_5 : f32 to vector<8x512xf32>
    %8 = arith.maximumf %6, %7 : vector<8x512xf32>
    %9 = arith.truncf %8 : vector<8x512xf32> to vector<8x512xbf16>
    %c0_6 = arith.constant 0 : index
    %c0_7 = arith.constant 0 : index
    %10 = vector.load %arg4[%c0_6, %c0_7] : memref<512x1024xbf16, #tpu.memory_space<vmem>>, vector<512x1024xbf16>
    %cst_8 = arith.constant dense<0.000000e+00> : vector<8x1024xf32>
    %11 = tpu.matmul %9, %10, %cst_8 {dimension_numbers = #tpu.dot_dimension_numbers<[1], [0], [0], [1], [0, 0, 1, 1], [], []>} : vector<8x512xbf16>, vector<512x1024xbf16>, vector<8x1024xf32> -> vector<8x1024xf32>
    %c0_9 = arith.constant 0 : index
    %c0_10 = arith.constant 0 : index
    %12 = vector.load %arg5[%c0_9, %c0_10] : memref<1x1024xf32, #tpu.memory_space<vmem>>, vector<1x1024xf32>
    %13 = vector.broadcast %12 : vector<1x1024xf32> to vector<8x1024xf32>
    %14 = arith.addf %11, %13 : vector<8x1024xf32>
    %cst_11 = arith.constant 0.000000e+00 : f32
    %15 = vector.broadcast %cst_11 : f32 to vector<8x1024xf32>
    %16 = arith.maximumf %14, %15 : vector<8x1024xf32>
    %17 = arith.truncf %16 : vector<8x1024xf32> to vector<8x1024xbf16>
    %c0_12 = arith.constant 0 : index
    %c0_13 = arith.constant 0 : index
    %18 = vector.load %arg6[%c0_12, %c0_13] : memref<1024x512xbf16, #tpu.memory_space<vmem>>, vector<1024x512xbf16>
    %cst_14 = arith.constant dense<0.000000e+00> : vector<8x512xf32>
    %19 = tpu.matmul %17, %18, %cst_14 {dimension_numbers = #tpu.dot_dimension_numbers<[1], [0], [0], [1], [0, 0, 1, 1], [], []>} : vector<8x1024xbf16>, vector<1024x512xbf16>, vector<8x512xf32> -> vector<8x512xf32>
    %c0_15 = arith.constant 0 : index
    %c0_16 = arith.constant 0 : index
    %20 = vector.load %arg7[%c0_15, %c0_16] : memref<1x512xf32, #tpu.memory_space<vmem>>, vector<1x512xf32>
    %21 = vector.broadcast %20 : vector<1x512xf32> to vector<8x512xf32>
    %22 = arith.addf %19, %21 : vector<8x512xf32>
    %cst_17 = arith.constant 0.000000e+00 : f32
    %23 = vector.broadcast %cst_17 : f32 to vector<8x512xf32>
    %24 = arith.maximumf %22, %23 : vector<8x512xf32>
    %25 = arith.truncf %24 : vector<8x512xf32> to vector<8x512xbf16>
    %c0_18 = arith.constant 0 : index
    %c0_19 = arith.constant 0 : index
    %26 = vector.load %arg8[%c0_18, %c0_19] : memref<512x256xbf16, #tpu.memory_space<vmem>>, vector<512x256xbf16>
    %cst_20 = arith.constant dense<0.000000e+00> : vector<8x256xf32>
    %27 = tpu.matmul %25, %26, %cst_20 {dimension_numbers = #tpu.dot_dimension_numbers<[1], [0], [0], [1], [0, 0, 1, 1], [], []>} : vector<8x512xbf16>, vector<512x256xbf16>, vector<8x256xf32> -> vector<8x256xf32>
    %c0_21 = arith.constant 0 : index
    %c0_22 = arith.constant 0 : index
    %28 = vector.load %arg9[%c0_21, %c0_22] : memref<1x256xf32, #tpu.memory_space<vmem>>, vector<1x256xf32>
    %29 = vector.broadcast %28 : vector<1x256xf32> to vector<8x256xf32>
    %30 = arith.addf %27, %29 : vector<8x256xf32>
    %cst_23 = arith.constant 0.000000e+00 : f32
    %31 = vector.broadcast %cst_23 : f32 to vector<8x256xf32>
    %32 = arith.maximumf %30, %31 : vector<8x256xf32>
    %33 = arith.truncf %32 : vector<8x256xf32> to vector<8x256xbf16>
    %c0_24 = arith.constant 0 : index
    %c0_25 = arith.constant 0 : index
    %34 = vector.load %arg10[%c0_24, %c0_25] : memref<256x128xbf16, #tpu.memory_space<vmem>>, vector<256x128xbf16>
    %cst_26 = arith.constant dense<0.000000e+00> : vector<8x128xf32>
    %35 = tpu.matmul %33, %34, %cst_26 {dimension_numbers = #tpu.dot_dimension_numbers<[1], [0], [0], [1], [0, 0, 1, 1], [], []>} : vector<8x256xbf16>, vector<256x128xbf16>, vector<8x128xf32> -> vector<8x128xf32>
    %c0_27 = arith.constant 0 : index
    %c0_28 = arith.constant 0 : index
    %36 = vector.load %arg11[%c0_27, %c0_28] : memref<1x128xf32, #tpu.memory_space<vmem>>, vector<1x128xf32>
    %37 = vector.broadcast %36 : vector<1x128xf32> to vector<8x128xf32>
    %38 = arith.addf %35, %37 : vector<8x128xf32>
    %cst_29 = arith.constant dense<0xFF800000> : vector<8xf32>
    %39 = vector.multi_reduction <maximumf>, %38, %cst_29 [1] : vector<8x128xf32> to vector<8xf32>
    %40 = vector.shape_cast %39 : vector<8xf32> to vector<8x1xf32>
    %41 = vector.broadcast %40 : vector<8x1xf32> to vector<8x128xf32>
    %42 = arith.subf %38, %41 : vector<8x128xf32>
    %43 = math.exp %42 : vector<8x128xf32>
    %cst_30 = arith.constant dense<0.000000e+00> : vector<8xf32>
    %44 = vector.multi_reduction <add>, %43, %cst_30 [1] : vector<8x128xf32> to vector<8xf32>
    %45 = vector.shape_cast %44 : vector<8xf32> to vector<8x1xf32>
    %46 = math.log %45 : vector<8x1xf32>
    %47 = vector.broadcast %46 : vector<8x1xf32> to vector<8x128xf32>
    %48 = arith.subf %42, %47 : vector<8x128xf32>
    %c0_31 = arith.constant 0 : index
    %c0_32 = arith.constant 0 : index
    %49 = vector.load %arg12[%c0_31, %c0_32] : memref<8x128xf32, #tpu.memory_space<vmem>>, vector<8x128xf32>
    tpu.vector_store %arg12[%c0_31, %c0_32], %48 {strides = array<i32>} : memref<8x128xf32, #tpu.memory_space<vmem>>, vector<8x128xf32>,
    return
  }
  func.func @transform_0(%arg0: i32) -> (i32, i32) {
    %c0_i32 = arith.constant 0 : i32
    %c0_i32_0 = arith.constant 0 : i32
    return %arg0, %c0_i32 : i32, i32
  }
  func.func @transform_1(%arg0: i32) -> (i32, i32) {
    %c0_i32 = arith.constant 0 : i32
    %c0_i32_0 = arith.constant 0 : i32
    %c0_i32_1 = arith.constant 0 : i32
    return %c0_i32, %c0_i32_0 : i32, i32
  }
  func.func @transform_2(%arg0: i32) -> (i32, i32) {
    %c0_i32 = arith.constant 0 : i32
    %c0_i32_0 = arith.constant 0 : i32
    %c0_i32_1 = arith.constant 0 : i32
    return %c0_i32, %c0_i32_0 : i32, i32
  }
  func.func @transform_3(%arg0: i32) -> (i32, i32) {
    %c0_i32 = arith.constant 0 : i32
    %c0_i32_0 = arith.constant 0 : i32
    %c0_i32_1 = arith.constant 0 : i32
    return %c0_i32, %c0_i32_0 : i32, i32
  }
  func.func @transform_4(%arg0: i32) -> (i32, i32) {
    %c0_i32 = arith.constant 0 : i32
    %c0_i32_0 = arith.constant 0 : i32
    %c0_i32_1 = arith.constant 0 : i32
    return %c0_i32, %c0_i32_0 : i32, i32
  }
  func.func @transform_5(%arg0: i32) -> (i32, i32) {
    %c0_i32 = arith.constant 0 : i32
    %c0_i32_0 = arith.constant 0 : i32
    %c0_i32_1 = arith.constant 0 : i32
    return %c0_i32, %c0_i32_0 : i32, i32
  }
  func.func @transform_6(%arg0: i32) -> (i32, i32) {
    %c0_i32 = arith.constant 0 : i32
    %c0_i32_0 = arith.constant 0 : i32
    %c0_i32_1 = arith.constant 0 : i32
    return %c0_i32, %c0_i32_0 : i32, i32
  }
  func.func @transform_7(%arg0: i32) -> (i32, i32) {
    %c0_i32 = arith.constant 0 : i32
    %c0_i32_0 = arith.constant 0 : i32
    %c0_i32_1 = arith.constant 0 : i32
    return %c0_i32, %c0_i32_0 : i32, i32
  }
  func.func @transform_8(%arg0: i32) -> (i32, i32) {
    %c0_i32 = arith.constant 0 : i32
    %c0_i32_0 = arith.constant 0 : i32
    %c0_i32_1 = arith.constant 0 : i32
    return %c0_i32, %c0_i32_0 : i32, i32
  }
  func.func @transform_9(%arg0: i32) -> (i32, i32) {
    %c0_i32 = arith.constant 0 : i32
    %c0_i32_0 = arith.constant 0 : i32
    %c0_i32_1 = arith.constant 0 : i32
    return %c0_i32, %c0_i32_0 : i32, i32
  }
  func.func @transform_10(%arg0: i32) -> (i32, i32) {
    %c0_i32 = arith.constant 0 : i32
    %c0_i32_0 = arith.constant 0 : i32
    %c0_i32_1 = arith.constant 0 : i32
    return %c0_i32, %c0_i32_0 : i32, i32
  }
  func.func @transform_11(%arg0: i32) -> (i32, i32) {
    %c0_i32 = arith.constant 0 : i32
    %c0_i32_0 = arith.constant 0 : i32
    return %arg0, %c0_i32 : i32, i32
  }
}

</mosaic_0001>

<llo_original>
// kernel: mlp_forward.1
$region0: #{mlp_forward.1}
  #allocation0 [shape = 'u32[]', space=smem, size = 0x4, offset = 0x4, fixed_abs, tag = 'smem constant byte address 0x4 - core index']
  #allocation1 [shape = 'u32[144,128]{1,0:T(1,128)}', space=vmem, size = 0x12000, scoped, tag = 'internal scratch']
  %s0 = inlined_call_operand.vmem [shape: f32[8,784], index: 0, kind: input, shape index: {}]
  %s1 = inlined_call_operand.hbm [shape: bf16[784,512], index: 1, kind: input, shape index: {}]
  %s2 = inlined_call_operand.vmem [shape: f32[1,512], index: 2, kind: input, shape index: {}]
  %s3 = inlined_call_operand.hbm [shape: bf16[512,1024], index: 3, kind: input, shape index: {}]
  %s4 = inlined_call_operand.vmem [shape: f32[1,1024], index: 4, kind: input, shape index: {}]
  %s5 = inlined_call_operand.hbm [shape: bf16[1024,512], index: 5, kind: input, shape index: {}]
  %s6 = inlined_call_operand.vmem [shape: f32[1,512], index: 6, kind: input, shape index: {}]
  %s7 = inlined_call_operand.vmem [shape: bf16[512,256], index: 7, kind: input, shape index: {}]
  %s8 = inlined_call_operand.vmem [shape: f32[1,256], index: 8, kind: input, shape index: {}]
  %s9 = inlined_call_operand.vmem [shape: bf16[256,128], index: 9, kind: input, shape index: {}]
  %s10 = inlined_call_operand.vmem [shape: f32[1,128], index: 10, kind: input, shape index: {}]
  %s11 = inlined_call_operand.vmem [shape: f32[8,128], index: 11, kind: output, shape index: {}]
  %s12 = sld [smem:[#allocation0]]
  $region66: #{mlp_forward.1} parent=0
    _
  %s14 = ssub.s32 1, %s12
  %s15 = scalar_select 0, %s14, %s12
  $region1: #{mlp_forward.1} parent=0
    #allocation2 [shape = 'u8[802816]{0}', space=vmem, size = 0xc4000, scoped, tag = 'input window, operand 1, single buffered']
    #allocation3 [shape = 's32[1]{0}', space=sflag, size = 0x4, scoped, tag = 'scoped memory for mlp_forward.1']
    #allocation4 [shape = 'u8[1048576]{0}', space=vmem, size = 0x100000, scoped, tag = 'input window, operand 3, single buffered']
    #allocation5 [shape = 's32[1]{0}', space=sflag, size = 0x4, scoped, tag = 'scoped memory for mlp_forward.1']
    #allocation6 [shape = 'u8[1048576]{0}', space=vmem, size = 0x100000, scoped, tag = 'input window, operand 5, single buffered']
    %16 = vsyncpa [#allocation3], 0
    %17 = vsyncpa [#allocation5], 0
    // Predicated region
    $region2: #{mlp_forward.1} parent=1 // pred_check
      _
    $region3: #{mlp_forward.1} parent=1 // pred_check_branch
      %19 = sbr.rel (0) target = $region5
    $region4: #{mlp_forward.1} parent=1 // pred_region
      _
    $region5: #{mlp_forward.1} parent=1 // pred_fallthru
      _
    // Predicated region
    $region6: #{mlp_forward.1} parent=1 // pred_check
      _
    $region7: #{mlp_forward.1} parent=1 // pred_check_branch
      %21 = sbr.rel (0) target = $region9
    $region8: #{mlp_forward.1} parent=1 // pred_region
      %s23 = ssub.s32 25088, 25088
      %24 = vsyncadd [#allocation3], %s23
      %s25 = sshll.u32 [#allocation2], 4
      %s26 = int_to_ptr.vmem [resolvable:$true] %s25
      %31 = dma.hbm_to_vmem [thread:$0]  %s1, 25088, %s26, [#allocation3], 256, 256, 16
    $region9: #{mlp_forward.1} parent=1 // pred_fallthru
      _
    // Predicated region
    $region10: #{mlp_forward.1} parent=1 // pred_check
      _
    $region11: #{mlp_forward.1} parent=1 // pred_check_branch
      %33 = sbr.rel (0) target = $region13
    $region12: #{mlp_forward.1} parent=1 // pred_region
      _
    $region13: #{mlp_forward.1} parent=1 // pred_fallthru
      _
    // Predicated region
    $region14: #{mlp_forward.1} parent=1 // pred_check
      _
    $region15: #{mlp_forward.1} parent=1 // pred_check_branch
      %35 = sbr.rel (0) target = $region17
    $region16: #{mlp_forward.1} parent=1 // pred_region
      %s37 = ssub.s32 32768, 32768
      %38 = vsyncadd [#allocation5], %s37
      %s39 = sshll.u32 [#allocation4], 4
      %s40 = int_to_ptr.vmem [resolvable:$true] %s39
      %45 = dma.hbm_to_vmem [thread:$0]  %s3, 32768, %s40, [#allocation5], 512, 512, 32
    $region17: #{mlp_forward.1} parent=1 // pred_fallthru
      _
    // Predicated region
    $region18: #{mlp_forward.1} parent=1 // pred_check
      _
    $region19: #{mlp_forward.1} parent=1 // pred_check_branch
      %47 = sbr.rel (0) target = $region21
    $region20: #{mlp_forward.1} parent=1 // pred_region
      _
    $region21: #{mlp_forward.1} parent=1 // pred_fallthru
      _
    // Predicated region
    $region22: #{mlp_forward.1} parent=1 // pred_check
      _
    $region23: #{mlp_forward.1} parent=1 // pred_check_branch
      %49 = sbr.rel (0) target = $region25
    $region24: #{mlp_forward.1} parent=1 // pred_region
      %s51 = ssub.s32 32768, 32768
      %52 = vsyncadd [#allocation5], %s51
      %s53 = sshll.u32 [#allocation6], 4
      %s54 = int_to_ptr.vmem [resolvable:$true] %s53
      %59 = dma.hbm_to_vmem [thread:$0]  %s5, 32768, %s54, [#allocation5], 256, 256, 16
    $region25: #{mlp_forward.1} parent=1 // pred_fallthru
      _
    // Predicated region
    $region26: #{mlp_forward.1} parent=1 // pred_check
      _
    $region27: #{mlp_forward.1} parent=1 // pred_check_branch
      %61 = sbr.rel (0) target = $region29
    $region28: #{mlp_forward.1} parent=1 // pred_region
      _
    $region29: #{mlp_forward.1} parent=1 // pred_fallthru
      _
    // Predicated region
    $region30: #{mlp_forward.1} parent=1 // pred_check
      _
    $region31: #{mlp_forward.1} parent=1 // pred_check_branch
      %63 = sbr.rel (0) target = $region33
    $region32: #{mlp_forward.1} parent=1 // pred_region
      _
    $region33: #{mlp_forward.1} parent=1 // pred_fallthru
      _
    // Predicated region
    $region34: #{mlp_forward.1} parent=1 // pred_check
      _
    $region35: #{mlp_forward.1} parent=1 // pred_check_branch
      %65 = sbr.rel (0) target = $region37
    $region36: #{mlp_forward.1} parent=1 // pred_region
      _
    $region37: #{mlp_forward.1} parent=1 // pred_fallthru
      _
    // Predicated region
    $region38: #{mlp_forward.1} parent=1 // pred_check
      _
    $region39: #{mlp_forward.1} parent=1 // pred_check_branch
      %67 = sbr.rel (0) target = $region41
    $region40: #{mlp_forward.1} parent=1 // pred_region
      _
    $region41: #{mlp_forward.1} parent=1 // pred_fallthru
      _
    // Predicated region
    $region42: #{mlp_forward.1} parent=1 // pred_check
      _
    $region43: #{mlp_forward.1} parent=1 // pred_check_branch
      %69 = sbr.rel (0) target = $region45
    $region44: #{mlp_forward.1} parent=1 // pred_region
      _
    $region45: #{mlp_forward.1} parent=1 // pred_fallthru
      _
    // Predicated region
    $region46: #{mlp_forward.1} parent=1 // pred_check
      _
    $region47: #{mlp_forward.1} parent=1 // pred_check_branch
      %71 = sbr.rel (0) target = $region49
    $region48: #{mlp_forward.1} parent=1 // pred_region
      %72 = dma.done [#allocation3], 25088
    $region49: #{mlp_forward.1} parent=1 // pred_fallthru
      _
    // Predicated region
    $region50: #{mlp_forward.1} parent=1 // pred_check
      _
    $region51: #{mlp_forward.1} parent=1 // pred_check_branch
      %74 = sbr.rel (0) target = $region53
    $region52: #{mlp_forward.1} parent=1 // pred_region
      %75 = dma.done [#allocation5], 32768
    $region53: #{mlp_forward.1} parent=1 // pred_fallthru
      _
    // Predicated region
    $region54: #{mlp_forward.1} parent=1 // pred_check
      _
    $region55: #{mlp_forward.1} parent=1 // pred_check_branch
      %77 = sbr.rel (0) target = $region57
    $region56: #{mlp_forward.1} parent=1 // pred_region
      %78 = dma.done [#allocation5], 32768
    $region57: #{mlp_forward.1} parent=1 // pred_fallthru
      _
    %v80 = vld [vmem:[%s0] sm:$0xff]
    %v81 = vld [vmem:[%s0 + $0x8] sm:$0xff]
    %v82 = vld [vmem:[%s0 + $0x10] sm:$0xff]
    %v83 = vld [vmem:[%s0 + $0x18] sm:$0xff]
    %v84 = vld [vmem:[%s0 + $0x20] sm:$0xff]
    %v85 = vld [vmem:[%s0 + $0x28] sm:$0xff]
    %v86 = vld [vmem:[%s0 + $0x30] sm:$0xff]
    %v87 = vpack.c.bf16 %v80, %v80
    %v88 = vpack.c.bf16 %v81, %v81
    %v89 = vpack.c.bf16 %v82, %v82
    %v90 = vpack.c.bf16 %v83, %v83
    %v91 = vpack.c.bf16 %v84, %v84
    %v92 = vpack.c.bf16 %v85, %v85
    %v93 = vpack.c.bf16 %v86, %v86
    %v94 = vld [vmem:[#allocation2] sm:$0xff]
    %v95 = vld [vmem:[#allocation2 + $0x8] sm:$0xff]
    %v96 = vld [vmem:[#allocation2 + $0x10] sm:$0xff]
    %v97 = vld [vmem:[#allocation2 + $0x18] sm:$0xff]
    %v98 = vld [vmem:[#allocation2 + $0x20] sm:$0xff]
    %v99 = vld [vmem:[#allocation2 + $0x28] sm:$0xff]
    %v100 = vld [vmem:[#allocation2 + $0x30] sm:$0xff]
    %v101 = vld [vmem:[#allocation2 + $0x38] sm:$0xff]
    %v102 = vld [vmem:[#allocation2 + $0x40] sm:$0xff]
    %v103 = vld [vmem:[#allocation2 + $0x48] sm:$0xff]
    %v104 = vld [vmem:[#allocation2 + $0x50] sm:$0xff]
    %v105 = vld [vmem:[#allocation2 + $0x58] sm:$0xff]
    %v106 = vld [vmem:[#allocation2 + $0x60] sm:$0xff]
    %v107 = vld [vmem:[#allocation2 + $0x68] sm:$0xff]
    %v108 = vld [vmem:[#allocation2 + $0x70] sm:$0xff]
    %v109 = vld [vmem:[#allocation2 + $0x78] sm:$0xff]
    %v110 = vld [vmem:[#allocation2 + $0x80] sm:$0xff]
    %v111 = vld [vmem:[#allocation2 + $0x88] sm:$0xff]
    %v112 = vld [vmem:[#allocation2 + $0x90] sm:$0xff]
    %v113 = vld [vmem:[#allocation2 + $0x98] sm:$0xff]
    %v114 = vld [vmem:[#allocation2 + $0xa0] sm:$0xff]
    %v115 = vld [vmem:[#allocation2 + $0xa8] sm:$0xff]
    %v116 = vld [vmem:[#allocation2 + $0xb0] sm:$0xff]
    %v117 = vld [vmem:[#allocation2 + $0xb8] sm:$0xff]
    %v118 = vld [vmem:[#allocation2 + $0xc0] sm:$0xff]
    %v119 = vld [vmem:[#allocation2 + $0xc8] sm:$0xff]
    %v120 = vld [vmem:[#allocation2 + $0xd0] sm:$0xff]
    %v121 = vld [vmem:[#allocation2 + $0xd8] sm:$0xff]
    %v122 = vld [vmem:[#allocation2 + $0xe0] sm:$0xff]
    %v123 = vld [vmem:[#allocation2 + $0xe8] sm:$0xff]
    %v124 = vld [vmem:[#allocation2 + $0xf0] sm:$0xff]
    %v125 = vld [vmem:[#allocation2 + $0xf8] sm:$0xff]
    %v126 = vld [vmem:[#allocation2 + $0x100] sm:$0xff]
    %v127 = vld [vmem:[#allocation2 + $0x108] sm:$0xff]
    %v128 = vld [vmem:[#allocation2 + $0x110] sm:$0xff]
    %v129 = vld [vmem:[#allocation2 + $0x118] sm:$0xff]
    %v130 = vld [vmem:[#allocation2 + $0x120] sm:$0xff]
    %v131 = vld [vmem:[#allocation2 + $0x128] sm:$0xff]
    %v132 = vld [vmem:[#allocation2 + $0x130] sm:$0xff]
    %v133 = vld [vmem:[#allocation2 + $0x138] sm:$0xff]
    %v134 = vld [vmem:[#allocation2 + $0x140] sm:$0xff]
    %v135 = vld [vmem:[#allocation2 + $0x148] sm:$0xff]
    %v136 = vld [vmem:[#allocation2 + $0x150] sm:$0xff]
    %v137 = vld [vmem:[#allocation2 + $0x158] sm:$0xff]
    %v138 = vld [vmem:[#allocation2 + $0x160] sm:$0xff]
    %v139 = vld [vmem:[#allocation2 + $0x168] sm:$0xff]
    %v140 = vld [vmem:[#allocation2 + $0x170] sm:$0xff]
    %v141 = vld [vmem:[#allocation2 + $0x178] sm:$0xff]
    %v142 = vld [vmem:[#allocation2 + $0x180] sm:$0xff]
    %v143 = vld [vmem:[#allocation2 + $0x188] sm:$0xff]
    %v144 = vld [vmem:[#allocation2 + $0x190] sm:$0xff]
    %v145 = vld [vmem:[#allocation2 + $0x198] sm:$0xff]
    %v146 = vld [vmem:[#allocation2 + $0x1a0] sm:$0xff]
    %v147 = vld [vmem:[#allocation2 + $0x1a8] sm:$0xff]
    %v148 = vld [vmem:[#allocation2 + $0x1b0] sm:$0xff]
    %v149 = vld [vmem:[#allocation2 + $0x1b8] sm:$0xff]
    %v150 = vld [vmem:[#allocation2 + $0x1c0] sm:$0xff]
    %v151 = vld [vmem:[#allocation2 + $0x1c8] sm:$0xff]
    %v152 = vld [vmem:[#allocation2 + $0x1d0] sm:$0xff]
    %v153 = vld [vmem:[#allocation2 + $0x1d8] sm:$0xff]
    %v154 = vld [vmem:[#allocation2 + $0x1e0] sm:$0xff]
    %v155 = vld [vmem:[#allocation2 + $0x1e8] sm:$0xff]
    %v156 = vld [vmem:[#allocation2 + $0x1f0] sm:$0xff]
    %v157 = vld [vmem:[#allocation2 + $0x1f8] sm:$0xff]
    %v158 = vld [vmem:[#allocation2 + $0x200] sm:$0xff]
    %v159 = vld [vmem:[#allocation2 + $0x208] sm:$0xff]
    %v160 = vld [vmem:[#allocation2 + $0x210] sm:$0xff]
    %v161 = vld [vmem:[#allocation2 + $0x218] sm:$0xff]
    %v162 = vld [vmem:[#allocation2 + $0x220] sm:$0xff]
    %v163 = vld [vmem:[#allocation2 + $0x228] sm:$0xff]
    %v164 = vld [vmem:[#allocation2 + $0x230] sm:$0xff]
    %v165 = vld [vmem:[#allocation2 + $0x238] sm:$0xff]
    %v166 = vld [vmem:[#allocation2 + $0x240] sm:$0xff]
    %v167 = vld [vmem:[#allocation2 + $0x248] sm:$0xff]
    %v168 = vld [vmem:[#allocation2 + $0x250] sm:$0xff]
    %v169 = vld [vmem:[#allocation2 + $0x258] sm:$0xff]
    %v170 = vld [vmem:[#allocation2 + $0x260] sm:$0xff]
    %v171 = vld [vmem:[#allocation2 + $0x268] sm:$0xff]
    %v172 = vld [vmem:[#allocation2 + $0x270] sm:$0xff]
    %v173 = vld [vmem:[#allocation2 + $0x278] sm:$0xff]
    %v174 = vld [vmem:[#allocation2 + $0x280] sm:$0xff]
    %v175 = vld [vmem:[#allocation2 + $0x288] sm:$0xff]
    %v176 = vld [vmem:[#allocation2 + $0x290] sm:$0xff]
    %v177 = vld [vmem:[#allocation2 + $0x298] sm:$0xff]
    %v178 = vld [vmem:[#allocation2 + $0x2a0] sm:$0xff]
    %v179 = vld [vmem:[#allocation2 + $0x2a8] sm:$0xff]
    %v180 = vld [vmem:[#allocation2 + $0x2b0] sm:$0xff]
    %v181 = vld [vmem:[#allocation2 + $0x2b8] sm:$0xff]
    %v182 = vld [vmem:[#allocation2 + $0x2c0] sm:$0xff]
    %v183 = vld [vmem:[#allocation2 + $0x2c8] sm:$0xff]
    %v184 = vld [vmem:[#allocation2 + $0x2d0] sm:$0xff]
    %v185 = vld [vmem:[#allocation2 + $0x2d8] sm:$0xff]
    %v186 = vld [vmem:[#allocation2 + $0x2e0] sm:$0xff]
    %v187 = vld [vmem:[#allocation2 + $0x2e8] sm:$0xff]
    %v188 = vld [vmem:[#allocation2 + $0x2f0] sm:$0xff]
    %v189 = vld [vmem:[#allocation2 + $0x2f8] sm:$0xff]
    %v190 = vld [vmem:[#allocation2 + $0x300] sm:$0xff]
    %v191 = vld [vmem:[#allocation2 + $0x308] sm:$0xff]
    %v192 = vld [vmem:[#allocation2 + $0x310] sm:$0xff]
    %v193 = vld [vmem:[#allocation2 + $0x318] sm:$0xff]
    %v194 = vld [vmem:[#allocation2 + $0x320] sm:$0xff]
    %v195 = vld [vmem:[#allocation2 + $0x328] sm:$0xff]
    %v196 = vld [vmem:[#allocation2 + $0x330] sm:$0xff]
    %v197 = vld [vmem:[#allocation2 + $0x338] sm:$0xff]
    %v198 = vld [vmem:[#allocation2 + $0x340] sm:$0xff]
    %v199 = vld [vmem:[#allocation2 + $0x348] sm:$0xff]
    %v200 = vld [vmem:[#allocation2 + $0x350] sm:$0xff]
    %v201 = vld [vmem:[#allocation2 + $0x358] sm:$0xff]
    %v202 = vld [vmem:[#allocation2 + $0x360] sm:$0xff]
    %v203 = vld [vmem:[#allocation2 + $0x368] sm:$0xff]
    %v204 = vld [vmem:[#allocation2 + $0x370] sm:$0xff]
    %v205 = vld [vmem:[#allocation2 + $0x378] sm:$0xff]
    %v206 = vld [vmem:[#allocation2 + $0x380] sm:$0xff]
    %v207 = vld [vmem:[#allocation2 + $0x388] sm:$0xff]
    %v208 = vld [vmem:[#allocation2 + $0x390] sm:$0xff]
    %v209 = vld [vmem:[#allocation2 + $0x398] sm:$0xff]
    %v210 = vld [vmem:[#allocation2 + $0x3a0] sm:$0xff]
    %v211 = vld [vmem:[#allocation2 + $0x3a8] sm:$0xff]
    %v212 = vld [vmem:[#allocation2 + $0x3b0] sm:$0xff]
    %v213 = vld [vmem:[#allocation2 + $0x3b8] sm:$0xff]
    %v214 = vld [vmem:[#allocation2 + $0x3c0] sm:$0xff]
    %v215 = vld [vmem:[#allocation2 + $0x3c8] sm:$0xff]
    %v216 = vld [vmem:[#allocation2 + $0x3d0] sm:$0xff]
    %v217 = vld [vmem:[#allocation2 + $0x3d8] sm:$0xff]
    %v218 = vld [vmem:[#allocation2 + $0x3e0] sm:$0xff]
    %v219 = vld [vmem:[#allocation2 + $0x3e8] sm:$0xff]
    %v220 = vld [vmem:[#allocation2 + $0x3f0] sm:$0xff]
    %v221 = vld [vmem:[#allocation2 + $0x3f8] sm:$0xff]
    %v222 = vld [vmem:[#allocation2 + $0x400] sm:$0xff]
    %v223 = vld [vmem:[#allocation2 + $0x408] sm:$0xff]
    %v224 = vld [vmem:[#allocation2 + $0x410] sm:$0xff]
    %v225 = vld [vmem:[#allocation2 + $0x418] sm:$0xff]
    %v226 = vld [vmem:[#allocation2 + $0x420] sm:$0xff]
    %v227 = vld [vmem:[#allocation2 + $0x428] sm:$0xff]
    %v228 = vld [vmem:[#allocation2 + $0x430] sm:$0xff]
    %v229 = vld [vmem:[#allocation2 + $0x438] sm:$0xff]
    %v230 = vld [vmem:[#allocation2 + $0x440] sm:$0xff]
    %v231 = vld [vmem:[#allocation2 + $0x448] sm:$0xff]
    %v232 = vld [vmem:[#allocation2 + $0x450] sm:$0xff]
    %v233 = vld [vmem:[#allocation2 + $0x458] sm:$0xff]
    %v234 = vld [vmem:[#allocation2 + $0x460] sm:$0xff]
    %v235 = vld [vmem:[#allocation2 + $0x468] sm:$0xff]
    %v236 = vld [vmem:[#allocation2 + $0x470] sm:$0xff]
    %v237 = vld [vmem:[#allocation2 + $0x478] sm:$0xff]
    %v238 = vld [vmem:[#allocation2 + $0x480] sm:$0xff]
    %v239 = vld [vmem:[#allocation2 + $0x488] sm:$0xff]
    %v240 = vld [vmem:[#allocation2 + $0x490] sm:$0xff]
    %v241 = vld [vmem:[#allocation2 + $0x498] sm:$0xff]
    %v242 = vld [vmem:[#allocation2 + $0x4a0] sm:$0xff]
    %v243 = vld [vmem:[#allocation2 + $0x4a8] sm:$0xff]
    %v244 = vld [vmem:[#allocation2 + $0x4b0] sm:$0xff]
    %v245 = vld [vmem:[#allocation2 + $0x4b8] sm:$0xff]
    %v246 = vld [vmem:[#allocation2 + $0x4c0] sm:$0xff]
    %v247 = vld [vmem:[#allocation2 + $0x4c8] sm:$0xff]
    %v248 = vld [vmem:[#allocation2 + $0x4d0] sm:$0xff]
    %v249 = vld [vmem:[#allocation2 + $0x4d8] sm:$0xff]
    %v250 = vld [vmem:[#allocation2 + $0x4e0] sm:$0xff]
    %v251 = vld [vmem:[#allocation2 + $0x4e8] sm:$0xff]
    %v252 = vld [vmem:[#allocation2 + $0x4f0] sm:$0xff]
    %v253 = vld [vmem:[#allocation2 + $0x4f8] sm:$0xff]
    %v254 = vld [vmem:[#allocation2 + $0x500] sm:$0xff]
    %v255 = vld [vmem:[#allocation2 + $0x508] sm:$0xff]
    %v256 = vld [vmem:[#allocation2 + $0x510] sm:$0xff]
    %v257 = vld [vmem:[#allocation2 + $0x518] sm:$0xff]
    %v258 = vld [vmem:[#allocation2 + $0x520] sm:$0xff]
    %v259 = vld [vmem:[#allocation2 + $0x528] sm:$0xff]
    %v260 = vld [vmem:[#allocation2 + $0x530] sm:$0xff]
    %v261 = vld [vmem:[#allocation2 + $0x538] sm:$0xff]
    %v262 = vld [vmem:[#allocation2 + $0x540] sm:$0xff]
    %v263 = vld [vmem:[#allocation2 + $0x548] sm:$0xff]
    %v264 = vld [vmem:[#allocation2 + $0x550] sm:$0xff]
    %v265 = vld [vmem:[#allocation2 + $0x558] sm:$0xff]
    %v266 = vld [vmem:[#allocation2 + $0x560] sm:$0xff]
    %v267 = vld [vmem:[#allocation2 + $0x568] sm:$0xff]
    %v268 = vld [vmem:[#allocation2 + $0x570] sm:$0xff]
    %v269 = vld [vmem:[#allocation2 + $0x578] sm:$0xff]
    %v270 = vld [vmem:[#allocation2 + $0x580] sm:$0xff]
    %v271 = vld [vmem:[#allocation2 + $0x588] sm:$0xff]
    %v272 = vld [vmem:[#allocation2 + $0x590] sm:$0xff]
    %v273 = vld [vmem:[#allocation2 + $0x598] sm:$0xff]
    %v274 = vld [vmem:[#allocation2 + $0x5a0] sm:$0xff]
    %v275 = vld [vmem:[#allocation2 + $0x5a8] sm:$0xff]
    %v276 = vld [vmem:[#allocation2 + $0x5b0] sm:$0xff]
    %v277 = vld [vmem:[#allocation2 + $0x5b8] sm:$0xff]
    %v278 = vld [vmem:[#allocation2 + $0x5c0] sm:$0xff]
    %v279 = vld [vmem:[#allocation2 + $0x5c8] sm:$0xff]
    %v280 = vld [vmem:[#allocation2 + $0x5d0] sm:$0xff]
    %v281 = vld [vmem:[#allocation2 + $0x5d8] sm:$0xff]
    %v282 = vld [vmem:[#allocation2 + $0x5e0] sm:$0xff]
    %v283 = vld [vmem:[#allocation2 + $0x5e8] sm:$0xff]
    %v284 = vld [vmem:[#allocation2 + $0x5f0] sm:$0xff]
    %v285 = vld [vmem:[#allocation2 + $0x5f8] sm:$0xff]
    %v286 = vld [vmem:[#allocation2 + $0x600] sm:$0xff]
    %v287 = vld [vmem:[#allocation2 + $0x608] sm:$0xff]
    %v288 = vld [vmem:[#allocation2 + $0x610] sm:$0xff]
    %v289 = vld [vmem:[#allocation2 + $0x618] sm:$0xff]
    %v290 = vld [vmem:[%s2] sm:$0xf]
    %v292 = vlaneseq
    %v293 = vshrl.u32 %v292, 7
    %v294 = vsub.s32 0, %v293
    %v295 = vrot.slane %v290, %v294
    %v296 = vlaneseq
    %v297 = vshrl.u32 %v296, 7
    %v298 = vsub.s32 1, %v297
    %v299 = vrot.slane %v290, %v298
    %v300 = vlaneseq
    %v301 = vshrl.u32 %v300, 7
    %v302 = vsub.s32 2, %v301
    %v303 = vrot.slane %v290, %v302
    %v304 = vlaneseq
    %v305 = vshrl.u32 %v304, 7
    %v306 = vsub.s32 3, %v305
    %v307 = vrot.slane %v290, %v306
    %v508 = vunpack.c.l.b16 %v94
    %v509 = vunpack.c.h.b16 %v94
    %v510 = vunpack.c.l.b16 %v95
    %v511 = vunpack.c.h.b16 %v95
    %v512 = vunpack.c.l.b16 %v96
    %v513 = vunpack.c.h.b16 %v96
    %v514 = vunpack.c.l.b16 %v97
    %v515 = vunpack.c.h.b16 %v97
    %v516 = vunpack.c.l.b16 %v98
    %v517 = vunpack.c.h.b16 %v98
    %v518 = vunpack.c.l.b16 %v99
    %v519 = vunpack.c.h.b16 %v99
    %v520 = vunpack.c.l.b16 %v100
    %v521 = vunpack.c.h.b16 %v100
    %v522 = vunpack.c.l.b16 %v101
    %v523 = vunpack.c.h.b16 %v101
    %v524 = vunpack.c.l.b16 %v102
    %v525 = vunpack.c.h.b16 %v102
    %v526 = vunpack.c.l.b16 %v103
    %v527 = vunpack.c.h.b16 %v103
    %v528 = vunpack.c.l.b16 %v104
    %v529 = vunpack.c.h.b16 %v104
    %v530 = vunpack.c.l.b16 %v105
    %v531 = vunpack.c.h.b16 %v105
    %v532 = vunpack.c.l.b16 %v106
    %v533 = vunpack.c.h.b16 %v106
    %v534 = vunpack.c.l.b16 %v107
    %v535 = vunpack.c.h.b16 %v107
    %v536 = vunpack.c.l.b16 %v108
    %v537 = vunpack.c.h.b16 %v108
    %v538 = vunpack.c.l.b16 %v109
    %v539 = vunpack.c.h.b16 %v109
    %v540 = vunpack.c.l.b16 %v110
    %v541 = vunpack.c.h.b16 %v110
    %v542 = vunpack.c.l.b16 %v111
    %v543 = vunpack.c.h.b16 %v111
    %v544 = vunpack.c.l.b16 %v112
    %v545 = vunpack.c.h.b16 %v112
    %v546 = vunpack.c.l.b16 %v113
    %v547 = vunpack.c.h.b16 %v113
    %v548 = vunpack.c.l.b16 %v114
    %v549 = vunpack.c.h.b16 %v114
    %v550 = vunpack.c.l.b16 %v115
    %v551 = vunpack.c.h.b16 %v115
    %v552 = vunpack.c.l.b16 %v116
    %v553 = vunpack.c.h.b16 %v116
    %v554 = vunpack.c.l.b16 %v117
    %v555 = vunpack.c.h.b16 %v117
    %v556 = vunpack.c.l.b16 %v118
    %v557 = vunpack.c.h.b16 %v118
    %v558 = vunpack.c.l.b16 %v119
    %v559 = vunpack.c.h.b16 %v119
    %v560 = vunpack.c.l.b16 %v120
    %v561 = vunpack.c.h.b16 %v120
    %v562 = vunpack.c.l.b16 %v121
    %v563 = vunpack.c.h.b16 %v121
    %v564 = vunpack.c.l.b16 %v122
    %v565 = vunpack.c.h.b16 %v122
    %v566 = vunpack.c.l.b16 %v123
    %v567 = vunpack.c.h.b16 %v123
    %v568 = vunpack.c.l.b16 %v124
    %v569 = vunpack.c.h.b16 %v124
    %v570 = vunpack.c.l.b16 %v125
    %v571 = vunpack.c.h.b16 %v125
    %v572 = vunpack.c.l.b16 %v126
    %v573 = vunpack.c.h.b16 %v126
    %v574 = vunpack.c.l.b16 %v127
    %v575 = vunpack.c.h.b16 %v127
    %v576 = vunpack.c.l.b16 %v128
    %v577 = vunpack.c.h.b16 %v128
    %v578 = vunpack.c.l.b16 %v129
    %v579 = vunpack.c.h.b16 %v129
    %v580 = vunpack.c.l.b16 %v130
    %v581 = vunpack.c.h.b16 %v130
    %v582 = vunpack.c.l.b16 %v131
    %v583 = vunpack.c.h.b16 %v131
    %v584 = vunpack.c.l.b16 %v132
    %v585 = vunpack.c.h.b16 %v132
    %v586 = vunpack.c.l.b16 %v133
    %v587 = vunpack.c.h.b16 %v133
    %v588 = vunpack.c.l.b16 %v134
    %v589 = vunpack.c.h.b16 %v134
    %v590 = vunpack.c.l.b16 %v135
    %v591 = vunpack.c.h.b16 %v135
    %v592 = vunpack.c.l.b16 %v136
    %v593 = vunpack.c.h.b16 %v136
    %v594 = vunpack.c.l.b16 %v137
    %v595 = vunpack.c.h.b16 %v137
    %v596 = vunpack.c.l.b16 %v138
    %v597 = vunpack.c.h.b16 %v138
    %v598 = vunpack.c.l.b16 %v139
    %v599 = vunpack.c.h.b16 %v139
    %v600 = vunpack.c.l.b16 %v140
    %v601 = vunpack.c.h.b16 %v140
    %v602 = vunpack.c.l.b16 %v141
    %v603 = vunpack.c.h.b16 %v141
    %v604 = vunpack.c.l.b16 %v142
    %v605 = vunpack.c.h.b16 %v142
    %v606 = vunpack.c.l.b16 %v143
    %v607 = vunpack.c.h.b16 %v143
    %v608 = vunpack.c.l.b16 %v144
    %v609 = vunpack.c.h.b16 %v144
    %v610 = vunpack.c.l.b16 %v145
    %v611 = vunpack.c.h.b16 %v145
    %v612 = vunpack.c.l.b16 %v146
    %v613 = vunpack.c.h.b16 %v146
    %v614 = vunpack.c.l.b16 %v147
    %v615 = vunpack.c.h.b16 %v147
    %v616 = vunpack.c.l.b16 %v148
    %v617 = vunpack.c.h.b16 %v148
    %v618 = vunpack.c.l.b16 %v149
    %v619 = vunpack.c.h.b16 %v149
    %v620 = vunpack.c.l.b16 %v150
    %v621 = vunpack.c.h.b16 %v150
    %v622 = vunpack.c.l.b16 %v151
    %v623 = vunpack.c.h.b16 %v151
    %v624 = vunpack.c.l.b16 %v152
    %v625 = vunpack.c.h.b16 %v152
    %v626 = vunpack.c.l.b16 %v153
    %v627 = vunpack.c.h.b16 %v153
    %v628 = vunpack.c.l.b16 %v154
    %v629 = vunpack.c.h.b16 %v154
    %v630 = vunpack.c.l.b16 %v155
    %v631 = vunpack.c.h.b16 %v155
    %v632 = vunpack.c.l.b16 %v156
    %v633 = vunpack.c.h.b16 %v156
    %v634 = vunpack.c.l.b16 %v157
    %v635 = vunpack.c.h.b16 %v157
    %v636 = vunpack.c.l.b16 %v158
    %v637 = vunpack.c.h.b16 %v158
    %v638 = vunpack.c.l.b16 %v159
    %v639 = vunpack.c.h.b16 %v159
    %v640 = vunpack.c.l.b16 %v160
    %v641 = vunpack.c.h.b16 %v160
    %v642 = vunpack.c.l.b16 %v161
    %v643 = vunpack.c.h.b16 %v161
    %v644 = vunpack.c.l.b16 %v162
    %v645 = vunpack.c.h.b16 %v162
    %v646 = vunpack.c.l.b16 %v163
    %v647 = vunpack.c.h.b16 %v163
    %v648 = vunpack.c.l.b16 %v164
    %v649 = vunpack.c.h.b16 %v164
    %v650 = vunpack.c.l.b16 %v165
    %v651 = vunpack.c.h.b16 %v165
    %v652 = vunpack.c.l.b16 %v166
    %v653 = vunpack.c.h.b16 %v166
    %v654 = vunpack.c.l.b16 %v167
    %v655 = vunpack.c.h.b16 %v167
    %v656 = vunpack.c.l.b16 %v168
    %v657 = vunpack.c.h.b16 %v168
    %v658 = vunpack.c.l.b16 %v169
    %v659 = vunpack.c.h.b16 %v169
    %v660 = vunpack.c.l.b16 %v170
    %v661 = vunpack.c.h.b16 %v170
    %v662 = vunpack.c.l.b16 %v171
    %v663 = vunpack.c.h.b16 %v171
    %v664 = vunpack.c.l.b16 %v172
    %v665 = vunpack.c.h.b16 %v172
    %v666 = vunpack.c.l.b16 %v173
    %v667 = vunpack.c.h.b16 %v173
    %v668 = vunpack.c.l.b16 %v174
    %v669 = vunpack.c.h.b16 %v174
    %v670 = vunpack.c.l.b16 %v175
    %v671 = vunpack.c.h.b16 %v175
    %v672 = vunpack.c.l.b16 %v176
    %v673 = vunpack.c.h.b16 %v176
    %v674 = vunpack.c.l.b16 %v177
    %v675 = vunpack.c.h.b16 %v177
    %v676 = vunpack.c.l.b16 %v178
    %v677 = vunpack.c.h.b16 %v178
    %v678 = vunpack.c.l.b16 %v179
    %v679 = vunpack.c.h.b16 %v179
    %v680 = vunpack.c.l.b16 %v180
    %v681 = vunpack.c.h.b16 %v180
    %v682 = vunpack.c.l.b16 %v181
    %v683 = vunpack.c.h.b16 %v181
    %v684 = vunpack.c.l.b16 %v182
    %v685 = vunpack.c.h.b16 %v182
    %v686 = vunpack.c.l.b16 %v183
    %v687 = vunpack.c.h.b16 %v183
    %v688 = vunpack.c.l.b16 %v184
    %v689 = vunpack.c.h.b16 %v184
    %v690 = vunpack.c.l.b16 %v185
    %v691 = vunpack.c.h.b16 %v185
    %v692 = vunpack.c.l.b16 %v186
    %v693 = vunpack.c.h.b16 %v186
    %v694 = vunpack.c.l.b16 %v187
    %v695 = vunpack.c.h.b16 %v187
    %v696 = vunpack.c.l.b16 %v188
    %v697 = vunpack.c.h.b16 %v188
    %v698 = vunpack.c.l.b16 %v189
    %v699 = vunpack.c.h.b16 %v189
    %v700 = vunpack.c.l.b16 %v190
    %v701 = vunpack.c.h.b16 %v190
    %v702 = vunpack.c.l.b16 %v191
    %v703 = vunpack.c.h.b16 %v191
    %v704 = vunpack.c.l.b16 %v192
    %v705 = vunpack.c.h.b16 %v192
    %v706 = vunpack.c.l.b16 %v193
    %v707 = vunpack.c.h.b16 %v193
    %v708 = vunpack.c.l.b16 %v194
    %v709 = vunpack.c.h.b16 %v194
    %v710 = vunpack.c.l.b16 %v195
    %v711 = vunpack.c.h.b16 %v195
    %v712 = vunpack.c.l.b16 %v196
    %v713 = vunpack.c.h.b16 %v196
    %v714 = vunpack.c.l.b16 %v197
    %v715 = vunpack.c.h.b16 %v197
    %v716 = vunpack.c.l.b16 %v198
    %v717 = vunpack.c.h.b16 %v198
    %v718 = vunpack.c.l.b16 %v199
    %v719 = vunpack.c.h.b16 %v199
    %v720 = vunpack.c.l.b16 %v200
    %v721 = vunpack.c.h.b16 %v200
    %v722 = vunpack.c.l.b16 %v201
    %v723 = vunpack.c.h.b16 %v201
    %v724 = vunpack.c.l.b16 %v202
    %v725 = vunpack.c.h.b16 %v202
    %v726 = vunpack.c.l.b16 %v203
    %v727 = vunpack.c.h.b16 %v203
    %v728 = vunpack.c.l.b16 %v204
    %v729 = vunpack.c.h.b16 %v204
    %v730 = vunpack.c.l.b16 %v205
    %v731 = vunpack.c.h.b16 %v205
    %v732 = vunpack.c.l.b16 %v206
    %v733 = vunpack.c.h.b16 %v206
    %v734 = vunpack.c.l.b16 %v207
    %v735 = vunpack.c.h.b16 %v207
    %v736 = vunpack.c.l.b16 %v208
    %v737 = vunpack.c.h.b16 %v208
    %v738 = vunpack.c.l.b16 %v209
    %v739 = vunpack.c.h.b16 %v209
    %v740 = vunpack.c.l.b16 %v210
    %v741 = vunpack.c.h.b16 %v210
    %v742 = vunpack.c.l.b16 %v211
    %v743 = vunpack.c.h.b16 %v211
    %v744 = vunpack.c.l.b16 %v212
    %v745 = vunpack.c.h.b16 %v212
    %v746 = vunpack.c.l.b16 %v213
    %v747 = vunpack.c.h.b16 %v213
    %v748 = vunpack.c.l.b16 %v214
    %v749 = vunpack.c.h.b16 %v214
    %v750 = vunpack.c.l.b16 %v215
    %v751 = vunpack.c.h.b16 %v215
    %v752 = vunpack.c.l.b16 %v216
    %v753 = vunpack.c.h.b16 %v216
    %v754 = vunpack.c.l.b16 %v217
    %v755 = vunpack.c.h.b16 %v217
    %v756 = vunpack.c.l.b16 %v218
    %v757 = vunpack.c.h.b16 %v218
    %v758 = vunpack.c.l.b16 %v219
    %v759 = vunpack.c.h.b16 %v219
    %v760 = vunpack.c.l.b16 %v220
    %v761 = vunpack.c.h.b16 %v220
    %v762 = vunpack.c.l.b16 %v221
    %v763 = vunpack.c.h.b16 %v221
    %v764 = vunpack.c.l.b16 %v222
    %v765 = vunpack.c.h.b16 %v222
    %v766 = vunpack.c.l.b16 %v223
    %v767 = vunpack.c.h.b16 %v223
    %v768 = vunpack.c.l.b16 %v224
    %v769 = vunpack.c.h.b16 %v224
    %v770 = vunpack.c.l.b16 %v225
    %v771 = vunpack.c.h.b16 %v225
    %v772 = vunpack.c.l.b16 %v226
    %v773 = vunpack.c.h.b16 %v226
    %v774 = vunpack.c.l.b16 %v227
    %v775 = vunpack.c.h.b16 %v227
    %v776 = vunpack.c.l.b16 %v228
    %v777 = vunpack.c.h.b16 %v228
    %v778 = vunpack.c.l.b16 %v229
    %v779 = vunpack.c.h.b16 %v229
    %v780 = vunpack.c.l.b16 %v230
    %v781 = vunpack.c.h.b16 %v230
    %v782 = vunpack.c.l.b16 %v231
    %v783 = vunpack.c.h.b16 %v231
    %v784 = vunpack.c.l.b16 %v232
    %v785 = vunpack.c.h.b16 %v232
    %v786 = vunpack.c.l.b16 %v233
    %v787 = vunpack.c.h.b16 %v233
    %v788 = vunpack.c.l.b16 %v234
    %v789 = vunpack.c.h.b16 %v234
    %v790 = vunpack.c.l.b16 %v235
    %v791 = vunpack.c.h.b16 %v235
    %v792 = vunpack.c.l.b16 %v236
    %v793 = vunpack.c.h.b16 %v236
    %v794 = vunpack.c.l.b16 %v237
    %v795 = vunpack.c.h.b16 %v237
    %v796 = vunpack.c.l.b16 %v238
    %v797 = vunpack.c.h.b16 %v238
    %v798 = vunpack.c.l.b16 %v239
    %v799 = vunpack.c.h.b16 %v239
    %v800 = vunpack.c.l.b16 %v240
    %v801 = vunpack.c.h.b16 %v240
    %v802 = vunpack.c.l.b16 %v241
    %v803 = vunpack.c.h.b16 %v241
    %v804 = vunpack.c.l.b16 %v242
    %v805 = vunpack.c.h.b16 %v242
    %v806 = vunpack.c.l.b16 %v243
    %v807 = vunpack.c.h.b16 %v243
    %v808 = vunpack.c.l.b16 %v244
    %v809 = vunpack.c.h.b16 %v244
    %v810 = vunpack.c.l.b16 %v245
    %v811 = vunpack.c.h.b16 %v245
    %v812 = vunpack.c.l.b16 %v246
    %v813 = vunpack.c.h.b16 %v246
    %v814 = vunpack.c.l.b16 %v247
    %v815 = vunpack.c.h.b16 %v247
    %v816 = vunpack.c.l.b16 %v248
    %v817 = vunpack.c.h.b16 %v248
    %v818 = vunpack.c.l.b16 %v249
    %v819 = vunpack.c.h.b16 %v249
    %v820 = vunpack.c.l.b16 %v250
    %v821 = vunpack.c.h.b16 %v250
    %v822 = vunpack.c.l.b16 %v251
    %v823 = vunpack.c.h.b16 %v251
    %v824 = vunpack.c.l.b16 %v252
    %v825 = vunpack.c.h.b16 %v252
    %v826 = vunpack.c.l.b16 %v253
    %v827 = vunpack.c.h.b16 %v253
    %v828 = vunpack.c.l.b16 %v254
    %v829 = vunpack.c.h.b16 %v254
    %v830 = vunpack.c.l.b16 %v255
    %v831 = vunpack.c.h.b16 %v255
    %v832 = vunpack.c.l.b16 %v256
    %v833 = vunpack.c.h.b16 %v256
    %v834 = vunpack.c.l.b16 %v257
    %v835 = vunpack.c.h.b16 %v257
    %v836 = vunpack.c.l.b16 %v258
    %v837 = vunpack.c.h.b16 %v258
    %v838 = vunpack.c.l.b16 %v259
    %v839 = vunpack.c.h.b16 %v259
    %v840 = vunpack.c.l.b16 %v260
    %v841 = vunpack.c.h.b16 %v260
    %v842 = vunpack.c.l.b16 %v261
    %v843 = vunpack.c.h.b16 %v261
    %v844 = vunpack.c.l.b16 %v262
    %v845 = vunpack.c.h.b16 %v262
    %v846 = vunpack.c.l.b16 %v263
    %v847 = vunpack.c.h.b16 %v263
    %v848 = vunpack.c.l.b16 %v264
    %v849 = vunpack.c.h.b16 %v264
    %v850 = vunpack.c.l.b16 %v265
    %v851 = vunpack.c.h.b16 %v265
    %v852 = vunpack.c.l.b16 %v266
    %v853 = vunpack.c.h.b16 %v266
    %v854 = vunpack.c.l.b16 %v267
    %v855 = vunpack.c.h.b16 %v267
    %v856 = vunpack.c.l.b16 %v268
    %v857 = vunpack.c.h.b16 %v268
    %v858 = vunpack.c.l.b16 %v269
    %v859 = vunpack.c.h.b16 %v269
    %v860 = vunpack.c.l.b16 %v270
    %v861 = vunpack.c.h.b16 %v270
    %v862 = vunpack.c.l.b16 %v271
    %v863 = vunpack.c.h.b16 %v271
    %v864 = vunpack.c.l.b16 %v272
    %v865 = vunpack.c.h.b16 %v272
    %v866 = vunpack.c.l.b16 %v273
    %v867 = vunpack.c.h.b16 %v273
    %v868 = vunpack.c.l.b16 %v274
    %v869 = vunpack.c.h.b16 %v274
    %v870 = vunpack.c.l.b16 %v275
    %v871 = vunpack.c.h.b16 %v275
    %v872 = vunpack.c.l.b16 %v276
    %v873 = vunpack.c.h.b16 %v276
    %v874 = vunpack.c.l.b16 %v277
    %v875 = vunpack.c.h.b16 %v277
    %v876 = vunpack.c.l.b16 %v278
    %v877 = vunpack.c.h.b16 %v278
    %v878 = vunpack.c.l.b16 %v279
    %v879 = vunpack.c.h.b16 %v279
    %v880 = vunpack.c.l.b16 %v280
    %v881 = vunpack.c.h.b16 %v280
    %v882 = vunpack.c.l.b16 %v281
    %v883 = vunpack.c.h.b16 %v281
    %v884 = vunpack.c.l.b16 %v282
    %v885 = vunpack.c.h.b16 %v282
    %v886 = vunpack.c.l.b16 %v283
    %v887 = vunpack.c.h.b16 %v283
    %v888 = vunpack.c.l.b16 %v284
    %v889 = vunpack.c.h.b16 %v284
    %v890 = vunpack.c.l.b16 %v285
    %v891 = vunpack.c.h.b16 %v285
    %v892 = vunpack.c.l.b16 %v286
    %v893 = vunpack.c.h.b16 %v286
    %v894 = vunpack.c.l.b16 %v287
    %v895 = vunpack.c.h.b16 %v287
    %v896 = vunpack.c.l.b16 %v288
    %v897 = vunpack.c.h.b16 %v288
    %v898 = vunpack.c.l.b16 %v289
    %v899 = vunpack.c.h.b16 %v289
    %v900 = vpack.c.b16 %v512, %v508
    %v901 = vpack.c.b16 %v513, %v509
    %v902 = vpack.c.b16 %v514, %v510
    %v903 = vpack.c.b16 %v515, %v511
    %v904 = vpack.c.b16 %v520, %v516
    %v905 = vpack.c.b16 %v521, %v517
    %v906 = vpack.c.b16 %v522, %v518
    %v907 = vpack.c.b16 %v523, %v519
    %v908 = vpack.c.b16 %v528, %v524
    %v909 = vpack.c.b16 %v529, %v525
    %v910 = vpack.c.b16 %v530, %v526
    %v911 = vpack.c.b16 %v531, %v527
    %v912 = vpack.c.b16 %v536, %v532
    %v913 = vpack.c.b16 %v537, %v533
    %v914 = vpack.c.b16 %v538, %v534
    %v915 = vpack.c.b16 %v539, %v535
    %v916 = vpack.c.b16 %v544, %v540
    %v917 = vpack.c.b16 %v545, %v541
    %v918 = vpack.c.b16 %v546, %v542
    %v919 = vpack.c.b16 %v547, %v543
    %v920 = vpack.c.b16 %v552, %v548
    %v921 = vpack.c.b16 %v553, %v549
    %v922 = vpack.c.b16 %v554, %v550
    %v923 = vpack.c.b16 %v555, %v551
    %v924 = vpack.c.b16 %v560, %v556
    %v925 = vpack.c.b16 %v561, %v557
    %v926 = vpack.c.b16 %v562, %v558
    %v927 = vpack.c.b16 %v563, %v559
    %v928 = vpack.c.b16 %v568, %v564
    %v929 = vpack.c.b16 %v569, %v565
    %v930 = vpack.c.b16 %v570, %v566
    %v931 = vpack.c.b16 %v571, %v567
    %v932 = vpack.c.b16 %v576, %v572
    %v933 = vpack.c.b16 %v577, %v573
    %v934 = vpack.c.b16 %v578, %v574
    %v935 = vpack.c.b16 %v579, %v575
    %v936 = vpack.c.b16 %v584, %v580
    %v937 = vpack.c.b16 %v585, %v581
    %v938 = vpack.c.b16 %v586, %v582
    %v939 = vpack.c.b16 %v587, %v583
    %v940 = vpack.c.b16 %v592, %v588
    %v941 = vpack.c.b16 %v593, %v589
    %v942 = vpack.c.b16 %v594, %v590
    %v943 = vpack.c.b16 %v595, %v591
    %v944 = vpack.c.b16 %v600, %v596
    %v945 = vpack.c.b16 %v601, %v597
    %v946 = vpack.c.b16 %v602, %v598
    %v947 = vpack.c.b16 %v603, %v599
    %v948 = vpack.c.b16 %v608, %v604
    %v949 = vpack.c.b16 %v609, %v605
    %v950 = vpack.c.b16 %v610, %v606
    %v951 = vpack.c.b16 %v611, %v607
    %v952 = vpack.c.b16 %v616, %v612
    %v953 = vpack.c.b16 %v617, %v613
    %v954 = vpack.c.b16 %v618, %v614
    %v955 = vpack.c.b16 %v619, %v615
    %v956 = vpack.c.b16 %v624, %v620
    %v957 = vpack.c.b16 %v625, %v621
    %v958 = vpack.c.b16 %v626, %v622
    %v959 = vpack.c.b16 %v627, %v623
    %v960 = vpack.c.b16 %v632, %v628
    %v961 = vpack.c.b16 %v633, %v629
    %v962 = vpack.c.b16 %v634, %v630
    %v963 = vpack.c.b16 %v635, %v631
    %v964 = vpack.c.b16 %v640, %v636
    %v965 = vpack.c.b16 %v641, %v637
    %v966 = vpack.c.b16 %v642, %v638
    %v967 = vpack.c.b16 %v643, %v639
    %v968 = vpack.c.b16 %v648, %v644
    %v969 = vpack.c.b16 %v649, %v645
    %v970 = vpack.c.b16 %v650, %v646
    %v971 = vpack.c.b16 %v651, %v647
    %v972 = vpack.c.b16 %v656, %v652
    %v973 = vpack.c.b16 %v657, %v653
    %v974 = vpack.c.b16 %v658, %v654
    %v975 = vpack.c.b16 %v659, %v655
    %v976 = vpack.c.b16 %v664, %v660
    %v977 = vpack.c.b16 %v665, %v661
    %v978 = vpack.c.b16 %v666, %v662
    %v979 = vpack.c.b16 %v667, %v663
    %v980 = vpack.c.b16 %v672, %v668
    %v981 = vpack.c.b16 %v673, %v669
    %v982 = vpack.c.b16 %v674, %v670
    %v983 = vpack.c.b16 %v675, %v671
    %v984 = vpack.c.b16 %v680, %v676
    %v985 = vpack.c.b16 %v681, %v677
    %v986 = vpack.c.b16 %v682, %v678
    %v987 = vpack.c.b16 %v683, %v679
    %v988 = vpack.c.b16 %v688, %v684
    %v989 = vpack.c.b16 %v689, %v685
    %v990 = vpack.c.b16 %v690, %v686
    %v991 = vpack.c.b16 %v691, %v687
    %v992 = vpack.c.b16 %v696, %v692
    %v993 = vpack.c.b16 %v697, %v693
    %v994 = vpack.c.b16 %v698, %v694
    %v995 = vpack.c.b16 %v699, %v695
    %v996 = vpack.c.b16 %v704, %v700
    %v997 = vpack.c.b16 %v705, %v701
    %v998 = vpack.c.b16 %v706, %v702
    %v999 = vpack.c.b16 %v707, %v703
    %v1000 = vpack.c.b16 %v712, %v708
    %v1001 = vpack.c.b16 %v713, %v709
    %v1002 = vpack.c.b16 %v714, %v710
    %v1003 = vpack.c.b16 %v715, %v711
    %v1004 = vpack.c.b16 %v720, %v716
    %v1005 = vpack.c.b16 %v721, %v717
    %v1006 = vpack.c.b16 %v722, %v718
    %v1007 = vpack.c.b16 %v723, %v719
    %v1008 = vpack.c.b16 %v728, %v724
    %v1009 = vpack.c.b16 %v729, %v725
    %v1010 = vpack.c.b16 %v730, %v726
    %v1011 = vpack.c.b16 %v731, %v727
    %v1012 = vpack.c.b16 %v736, %v732
    %v1013 = vpack.c.b16 %v737, %v733
    %v1014 = vpack.c.b16 %v738, %v734
    %v1015 = vpack.c.b16 %v739, %v735
    %v1016 = vpack.c.b16 %v744, %v740
    %v1017 = vpack.c.b16 %v745, %v741
    %v1018 = vpack.c.b16 %v746, %v742
    %v1019 = vpack.c.b16 %v747, %v743
    %v1020 = vpack.c.b16 %v752, %v748
    %v1021 = vpack.c.b16 %v753, %v749
    %v1022 = vpack.c.b16 %v754, %v750
    %v1023 = vpack.c.b16 %v755, %v751
    %v1024 = vpack.c.b16 %v760, %v756
    %v1025 = vpack.c.b16 %v761, %v757
    %v1026 = vpack.c.b16 %v762, %v758
    %v1027 = vpack.c.b16 %v763, %v759
    %v1028 = vpack.c.b16 %v768, %v764
    %v1029 = vpack.c.b16 %v769, %v765
    %v1030 = vpack.c.b16 %v770, %v766
    %v1031 = vpack.c.b16 %v771, %v767
    %v1032 = vpack.c.b16 %v776, %v772
    %v1033 = vpack.c.b16 %v777, %v773
    %v1034 = vpack.c.b16 %v778, %v774
    %v1035 = vpack.c.b16 %v779, %v775
    %v1036 = vpack.c.b16 %v784, %v780
    %v1037 = vpack.c.b16 %v785, %v781
    %v1038 = vpack.c.b16 %v786, %v782
    %v1039 = vpack.c.b16 %v787, %v783
    %v1040 = vpack.c.b16 %v792, %v788
    %v1041 = vpack.c.b16 %v793, %v789
    %v1042 = vpack.c.b16 %v794, %v790
    %v1043 = vpack.c.b16 %v795, %v791
    %v1044 = vpack.c.b16 %v800, %v796
    %v1045 = vpack.c.b16 %v801, %v797
    %v1046 = vpack.c.b16 %v802, %v798
    %v1047 = vpack.c.b16 %v803, %v799
    %v1048 = vpack.c.b16 %v808, %v804
    %v1049 = vpack.c.b16 %v809, %v805
    %v1050 = vpack.c.b16 %v810, %v806
    %v1051 = vpack.c.b16 %v811, %v807
    %v1052 = vpack.c.b16 %v816, %v812
    %v1053 = vpack.c.b16 %v817, %v813
    %v1054 = vpack.c.b16 %v818, %v814
    %v1055 = vpack.c.b16 %v819, %v815
    %v1056 = vpack.c.b16 %v824, %v820
    %v1057 = vpack.c.b16 %v825, %v821
    %v1058 = vpack.c.b16 %v826, %v822
    %v1059 = vpack.c.b16 %v827, %v823
    %v1060 = vpack.c.b16 %v832, %v828
    %v1061 = vpack.c.b16 %v833, %v829
    %v1062 = vpack.c.b16 %v834, %v830
    %v1063 = vpack.c.b16 %v835, %v831
    %v1064 = vpack.c.b16 %v840, %v836
    %v1065 = vpack.c.b16 %v841, %v837
    %v1066 = vpack.c.b16 %v842, %v838
    %v1067 = vpack.c.b16 %v843, %v839
    %v1068 = vpack.c.b16 %v848, %v844
    %v1069 = vpack.c.b16 %v849, %v845
    %v1070 = vpack.c.b16 %v850, %v846
    %v1071 = vpack.c.b16 %v851, %v847
    %v1072 = vpack.c.b16 %v856, %v852
    %v1073 = vpack.c.b16 %v857, %v853
    %v1074 = vpack.c.b16 %v858, %v854
    %v1075 = vpack.c.b16 %v859, %v855
    %v1076 = vpack.c.b16 %v864, %v860
    %v1077 = vpack.c.b16 %v865, %v861
    %v1078 = vpack.c.b16 %v866, %v862
    %v1079 = vpack.c.b16 %v867, %v863
    %v1080 = vpack.c.b16 %v872, %v868
    %v1081 = vpack.c.b16 %v873, %v869
    %v1082 = vpack.c.b16 %v874, %v870
    %v1083 = vpack.c.b16 %v875, %v871
    %v1084 = vpack.c.b16 %v880, %v876
    %v1085 = vpack.c.b16 %v881, %v877
    %v1086 = vpack.c.b16 %v882, %v878
    %v1087 = vpack.c.b16 %v883, %v879
    %v1088 = vpack.c.b16 %v888, %v884
    %v1089 = vpack.c.b16 %v889, %v885
    %v1090 = vpack.c.b16 %v890, %v886
    %v1091 = vpack.c.b16 %v891, %v887
    %v1092 = vpack.c.b16 %v896, %v892
    %v1093 = vpack.c.b16 %v897, %v893
    %v1094 = vpack.c.b16 %v898, %v894
    %v1095 = vpack.c.b16 %v899, %v895
    %vm1292 = vcmask 130048
    %v1294 = vsel %vm1292, %v93, 0
    %1296 = vmatprep.subr.bf16.mxu0 %v901
    %1297 = vmatpush1.bf16.msra.mxu0 %v900
    %1298 = vmatprep.subr.bf16.mxu0 %v905
    %1299 = vmatpush1.bf16.msra.mxu0 %v904
    %1300 = vmatprep.subr.bf16.mxu0 %v909
    %1301 = vmatpush1.bf16.msra.mxu0 %v908
    %1302 = vmatprep.subr.bf16.mxu0 %v913
    %1303 = vmatpush1.bf16.msra.mxu0 %v912
    %1304 = vmatprep.subr.bf16.mxu0 %v917
    %1305 = vmatpush1.bf16.msra.mxu0 %v916
    %1306 = vmatprep.subr.bf16.mxu0 %v921
    %1307 = vmatpush1.bf16.msra.mxu0 %v920
    %1308 = vmatprep.subr.bf16.mxu0 %v925
    %1309 = vmatpush1.bf16.msra.mxu0 %v924
    %1310 = vmatprep.subr.bf16.mxu0 %v929
    %1311 = vmatpush1.bf16.msra.mxu0 %v928
    %1312 = vmatprep.subr.bf16.mxu0 %v933
    %1313 = vmatpush1.bf16.msra.mxu0 %v932
    %1314 = vmatprep.subr.bf16.mxu0 %v937
    %1315 = vmatpush1.bf16.msra.mxu0 %v936
    %1316 = vmatprep.subr.bf16.mxu0 %v941
    %1317 = vmatpush1.bf16.msra.mxu0 %v940
    %1318 = vmatprep.subr.bf16.mxu0 %v945
    %1319 = vmatpush1.bf16.msra.mxu0 %v944
    %1320 = vmatprep.subr.bf16.mxu0 %v949
    %1321 = vmatpush1.bf16.msra.mxu0 %v948
    %1322 = vmatprep.subr.bf16.mxu0 %v953
    %1323 = vmatpush1.bf16.msra.mxu0 %v952
    %1324 = vmatprep.subr.bf16.mxu0 %v957
    %1325 = vmatpush1.bf16.msra.mxu0 %v956
    %1326 = vmatprep.subr.bf16.mxu0 %v961
    %1327 = vmatpush1.bf16.msra.mxu0 %v960
    %1328 = vmatprep.mubr.bf16.mxu0 %v88
    %1329 = vmatmul.mubr.bf16.gmra.mrb[0].mxu0 %v87
    %v1330 = vpop.f32.mrb[0].mxu0
    %v1331 = vadd.f32 %v295, %v1330
    %v1332 = vpop.f32.mrb[0].mxu0
    %v1333 = vadd.f32 %v299, %v1332
    %v1334 = vpop.f32.mrb[0].mxu0
    %v1335 = vpop.f32.mrb[0].mxu0
    %1336 = vdwg.mxu0
    %1337 = vmatprep.subr.bf16.mxu0 %v965
    %1338 = vmatpush1.bf16.msra.mxu0 %v964
    %1339 = vmatprep.subr.bf16.mxu0 %v969
    %1340 = vmatpush1.bf16.msra.mxu0 %v968
    %1341 = vmatprep.subr.bf16.mxu0 %v973
    %1342 = vmatpush1.bf16.msra.mxu0 %v972
    %1343 = vmatprep.subr.bf16.mxu0 %v977
    %1344 = vmatpush1.bf16.msra.mxu0 %v976
    %1345 = vmatprep.subr.bf16.mxu0 %v981
    %1346 = vmatpush1.bf16.msra.mxu0 %v980
    %1347 = vmatprep.subr.bf16.mxu0 %v985
    %1348 = vmatpush1.bf16.msra.mxu0 %v984
    %1349 = vmatprep.subr.bf16.mxu0 %v989
    %1350 = vmatpush1.bf16.msra.mxu0 %v988
    %1351 = vmatprep.subr.bf16.mxu0 %v993
    %1352 = vmatpush1.bf16.msra.mxu0 %v992
    %1353 = vmatprep.subr.bf16.mxu0 %v997
    %1354 = vmatpush1.bf16.msra.mxu0 %v996
    %1355 = vmatprep.subr.bf16.mxu0 %v1001
    %1356 = vmatpush1.bf16.msra.mxu0 %v1000
    %1357 = vmatprep.subr.bf16.mxu0 %v1005
    %1358 = vmatpush1.bf16.msra.mxu0 %v1004
    %1359 = vmatprep.subr.bf16.mxu0 %v1009
    %1360 = vmatpush1.bf16.msra.mxu0 %v1008
    %1361 = vmatprep.subr.bf16.mxu0 %v1013
    %1362 = vmatpush1.bf16.msra.mxu0 %v1012
    %1363 = vmatprep.subr.bf16.mxu0 %v1017
    %1364 = vmatpush1.bf16.msra.mxu0 %v1016
    %1365 = vmatprep.subr.bf16.mxu0 %v1021
    %1366 = vmatpush1.bf16.msra.mxu0 %v1020
    %1367 = vmatprep.subr.bf16.mxu0 %v1025
    %1368 = vmatpush1.bf16.msra.mxu0 %v1024
    %1369 = vmatprep.mubr.bf16.mxu0 %v90
    %1370 = vmatmul.mubr.bf16.gmra.mrb[0].mxu0 %v89
    %v1371 = vpop.f32.mrb[0].mxu0
    %v1372 = vadd.f32 %v1331, %v1371
    %v1373 = vpop.f32.mrb[0].mxu0
    %v1374 = vadd.f32 %v1333, %v1373
    %v1375 = vpop.f32.mrb[0].mxu0
    %v1376 = vpop.f32.mrb[0].mxu0
    %1377 = vdwg.mxu0
    %1378 = vmatprep.subr.bf16.mxu0 %v1029
    %1379 = vmatpush1.bf16.msra.mxu0 %v1028
    %1380 = vmatprep.subr.bf16.mxu0 %v1033
    %1381 = vmatpush1.bf16.msra.mxu0 %v1032
    %1382 = vmatprep.subr.bf16.mxu0 %v1037
    %1383 = vmatpush1.bf16.msra.mxu0 %v1036
    %1384 = vmatprep.subr.bf16.mxu0 %v1041
    %1385 = vmatpush1.bf16.msra.mxu0 %v1040
    %1386 = vmatprep.subr.bf16.mxu0 %v1045
    %1387 = vmatpush1.bf16.msra.mxu0 %v1044
    %1388 = vmatprep.subr.bf16.mxu0 %v1049
    %1389 = vmatpush1.bf16.msra.mxu0 %v1048
    %1390 = vmatprep.subr.bf16.mxu0 %v1053
    %1391 = vmatpush1.bf16.msra.mxu0 %v1052
    %1392 = vmatprep.subr.bf16.mxu0 %v1057
    %1393 = vmatpush1.bf16.msra.mxu0 %v1056
    %1394 = vmatprep.subr.bf16.mxu0 %v1061
    %1395 = vmatpush1.bf16.msra.mxu0 %v1060
    %1396 = vmatprep.subr.bf16.mxu0 %v1065
    %1397 = vmatpush1.bf16.msra.mxu0 %v1064
    %1398 = vmatprep.subr.bf16.mxu0 %v1069
    %1399 = vmatpush1.bf16.msra.mxu0 %v1068
    %1400 = vmatprep.subr.bf16.mxu0 %v1073
    %1401 = vmatpush1.bf16.msra.mxu0 %v1072
    %1402 = vmatprep.subr.bf16.mxu0 %v1077
    %1403 = vmatpush1.bf16.msra.mxu0 %v1076
    %1404 = vmatprep.subr.bf16.mxu0 %v1081
    %1405 = vmatpush1.bf16.msra.mxu0 %v1080
    %1406 = vmatprep.subr.bf16.mxu0 %v1085
    %1407 = vmatpush1.bf16.msra.mxu0 %v1084
    %1408 = vmatprep.subr.bf16.mxu0 %v1089
    %1409 = vmatpush1.bf16.msra.mxu0 %v1088
    %1410 = vmatprep.mubr.bf16.mxu0 %v92
    %1411 = vmatmul.mubr.bf16.gmra.mrb[0].mxu0 %v91
    %v1412 = vpop.f32.mrb[0].mxu0
    %v1413 = vadd.f32 %v1372, %v1412
    %v1414 = vpop.f32.mrb[0].mxu0
    %v1415 = vadd.f32 %v1374, %v1414
    %v1416 = vpop.f32.mrb[0].mxu0
    %v1417 = vpop.f32.mrb[0].mxu0
    %1418 = vdwg.mxu0
    %1419 = vmatprep.subr.bf16.mxu0 %v1093
    %1420 = vmatpush1.bf16.msra.mxu0 %v1092
    %1421 = vmatprep.subr.bf16.mxu0 0
    %1422 = vmatpush1.bf16.msra.mxu0 0
    %1423 = vmatprep.subr.bf16.mxu0 0
    %1424 = vmatpush1.bf16.msra.mxu0 0
    %1425 = vmatprep.subr.bf16.mxu0 0
    %1426 = vmatpush1.bf16.msra.mxu0 0
    %1427 = vmatprep.subr.bf16.mxu0 0
    %1428 = vmatpush1.bf16.msra.mxu0 0
    %1429 = vmatprep.subr.bf16.mxu0 0
    %1430 = vmatpush1.bf16.msra.mxu0 0
    %1431 = vmatprep.subr.bf16.mxu0 0
    %1432 = vmatpush1.bf16.msra.mxu0 0
    %1433 = vmatprep.subr.bf16.mxu0 0
    %1434 = vmatpush1.bf16.msra.mxu0 0
    %1435 = vmatprep.subr.bf16.mxu0 0
    %1436 = vmatpush1.bf16.msra.mxu0 0
    %1437 = vmatprep.subr.bf16.mxu0 0
    %1438 = vmatpush1.bf16.msra.mxu0 0
    %1439 = vmatprep.subr.bf16.mxu0 0
    %1440 = vmatpush1.bf16.msra.mxu0 0
    %1441 = vmatprep.subr.bf16.mxu0 0
    %1442 = vmatpush1.bf16.msra.mxu0 0
    %1443 = vmatprep.subr.bf16.mxu0 0
    %1444 = vmatpush1.bf16.msra.mxu0 0
    %1445 = vmatprep.subr.bf16.mxu0 0
    %1446 = vmatpush1.bf16.msra.mxu0 0
    %1447 = vmatprep.subr.bf16.mxu0 0
    %1448 = vmatpush1.bf16.msra.mxu0 0
    %1449 = vmatprep.subr.bf16.mxu0 0
    %1450 = vmatpush1.bf16.msra.mxu0 0
    %1451 = vmatprep.mubr.bf16.mxu0 0
    %1452 = vmatmul.mubr.bf16.gmra.mrb[0].mxu0 %v1294
    %v1453 = vpop.f32.mrb[0].mxu0
    %v1454 = vadd.f32 %v1413, %v1453
    %v1455 = vpop.f32.mrb[0].mxu0
    %v1456 = vadd.f32 %v1415, %v1455
    %v1457 = vpop.f32.mrb[0].mxu0
    %v1458 = vpop.f32.mrb[0].mxu0
    %1459 = vdwg.mxu0
    %1460 = vmatprep.subr.bf16.mxu0 %v903
    %1461 = vmatpush1.bf16.msra.mxu0 %v902
    %1462 = vmatprep.subr.bf16.mxu0 %v907
    %1463 = vmatpush1.bf16.msra.mxu0 %v906
    %1464 = vmatprep.subr.bf16.mxu0 %v911
    %1465 = vmatpush1.bf16.msra.mxu0 %v910
    %1466 = vmatprep.subr.bf16.mxu0 %v915
    %1467 = vmatpush1.bf16.msra.mxu0 %v914
    %1468 = vmatprep.subr.bf16.mxu0 %v919
    %1469 = vmatpush1.bf16.msra.mxu0 %v918
    %1470 = vmatprep.subr.bf16.mxu0 %v923
    %1471 = vmatpush1.bf16.msra.mxu0 %v922
    %1472 = vmatprep.subr.bf16.mxu0 %v927
    %1473 = vmatpush1.bf16.msra.mxu0 %v926
    %1474 = vmatprep.subr.bf16.mxu0 %v931
    %1475 = vmatpush1.bf16.msra.mxu0 %v930
    %1476 = vmatprep.subr.bf16.mxu0 %v935
    %1477 = vmatpush1.bf16.msra.mxu0 %v934
    %1478 = vmatprep.subr.bf16.mxu0 %v939
    %1479 = vmatpush1.bf16.msra.mxu0 %v938
    %1480 = vmatprep.subr.bf16.mxu0 %v943
    %1481 = vmatpush1.bf16.msra.mxu0 %v942
    %1482 = vmatprep.subr.bf16.mxu0 %v947
    %1483 = vmatpush1.bf16.msra.mxu0 %v946
    %1484 = vmatprep.subr.bf16.mxu0 %v951
    %1485 = vmatpush1.bf16.msra.mxu0 %v950
    %1486 = vmatprep.subr.bf16.mxu0 %v955
    %1487 = vmatpush1.bf16.msra.mxu0 %v954
    %1488 = vmatprep.subr.bf16.mxu0 %v959
    %1489 = vmatpush1.bf16.msra.mxu0 %v958
    %1490 = vmatprep.subr.bf16.mxu0 %v963
    %1491 = vmatpush1.bf16.msra.mxu0 %v962
    %1492 = vmatprep.mubr.bf16.mxu0 %v88
    %1493 = vmatmul.mubr.bf16.gmra.mrb[0].mxu0 %v87
    %v1494 = vpop.f32.mrb[0].mxu0
    %v1495 = vadd.f32 %v303, %v1494
    %v1496 = vpop.f32.mrb[0].mxu0
    %v1497 = vadd.f32 %v307, %v1496
    %v1498 = vpop.f32.mrb[0].mxu0
    %v1499 = vpop.f32.mrb[0].mxu0
    %1500 = vdwg.mxu0
    %1501 = vmatprep.subr.bf16.mxu0 %v967
    %1502 = vmatpush1.bf16.msra.mxu0 %v966
    %1503 = vmatprep.subr.bf16.mxu0 %v971
    %1504 = vmatpush1.bf16.msra.mxu0 %v970
    %1505 = vmatprep.subr.bf16.mxu0 %v975
    %1506 = vmatpush1.bf16.msra.mxu0 %v974
    %1507 = vmatprep.subr.bf16.mxu0 %v979
    %1508 = vmatpush1.bf16.msra.mxu0 %v978
    %1509 = vmatprep.subr.bf16.mxu0 %v983
    %1510 = vmatpush1.bf16.msra.mxu0 %v982
    %1511 = vmatprep.subr.bf16.mxu0 %v987
    %1512 = vmatpush1.bf16.msra.mxu0 %v986
    %1513 = vmatprep.subr.bf16.mxu0 %v991
    %1514 = vmatpush1.bf16.msra.mxu0 %v990
    %1515 = vmatprep.subr.bf16.mxu0 %v995
    %1516 = vmatpush1.bf16.msra.mxu0 %v994
    %1517 = vmatprep.subr.bf16.mxu0 %v999
    %1518 = vmatpush1.bf16.msra.mxu0 %v998
    %1519 = vmatprep.subr.bf16.mxu0 %v1003
    %1520 = vmatpush1.bf16.msra.mxu0 %v1002
    %1521 = vmatprep.subr.bf16.mxu0 %v1007
    %1522 = vmatpush1.bf16.msra.mxu0 %v1006
    %1523 = vmatprep.subr.bf16.mxu0 %v1011
    %1524 = vmatpush1.bf16.msra.mxu0 %v1010
    %1525 = vmatprep.subr.bf16.mxu0 %v1015
    %1526 = vmatpush1.bf16.msra.mxu0 %v1014
    %1527 = vmatprep.subr.bf16.mxu0 %v1019
    %1528 = vmatpush1.bf16.msra.mxu0 %v1018
    %1529 = vmatprep.subr.bf16.mxu0 %v1023
    %1530 = vmatpush1.bf16.msra.mxu0 %v1022
    %1531 = vmatprep.subr.bf16.mxu0 %v1027
    %1532 = vmatpush1.bf16.msra.mxu0 %v1026
    %1533 = vmatprep.mubr.bf16.mxu0 %v90
    %1534 = vmatmul.mubr.bf16.gmra.mrb[0].mxu0 %v89
    %v1535 = vpop.f32.mrb[0].mxu0
    %v1536 = vadd.f32 %v1495, %v1535
    %v1537 = vpop.f32.mrb[0].mxu0
    %v1538 = vadd.f32 %v1497, %v1537
    %v1539 = vpop.f32.mrb[0].mxu0
    %v1540 = vpop.f32.mrb[0].mxu0
    %1541 = vdwg.mxu0
    %1542 = vmatprep.subr.bf16.mxu0 %v1031
    %1543 = vmatpush1.bf16.msra.mxu0 %v1030
    %1544 = vmatprep.subr.bf16.mxu0 %v1035
    %1545 = vmatpush1.bf16.msra.mxu0 %v1034
    %1546 = vmatprep.subr.bf16.mxu0 %v1039
    %1547 = vmatpush1.bf16.msra.mxu0 %v1038
    %1548 = vmatprep.subr.bf16.mxu0 %v1043
    %1549 = vmatpush1.bf16.msra.mxu0 %v1042
    %1550 = vmatprep.subr.bf16.mxu0 %v1047
    %1551 = vmatpush1.bf16.msra.mxu0 %v1046
    %1552 = vmatprep.subr.bf16.mxu0 %v1051
    %1553 = vmatpush1.bf16.msra.mxu0 %v1050
    %1554 = vmatprep.subr.bf16.mxu0 %v1055
    %1555 = vmatpush1.bf16.msra.mxu0 %v1054
    %1556 = vmatprep.subr.bf16.mxu0 %v1059
    %1557 = vmatpush1.bf16.msra.mxu0 %v1058
    %1558 = vmatprep.subr.bf16.mxu0 %v1063
    %1559 = vmatpush1.bf16.msra.mxu0 %v1062
    %1560 = vmatprep.subr.bf16.mxu0 %v1067
    %1561 = vmatpush1.bf16.msra.mxu0 %v1066
    %1562 = vmatprep.subr.bf16.mxu0 %v1071
    %1563 = vmatpush1.bf16.msra.mxu0 %v1070
    %1564 = vmatprep.subr.bf16.mxu0 %v1075
    %1565 = vmatpush1.bf16.msra.mxu0 %v1074
    %1566 = vmatprep.subr.bf16.mxu0 %v1079
    %1567 = vmatpush1.bf16.msra.mxu0 %v1078
    %1568 = vmatprep.subr.bf16.mxu0 %v1083
    %1569 = vmatpush1.bf16.msra.mxu0 %v1082
    %1570 = vmatprep.subr.bf16.mxu0 %v1087
    %1571 = vmatpush1.bf16.msra.mxu0 %v1086
    %1572 = vmatprep.subr.bf16.mxu0 %v1091
    %1573 = vmatpush1.bf16.msra.mxu0 %v1090
    %1574 = vmatprep.mubr.bf16.mxu0 %v92
    %1575 = vmatmul.mubr.bf16.gmra.mrb[0].mxu0 %v91
    %v1576 = vpop.f32.mrb[0].mxu0
    %v1577 = vadd.f32 %v1536, %v1576
    %v1578 = vpop.f32.mrb[0].mxu0
    %v1579 = vadd.f32 %v1538, %v1578
    %v1580 = vpop.f32.mrb[0].mxu0
    %v1581 = vpop.f32.mrb[0].mxu0
    %1582 = vdwg.mxu0
    %1583 = vmatprep.subr.bf16.mxu0 %v1095
    %1584 = vmatpush1.bf16.msra.mxu0 %v1094
    %1585 = vmatprep.subr.bf16.mxu0 0
    %1586 = vmatpush1.bf16.msra.mxu0 0
    %1587 = vmatprep.subr.bf16.mxu0 0
    %1588 = vmatpush1.bf16.msra.mxu0 0
    %1589 = vmatprep.subr.bf16.mxu0 0
    %1590 = vmatpush1.bf16.msra.mxu0 0
    %1591 = vmatprep.subr.bf16.mxu0 0
    %1592 = vmatpush1.bf16.msra.mxu0 0
    %1593 = vmatprep.subr.bf16.mxu0 0
    %1594 = vmatpush1.bf16.msra.mxu0 0
    %1595 = vmatprep.subr.bf16.mxu0 0
    %1596 = vmatpush1.bf16.msra.mxu0 0
    %1597 = vmatprep.subr.bf16.mxu0 0
    %1598 = vmatpush1.bf16.msra.mxu0 0
    %1599 = vmatprep.subr.bf16.mxu0 0
    %1600 = vmatpush1.bf16.msra.mxu0 0
    %1601 = vmatprep.subr.bf16.mxu0 0
    %1602 = vmatpush1.bf16.msra.mxu0 0
    %1603 = vmatprep.subr.bf16.mxu0 0
    %1604 = vmatpush1.bf16.msra.mxu0 0
    %1605 = vmatprep.subr.bf16.mxu0 0
    %1606 = vmatpush1.bf16.msra.mxu0 0
    %1607 = vmatprep.subr.bf16.mxu0 0
    %1608 = vmatpush1.bf16.msra.mxu0 0
    %1609 = vmatprep.subr.bf16.mxu0 0
    %1610 = vmatpush1.bf16.msra.mxu0 0
    %1611 = vmatprep.subr.bf16.mxu0 0
    %1612 = vmatpush1.bf16.msra.mxu0 0
    %1613 = vmatprep.subr.bf16.mxu0 0
    %1614 = vmatpush1.bf16.msra.mxu0 0
    %1615 = vmatprep.mubr.bf16.mxu0 0
    %1616 = vmatmul.mubr.bf16.gmra.mrb[0].mxu0 %v1294
    %v1617 = vpop.f32.mrb[0].mxu0
    %v1618 = vadd.f32 %v1577, %v1617
    %v1619 = vpop.f32.mrb[0].mxu0
    %v1620 = vadd.f32 %v1579, %v1619
    %v1621 = vpop.f32.mrb[0].mxu0
    %v1622 = vpop.f32.mrb[0].mxu0
    %1623 = vdwg.mxu0
    %v1624 = vmax.f32 %v1454, 0.0
    %v1625 = vmax.f32 %v1456, 0.0
    %v1626 = vmax.f32 %v1618, 0.0
    %v1627 = vmax.f32 %v1620, 0.0
    %v1628 = vpack.c.bf16 %v1624, %v1624
    %v1629 = vpack.c.bf16 %v1625, %v1625
    %v1630 = vpack.c.bf16 %v1626, %v1626
    %v1631 = vpack.c.bf16 %v1627, %v1627
    %v1632 = vld [vmem:[#allocation4] sm:$0xff]
    %v1633 = vld [vmem:[#allocation4 + $0x8] sm:$0xff]
    %v1634 = vld [vmem:[#allocation4 + $0x10] sm:$0xff]
    %v1635 = vld [vmem:[#allocation4 + $0x18] sm:$0xff]
    %v1636 = vld [vmem:[#allocation4 + $0x20] sm:$0xff]
    %v1637 = vld [vmem:[#allocation4 + $0x28] sm:$0xff]
    %v1638 = vld [vmem:[#allocation4 + $0x30] sm:$0xff]
    %v1639 = vld [vmem:[#allocation4 + $0x38] sm:$0xff]
    %v1640 = vld [vmem:[#allocation4 + $0x40] sm:$0xff]
    %v1641 = vld [vmem:[#allocation4 + $0x48] sm:$0xff]
    %v1642 = vld [vmem:[#allocation4 + $0x50] sm:$0xff]
    %v1643 = vld [vmem:[#allocation4 + $0x58] sm:$0xff]
    %v1644 = vld [vmem:[#allocation4 + $0x60] sm:$0xff]
    %v1645 = vld [vmem:[#allocation4 + $0x68] sm:$0xff]
    %v1646 = vld [vmem:[#allocation4 + $0x70] sm:$0xff]
    %v1647 = vld [vmem:[#allocation4 + $0x78] sm:$0xff]
    %v1648 = vld [vmem:[#allocation4 + $0x80] sm:$0xff]
    %v1649 = vld [vmem:[#allocation4 + $0x88] sm:$0xff]
    %v1650 = vld [vmem:[#allocation4 + $0x90] sm:$0xff]
    %v1651 = vld [vmem:[#allocation4 + $0x98] sm:$0xff]
    %v1652 = vld [vmem:[#allocation4 + $0xa0] sm:$0xff]
    %v1653 = vld [vmem:[#allocation4 + $0xa8] sm:$0xff]
    %v1654 = vld [vmem:[#allocation4 + $0xb0] sm:$0xff]
    %v1655 = vld [vmem:[#allocation4 + $0xb8] sm:$0xff]
    %v1656 = vld [vmem:[#allocation4 + $0xc0] sm:$0xff]
    %v1657 = vld [vmem:[#allocation4 + $0xc8] sm:$0xff]
    %v1658 = vld [vmem:[#allocation4 + $0xd0] sm:$0xff]
    %v1659 = vld [vmem:[#allocation4 + $0xd8] sm:$0xff]
    %v1660 = vld [vmem:[#allocation4 + $0xe0] sm:$0xff]
    %v1661 = vld [vmem:[#allocation4 + $0xe8] sm:$0xff]
    %v1662 = vld [vmem:[#allocation4 + $0xf0] sm:$0xff]
    %v1663 = vld [vmem:[#allocation4 + $0xf8] sm:$0xff]
    %v1664 = vld [vmem:[#allocation4 + $0x100] sm:$0xff]
    %v1665 = vld [vmem:[#allocation4 + $0x108] sm:$0xff]
    %v1666 = vld [vmem:[#allocation4 + $0x110] sm:$0xff]
    %v1667 = vld [vmem:[#allocation4 + $0x118] sm:$0xff]
    %v1668 = vld [vmem:[#allocation4 + $0x120] sm:$0xff]
    %v1669 = vld [vmem:[#allocation4 + $0x128] sm:$0xff]
    %v1670 = vld [vmem:[#allocation4 + $0x130] sm:$0xff]
    %v1671 = vld [vmem:[#allocation4 + $0x138] sm:$0xff]
    %v1672 = vld [vmem:[#allocation4 + $0x140] sm:$0xff]
    %v1673 = vld [vmem:[#allocation4 + $0x148] sm:$0xff]
    %v1674 = vld [vmem:[#allocation4 + $0x150] sm:$0xff]
    %v1675 = vld [vmem:[#allocation4 + $0x158] sm:$0xff]
    %v1676 = vld [vmem:[#allocation4 + $0x160] sm:$0xff]
    %v1677 = vld [vmem:[#allocation4 + $0x168] sm:$0xff]
    %v1678 = vld [vmem:[#allocation4 + $0x170] sm:$0xff]
    %v1679 = vld [vmem:[#allocation4 + $0x178] sm:$0xff]
    %v1680 = vld [vmem:[#allocation4 + $0x180] sm:$0xff]
    %v1681 = vld [vmem:[#allocation4 + $0x188] sm:$0xff]
    %v1682 = vld [vmem:[#allocation4 + $0x190] sm:$0xff]
    %v1683 = vld [vmem:[#allocation4 + $0x198] sm:$0xff]
    %v1684 = vld [vmem:[#allocation4 + $0x1a0] sm:$0xff]
    %v1685 = vld [vmem:[#allocation4 + $0x1a8] sm:$0xff]
    %v1686 = vld [vmem:[#allocation4 + $0x1b0] sm:$0xff]
    %v1687 = vld [vmem:[#allocation4 + $0x1b8] sm:$0xff]
    %v1688 = vld [vmem:[#allocation4 + $0x1c0] sm:$0xff]
    %v1689 = vld [vmem:[#allocation4 + $0x1c8] sm:$0xff]
    %v1690 = vld [vmem:[#allocation4 + $0x1d0] sm:$0xff]
    %v1691 = vld [vmem:[#allocation4 + $0x1d8] sm:$0xff]
    %v1692 = vld [vmem:[#allocation4 + $0x1e0] sm:$0xff]
    %v1693 = vld [vmem:[#allocation4 + $0x1e8] sm:$0xff]
    %v1694 = vld [vmem:[#allocation4 + $0x1f0] sm:$0xff]
    %v1695 = vld [vmem:[#allocation4 + $0x1f8] sm:$0xff]
    %v1696 = vld [vmem:[#allocation4 + $0x200] sm:$0xff]
    %v1697 = vld [vmem:[#allocation4 + $0x208] sm:$0xff]
    %v1698 = vld [vmem:[#allocation4 + $0x210] sm:$0xff]
    %v1699 = vld [vmem:[#allocation4 + $0x218] sm:$0xff]
    %v1700 = vld [vmem:[#allocation4 + $0x220] sm:$0xff]
    %v1701 = vld [vmem:[#allocation4 + $0x228] sm:$0xff]
    %v1702 = vld [vmem:[#allocation4 + $0x230] sm:$0xff]
    %v1703 = vld [vmem:[#allocation4 + $0x238] sm:$0xff]
    %v1704 = vld [vmem:[#allocation4 + $0x240] sm:$0xff]
    %v1705 = vld [vmem:[#allocation4 + $0x248] sm:$0xff]
    %v1706 = vld [vmem:[#allocation4 + $0x250] sm:$0xff]
    %v1707 = vld [vmem:[#allocation4 + $0x258] sm:$0xff]
    %v1708 = vld [vmem:[#allocation4 + $0x260] sm:$0xff]
    %v1709 = vld [vmem:[#allocation4 + $0x268] sm:$0xff]
    %v1710 = vld [vmem:[#allocation4 + $0x270] sm:$0xff]
    %v1711 = vld [vmem:[#allocation4 + $0x278] sm:$0xff]
    %v1712 = vld [vmem:[#allocation4 + $0x280] sm:$0xff]
    %v1713 = vld [vmem:[#allocation4 + $0x288] sm:$0xff]
    %v1714 = vld [vmem:[#allocation4 + $0x290] sm:$0xff]
    %v1715 = vld [vmem:[#allocation4 + $0x298] sm:$0xff]
    %v1716 = vld [vmem:[#allocation4 + $0x2a0] sm:$0xff]
    %v1717 = vld [vmem:[#allocation4 + $0x2a8] sm:$0xff]
    %v1718 = vld [vmem:[#allocation4 + $0x2b0] sm:$0xff]
    %v1719 = vld [vmem:[#allocation4 + $0x2b8] sm:$0xff]
    %v1720 = vld [vmem:[#allocation4 + $0x2c0] sm:$0xff]
    %v1721 = vld [vmem:[#allocation4 + $0x2c8] sm:$0xff]
    %v1722 = vld [vmem:[#allocation4 + $0x2d0] sm:$0xff]
    %v1723 = vld [vmem:[#allocation4 + $0x2d8] sm:$0xff]
    %v1724 = vld [vmem:[#allocation4 + $0x2e0] sm:$0xff]
    %v1725 = vld [vmem:[#allocation4 + $0x2e8] sm:$0xff]
    %v1726 = vld [vmem:[#allocation4 + $0x2f0] sm:$0xff]
    %v1727 = vld [vmem:[#allocation4 + $0x2f8] sm:$0xff]
    %v1728 = vld [vmem:[#allocation4 + $0x300] sm:$0xff]
    %v1729 = vld [vmem:[#allocation4 + $0x308] sm:$0xff]
    %v1730 = vld [vmem:[#allocation4 + $0x310] sm:$0xff]
    %v1731 = vld [vmem:[#allocation4 + $0x318] sm:$0xff]
    %v1732 = vld [vmem:[#allocation4 + $0x320] sm:$0xff]
    %v1733 = vld [vmem:[#allocation4 + $0x328] sm:$0xff]
    %v1734 = vld [vmem:[#allocation4 + $0x330] sm:$0xff]
    %v1735 = vld [vmem:[#allocation4 + $0x338] sm:$0xff]
    %v1736 = vld [vmem:[#allocation4 + $0x340] sm:$0xff]
    %v1737 = vld [vmem:[#allocation4 + $0x348] sm:$0xff]
    %v1738 = vld [vmem:[#allocation4 + $0x350] sm:$0xff]
    %v1739 = vld [vmem:[#allocation4 + $0x358] sm:$0xff]
    %v1740 = vld [vmem:[#allocation4 + $0x360] sm:$0xff]
    %v1741 = vld [vmem:[#allocation4 + $0x368] sm:$0xff]
    %v1742 = vld [vmem:[#allocation4 + $0x370] sm:$0xff]
    %v1743 = vld [vmem:[#allocation4 + $0x378] sm:$0xff]
    %v1744 = vld [vmem:[#allocation4 + $0x380] sm:$0xff]
    %v1745 = vld [vmem:[#allocation4 + $0x388] sm:$0xff]
    %v1746 = vld [vmem:[#allocation4 + $0x390] sm:$0xff]
    %v1747 = vld [vmem:[#allocation4 + $0x398] sm:$0xff]
    %v1748 = vld [vmem:[#allocation4 + $0x3a0] sm:$0xff]
    %v1749 = vld [vmem:[#allocation4 + $0x3a8] sm:$0xff]
    %v1750 = vld [vmem:[#allocation4 + $0x3b0] sm:$0xff]
    %v1751 = vld [vmem:[#allocation4 + $0x3b8] sm:$0xff]
    %v1752 = vld [vmem:[#allocation4 + $0x3c0] sm:$0xff]
    %v1753 = vld [vmem:[#allocation4 + $0x3c8] sm:$0xff]
    %v1754 = vld [vmem:[#allocation4 + $0x3d0] sm:$0xff]
    %v1755 = vld [vmem:[#allocation4 + $0x3d8] sm:$0xff]
    %v1756 = vld [vmem:[#allocation4 + $0x3e0] sm:$0xff]
    %v1757 = vld [vmem:[#allocation4 + $0x3e8] sm:$0xff]
    %v1758 = vld [vmem:[#allocation4 + $0x3f0] sm:$0xff]
    %v1759 = vld [vmem:[#allocation4 + $0x3f8] sm:$0xff]
    %v1760 = vld [vmem:[#allocation4 + $0x400] sm:$0xff]
    %v1761 = vld [vmem:[#allocation4 + $0x408] sm:$0xff]
    %v1762 = vld [vmem:[#allocation4 + $0x410] sm:$0xff]
    %v1763 = vld [vmem:[#allocation4 + $0x418] sm:$0xff]
    %v1764 = vld [vmem:[#allocation4 + $0x420] sm:$0xff]
    %v1765 = vld [vmem:[#allocation4 + $0x428] sm:$0xff]
    %v1766 = vld [vmem:[#allocation4 + $0x430] sm:$0xff]
    %v1767 = vld [vmem:[#allocation4 + $0x438] sm:$0xff]
    %v1768 = vld [vmem:[#allocation4 + $0x440] sm:$0xff]
    %v1769 = vld [vmem:[#allocation4 + $0x448] sm:$0xff]
    %v1770 = vld [vmem:[#allocation4 + $0x450] sm:$0xff]
    %v1771 = vld [vmem:[#allocation4 + $0x458] sm:$0xff]
    %v1772 = vld [vmem:[#allocation4 + $0x460] sm:$0xff]
    %v1773 = vld [vmem:[#allocation4 + $0x468] sm:$0xff]
    %v1774 = vld [vmem:[#allocation4 + $0x470] sm:$0xff]
    %v1775 = vld [vmem:[#allocation4 + $0x478] sm:$0xff]
    %v1776 = vld [vmem:[#allocation4 + $0x480] sm:$0xff]
    %v1777 = vld [vmem:[#allocation4 + $0x488] sm:$0xff]
    %v1778 = vld [vmem:[#allocation4 + $0x490] sm:$0xff]
    %v1779 = vld [vmem:[#allocation4 + $0x498] sm:$0xff]
    %v1780 = vld [vmem:[#allocation4 + $0x4a0] sm:$0xff]
    %v1781 = vld [vmem:[#allocation4 + $0x4a8] sm:$0xff]
    %v1782 = vld [vmem:[#allocation4 + $0x4b0] sm:$0xff]
    %v1783 = vld [vmem:[#allocation4 + $0x4b8] sm:$0xff]
    %v1784 = vld [vmem:[#allocation4 + $0x4c0] sm:$0xff]
    %v1785 = vld [vmem:[#allocation4 + $0x4c8] sm:$0xff]
    %v1786 = vld [vmem:[#allocation4 + $0x4d0] sm:$0xff]
    %v1787 = vld [vmem:[#allocation4 + $0x4d8] sm:$0xff]
    %v1788 = vld [vmem:[#allocation4 + $0x4e0] sm:$0xff]
    %v1789 = vld [vmem:[#allocation4 + $0x4e8] sm:$0xff]
    %v1790 = vld [vmem:[#allocation4 + $0x4f0] sm:$0xff]
    %v1791 = vld [vmem:[#allocation4 + $0x4f8] sm:$0xff]
    %v1792 = vld [vmem:[#allocation4 + $0x500] sm:$0xff]
    %v1793 = vld [vmem:[#allocation4 + $0x508] sm:$0xff]
    %v1794 = vld [vmem:[#allocation4 + $0x510] sm:$0xff]
    %v1795 = vld [vmem:[#allocation4 + $0x518] sm:$0xff]
    %v1796 = vld [vmem:[#allocation4 + $0x520] sm:$0xff]
    %v1797 = vld [vmem:[#allocation4 + $0x528] sm:$0xff]
    %v1798 = vld [vmem:[#allocation4 + $0x530] sm:$0xff]
    %v1799 = vld [vmem:[#allocation4 + $0x538] sm:$0xff]
    %v1800 = vld [vmem:[#allocation4 + $0x540] sm:$0xff]
    %v1801 = vld [vmem:[#allocation4 + $0x548] sm:$0xff]
    %v1802 = vld [vmem:[#allocation4 + $0x550] sm:$0xff]
    %v1803 = vld [vmem:[#allocation4 + $0x558] sm:$0xff]
    %v1804 = vld [vmem:[#allocation4 + $0x560] sm:$0xff]
    %v1805 = vld [vmem:[#allocation4 + $0x568] sm:$0xff]
    %v1806 = vld [vmem:[#allocation4 + $0x570] sm:$0xff]
    %v1807 = vld [vmem:[#allocation4 + $0x578] sm:$0xff]
    %v1808 = vld [vmem:[#allocation4 + $0x580] sm:$0xff]
    %v1809 = vld [vmem:[#allocation4 + $0x588] sm:$0xff]
    %v1810 = vld [vmem:[#allocation4 + $0x590] sm:$0xff]
    %v1811 = vld [vmem:[#allocation4 + $0x598] sm:$0xff]
    %v1812 = vld [vmem:[#allocation4 + $0x5a0] sm:$0xff]
    %v1813 = vld [vmem:[#allocation4 + $0x5a8] sm:$0xff]
    %v1814 = vld [vmem:[#allocation4 + $0x5b0] sm:$0xff]
    %v1815 = vld [vmem:[#allocation4 + $0x5b8] sm:$0xff]
    %v1816 = vld [vmem:[#allocation4 + $0x5c0] sm:$0xff]
    %v1817 = vld [vmem:[#allocation4 + $0x5c8] sm:$0xff]
    %v1818 = vld [vmem:[#allocation4 + $0x5d0] sm:$0xff]
    %v1819 = vld [vmem:[#allocation4 + $0x5d8] sm:$0xff]
    %v1820 = vld [vmem:[#allocation4 + $0x5e0] sm:$0xff]
    %v1821 = vld [vmem:[#allocation4 + $0x5e8] sm:$0xff]
    %v1822 = vld [vmem:[#allocation4 + $0x5f0] sm:$0xff]
    %v1823 = vld [vmem:[#allocation4 + $0x5f8] sm:$0xff]
    %v1824 = vld [vmem:[#allocation4 + $0x600] sm:$0xff]
    %v1825 = vld [vmem:[#allocation4 + $0x608] sm:$0xff]
    %v1826 = vld [vmem:[#allocation4 + $0x610] sm:$0xff]
    %v1827 = vld [vmem:[#allocation4 + $0x618] sm:$0xff]
    %v1828 = vld [vmem:[#allocation4 + $0x620] sm:$0xff]
    %v1829 = vld [vmem:[#allocation4 + $0x628] sm:$0xff]
    %v1830 = vld [vmem:[#allocation4 + $0x630] sm:$0xff]
    %v1831 = vld [vmem:[#allocation4 + $0x638] sm:$0xff]
    %v1832 = vld [vmem:[#allocation4 + $0x640] sm:$0xff]
    %v1833 = vld [vmem:[#allocation4 + $0x648] sm:$0xff]
    %v1834 = vld [vmem:[#allocation4 + $0x650] sm:$0xff]
    %v1835 = vld [vmem:[#allocation4 + $0x658] sm:$0xff]
    %v1836 = vld [vmem:[#allocation4 + $0x660] sm:$0xff]
    %v1837 = vld [vmem:[#allocation4 + $0x668] sm:$0xff]
    %v1838 = vld [vmem:[#allocation4 + $0x670] sm:$0xff]
    %v1839 = vld [vmem:[#allocation4 + $0x678] sm:$0xff]
    %v1840 = vld [vmem:[#allocation4 + $0x680] sm:$0xff]
    %v1841 = vld [vmem:[#allocation4 + $0x688] sm:$0xff]
    %v1842 = vld [vmem:[#allocation4 + $0x690] sm:$0xff]
    %v1843 = vld [vmem:[#allocation4 + $0x698] sm:$0xff]
    %v1844 = vld [vmem:[#allocation4 + $0x6a0] sm:$0xff]
    %v1845 = vld [vmem:[#allocation4 + $0x6a8] sm:$0xff]
    %v1846 = vld [vmem:[#allocation4 + $0x6b0] sm:$0xff]
    %v1847 = vld [vmem:[#allocation4 + $0x6b8] sm:$0xff]
    %v1848 = vld [vmem:[#allocation4 + $0x6c0] sm:$0xff]
    %v1849 = vld [vmem:[#allocation4 + $0x6c8] sm:$0xff]
    %v1850 = vld [vmem:[#allocation4 + $0x6d0] sm:$0xff]
    %v1851 = vld [vmem:[#allocation4 + $0x6d8] sm:$0xff]
    %v1852 = vld [vmem:[#allocation4 + $0x6e0] sm:$0xff]
    %v1853 = vld [vmem:[#allocation4 + $0x6e8] sm:$0xff]
    %v1854 = vld [vmem:[#allocation4 + $0x6f0] sm:$0xff]
    %v1855 = vld [vmem:[#allocation4 + $0x6f8] sm:$0xff]
    %v1856 = vld [vmem:[#allocation4 + $0x700] sm:$0xff]
    %v1857 = vld [vmem:[#allocation4 + $0x708] sm:$0xff]
    %v1858 = vld [vmem:[#allocation4 + $0x710] sm:$0xff]
    %v1859 = vld [vmem:[#allocation4 + $0x718] sm:$0xff]
    %v1860 = vld [vmem:[#allocation4 + $0x720] sm:$0xff]
    %v1861 = vld [vmem:[#allocation4 + $0x728] sm:$0xff]
    %v1862 = vld [vmem:[#allocation4 + $0x730] sm:$0xff]
    %v1863 = vld [vmem:[#allocation4 + $0x738] sm:$0xff]
    %v1864 = vld [vmem:[#allocation4 + $0x740] sm:$0xff]
    %v1865 = vld [vmem:[#allocation4 + $0x748] sm:$0xff]
    %v1866 = vld [vmem:[#allocation4 + $0x750] sm:$0xff]
    %v1867 = vld [vmem:[#allocation4 + $0x758] sm:$0xff]
    %v1868 = vld [vmem:[#allocation4 + $0x760] sm:$0xff]
    %v1869 = vld [vmem:[#allocation4 + $0x768] sm:$0xff]
    %v1870 = vld [vmem:[#allocation4 + $0x770] sm:$0xff]
    %v1871 = vld [vmem:[#allocation4 + $0x778] sm:$0xff]
    %v1872 = vld [vmem:[#allocation4 + $0x780] sm:$0xff]
    %v1873 = vld [vmem:[#allocation4 + $0x788] sm:$0xff]
    %v1874 = vld [vmem:[#allocation4 + $0x790] sm:$0xff]
    %v1875 = vld [vmem:[#allocation4 + $0x798] sm:$0xff]
    %v1876 = vld [vmem:[#allocation4 + $0x7a0] sm:$0xff]
    %v1877 = vld [vmem:[#allocation4 + $0x7a8] sm:$0xff]
    %v1878 = vld [vmem:[#allocation4 + $0x7b0] sm:$0xff]
    %v1879 = vld [vmem:[#allocation4 + $0x7b8] sm:$0xff]
    %v1880 = vld [vmem:[#allocation4 + $0x7c0] sm:$0xff]
    %v1881 = vld [vmem:[#allocation4 + $0x7c8] sm:$0xff]
    %v1882 = vld [vmem:[#allocation4 + $0x7d0] sm:$0xff]
    %v1883 = vld [vmem:[#allocation4 + $0x7d8] sm:$0xff]
    %v1884 = vld [vmem:[#allocation4 + $0x7e0] sm:$0xff]
    %v1885 = vld [vmem:[#allocation4 + $0x7e8] sm:$0xff]
    %v1886 = vld [vmem:[#allocation4 + $0x7f0] sm:$0xff]
    %v1887 = vld [vmem:[#allocation4 + $0x7f8] sm:$0xff]
    %v1888 = vld [vmem:[%s4] sm:$0xff]
    %v1890 = vlaneseq
    %v1891 = vshrl.u32 %v1890, 7
    %v1892 = vsub.s32 0, %v1891
    %v1893 = vrot.slane %v1888, %v1892
    %v1894 = vlaneseq
    %v1895 = vshrl.u32 %v1894, 7
    %v1896 = vsub.s32 1, %v1895
    %v1897 = vrot.slane %v1888, %v1896
    %v1898 = vlaneseq
    %v1899 = vshrl.u32 %v1898, 7
    %v1900 = vsub.s32 2, %v1899
    %v1901 = vrot.slane %v1888, %v1900
    %v1902 = vlaneseq
    %v1903 = vshrl.u32 %v1902, 7
    %v1904 = vsub.s32 3, %v1903
    %v1905 = vrot.slane %v1888, %v1904
    %v1906 = vlaneseq
    %v1907 = vshrl.u32 %v1906, 7
    %v1908 = vsub.s32 4, %v1907
    %v1909 = vrot.slane %v1888, %v1908
    %v1910 = vlaneseq
    %v1911 = vshrl.u32 %v1910, 7
    %v1912 = vsub.s32 5, %v1911
    %v1913 = vrot.slane %v1888, %v1912
    %v1914 = vlaneseq
    %v1915 = vshrl.u32 %v1914, 7
    %v1916 = vsub.s32 6, %v1915
    %v1917 = vrot.slane %v1888, %v1916
    %v1918 = vlaneseq
    %v1919 = vshrl.u32 %v1918, 7
    %v1920 = vsub.s32 7, %v1919
    %v1921 = vrot.slane %v1888, %v1920
    %v2186 = vunpack.c.l.b16 %v1632
    %v2187 = vunpack.c.h.b16 %v1632
    %v2188 = vunpack.c.l.b16 %v1633
    %v2189 = vunpack.c.h.b16 %v1633
    %v2190 = vunpack.c.l.b16 %v1634
    %v2191 = vunpack.c.h.b16 %v1634
    %v2192 = vunpack.c.l.b16 %v1635
    %v2193 = vunpack.c.h.b16 %v1635
    %v2194 = vunpack.c.l.b16 %v1636
    %v2195 = vunpack.c.h.b16 %v1636
    %v2196 = vunpack.c.l.b16 %v1637
    %v2197 = vunpack.c.h.b16 %v1637
    %v2198 = vunpack.c.l.b16 %v1638
    %v2199 = vunpack.c.h.b16 %v1638
    %v2200 = vunpack.c.l.b16 %v1639
    %v2201 = vunpack.c.h.b16 %v1639
    %v2202 = vunpack.c.l.b16 %v1640
    %v2203 = vunpack.c.h.b16 %v1640
    %v2204 = vunpack.c.l.b16 %v1641
    %v2205 = vunpack.c.h.b16 %v1641
    %v2206 = vunpack.c.l.b16 %v1642
    %v2207 = vunpack.c.h.b16 %v1642
    %v2208 = vunpack.c.l.b16 %v1643
    %v2209 = vunpack.c.h.b16 %v1643
    %v2210 = vunpack.c.l.b16 %v1644
    %v2211 = vunpack.c.h.b16 %v1644
    %v2212 = vunpack.c.l.b16 %v1645
    %v2213 = vunpack.c.h.b16 %v1645
    %v2214 = vunpack.c.l.b16 %v1646
    %v2215 = vunpack.c.h.b16 %v1646
    %v2216 = vunpack.c.l.b16 %v1647
    %v2217 = vunpack.c.h.b16 %v1647
    %v2218 = vunpack.c.l.b16 %v1648
    %v2219 = vunpack.c.h.b16 %v1648
    %v2220 = vunpack.c.l.b16 %v1649
    %v2221 = vunpack.c.h.b16 %v1649
    %v2222 = vunpack.c.l.b16 %v1650
    %v2223 = vunpack.c.h.b16 %v1650
    %v2224 = vunpack.c.l.b16 %v1651
    %v2225 = vunpack.c.h.b16 %v1651
    %v2226 = vunpack.c.l.b16 %v1652
    %v2227 = vunpack.c.h.b16 %v1652
    %v2228 = vunpack.c.l.b16 %v1653
    %v2229 = vunpack.c.h.b16 %v1653
    %v2230 = vunpack.c.l.b16 %v1654
    %v2231 = vunpack.c.h.b16 %v1654
    %v2232 = vunpack.c.l.b16 %v1655
    %v2233 = vunpack.c.h.b16 %v1655
    %v2234 = vunpack.c.l.b16 %v1656
    %v2235 = vunpack.c.h.b16 %v1656
    %v2236 = vunpack.c.l.b16 %v1657
    %v2237 = vunpack.c.h.b16 %v1657
    %v2238 = vunpack.c.l.b16 %v1658
    %v2239 = vunpack.c.h.b16 %v1658
    %v2240 = vunpack.c.l.b16 %v1659
    %v2241 = vunpack.c.h.b16 %v1659
    %v2242 = vunpack.c.l.b16 %v1660
    %v2243 = vunpack.c.h.b16 %v1660
    %v2244 = vunpack.c.l.b16 %v1661
    %v2245 = vunpack.c.h.b16 %v1661
    %v2246 = vunpack.c.l.b16 %v1662
    %v2247 = vunpack.c.h.b16 %v1662
    %v2248 = vunpack.c.l.b16 %v1663
    %v2249 = vunpack.c.h.b16 %v1663
    %v2250 = vunpack.c.l.b16 %v1664
    %v2251 = vunpack.c.h.b16 %v1664
    %v2252 = vunpack.c.l.b16 %v1665
    %v2253 = vunpack.c.h.b16 %v1665
    %v2254 = vunpack.c.l.b16 %v1666
    %v2255 = vunpack.c.h.b16 %v1666
    %v2256 = vunpack.c.l.b16 %v1667
    %v2257 = vunpack.c.h.b16 %v1667
    %v2258 = vunpack.c.l.b16 %v1668
    %v2259 = vunpack.c.h.b16 %v1668
    %v2260 = vunpack.c.l.b16 %v1669
    %v2261 = vunpack.c.h.b16 %v1669
    %v2262 = vunpack.c.l.b16 %v1670
    %v2263 = vunpack.c.h.b16 %v1670
    %v2264 = vunpack.c.l.b16 %v1671
    %v2265 = vunpack.c.h.b16 %v1671
    %v2266 = vunpack.c.l.b16 %v1672
    %v2267 = vunpack.c.h.b16 %v1672
    %v2268 = vunpack.c.l.b16 %v1673
    %v2269 = vunpack.c.h.b16 %v1673
    %v2270 = vunpack.c.l.b16 %v1674
    %v2271 = vunpack.c.h.b16 %v1674
    %v2272 = vunpack.c.l.b16 %v1675
    %v2273 = vunpack.c.h.b16 %v1675
    %v2274 = vunpack.c.l.b16 %v1676
    %v2275 = vunpack.c.h.b16 %v1676
    %v2276 = vunpack.c.l.b16 %v1677
    %v2277 = vunpack.c.h.b16 %v1677
    %v2278 = vunpack.c.l.b16 %v1678
    %v2279 = vunpack.c.h.b16 %v1678
    %v2280 = vunpack.c.l.b16 %v1679
    %v2281 = vunpack.c.h.b16 %v1679
    %v2282 = vunpack.c.l.b16 %v1680
    %v2283 = vunpack.c.h.b16 %v1680
    %v2284 = vunpack.c.l.b16 %v1681
    %v2285 = vunpack.c.h.b16 %v1681
    %v2286 = vunpack.c.l.b16 %v1682
    %v2287 = vunpack.c.h.b16 %v1682
    %v2288 = vunpack.c.l.b16 %v1683
    %v2289 = vunpack.c.h.b16 %v1683
    %v2290 = vunpack.c.l.b16 %v1684
    %v2291 = vunpack.c.h.b16 %v1684
    %v2292 = vunpack.c.l.b16 %v1685
    %v2293 = vunpack.c.h.b16 %v1685
    %v2294 = vunpack.c.l.b16 %v1686
    %v2295 = vunpack.c.h.b16 %v1686
    %v2296 = vunpack.c.l.b16 %v1687
    %v2297 = vunpack.c.h.b16 %v1687
    %v2298 = vunpack.c.l.b16 %v1688
    %v2299 = vunpack.c.h.b16 %v1688
    %v2300 = vunpack.c.l.b16 %v1689
    %v2301 = vunpack.c.h.b16 %v1689
    %v2302 = vunpack.c.l.b16 %v1690
    %v2303 = vunpack.c.h.b16 %v1690
    %v2304 = vunpack.c.l.b16 %v1691
    %v2305 = vunpack.c.h.b16 %v1691
    %v2306 = vunpack.c.l.b16 %v1692
    %v2307 = vunpack.c.h.b16 %v1692
    %v2308 = vunpack.c.l.b16 %v1693
    %v2309 = vunpack.c.h.b16 %v1693
    %v2310 = vunpack.c.l.b16 %v1694
    %v2311 = vunpack.c.h.b16 %v1694
    %v2312 = vunpack.c.l.b16 %v1695
    %v2313 = vunpack.c.h.b16 %v1695
    %v2314 = vunpack.c.l.b16 %v1696
    %v2315 = vunpack.c.h.b16 %v1696
    %v2316 = vunpack.c.l.b16 %v1697
    %v2317 = vunpack.c.h.b16 %v1697
    %v2318 = vunpack.c.l.b16 %v1698
    %v2319 = vunpack.c.h.b16 %v1698
    %v2320 = vunpack.c.l.b16 %v1699
    %v2321 = vunpack.c.h.b16 %v1699
    %v2322 = vunpack.c.l.b16 %v1700
    %v2323 = vunpack.c.h.b16 %v1700
    %v2324 = vunpack.c.l.b16 %v1701
    %v2325 = vunpack.c.h.b16 %v1701
    %v2326 = vunpack.c.l.b16 %v1702
    %v2327 = vunpack.c.h.b16 %v1702
    %v2328 = vunpack.c.l.b16 %v1703
    %v2329 = vunpack.c.h.b16 %v1703
    %v2330 = vunpack.c.l.b16 %v1704
    %v2331 = vunpack.c.h.b16 %v1704
    %v2332 = vunpack.c.l.b16 %v1705
    %v2333 = vunpack.c.h.b16 %v1705
    %v2334 = vunpack.c.l.b16 %v1706
    %v2335 = vunpack.c.h.b16 %v1706
    %v2336 = vunpack.c.l.b16 %v1707
    %v2337 = vunpack.c.h.b16 %v1707
    %v2338 = vunpack.c.l.b16 %v1708
    %v2339 = vunpack.c.h.b16 %v1708
    %v2340 = vunpack.c.l.b16 %v1709
    %v2341 = vunpack.c.h.b16 %v1709
    %v2342 = vunpack.c.l.b16 %v1710
    %v2343 = vunpack.c.h.b16 %v1710
    %v2344 = vunpack.c.l.b16 %v1711
    %v2345 = vunpack.c.h.b16 %v1711
    %v2346 = vunpack.c.l.b16 %v1712
    %v2347 = vunpack.c.h.b16 %v1712
    %v2348 = vunpack.c.l.b16 %v1713
    %v2349 = vunpack.c.h.b16 %v1713
    %v2350 = vunpack.c.l.b16 %v1714
    %v2351 = vunpack.c.h.b16 %v1714
    %v2352 = vunpack.c.l.b16 %v1715
    %v2353 = vunpack.c.h.b16 %v1715
    %v2354 = vunpack.c.l.b16 %v1716
    %v2355 = vunpack.c.h.b16 %v1716
    %v2356 = vunpack.c.l.b16 %v1717
    %v2357 = vunpack.c.h.b16 %v1717
    %v2358 = vunpack.c.l.b16 %v1718
    %v2359 = vunpack.c.h.b16 %v1718
    %v2360 = vunpack.c.l.b16 %v1719
    %v2361 = vunpack.c.h.b16 %v1719
    %v2362 = vunpack.c.l.b16 %v1720
    %v2363 = vunpack.c.h.b16 %v1720
    %v2364 = vunpack.c.l.b16 %v1721
    %v2365 = vunpack.c.h.b16 %v1721
    %v2366 = vunpack.c.l.b16 %v1722
    %v2367 = vunpack.c.h.b16 %v1722
    %v2368 = vunpack.c.l.b16 %v1723
    %v2369 = vunpack.c.h.b16 %v1723
    %v2370 = vunpack.c.l.b16 %v1724
    %v2371 = vunpack.c.h.b16 %v1724
    %v2372 = vunpack.c.l.b16 %v1725
    %v2373 = vunpack.c.h.b16 %v1725
    %v2374 = vunpack.c.l.b16 %v1726
    %v2375 = vunpack.c.h.b16 %v1726
    %v2376 = vunpack.c.l.b16 %v1727
    %v2377 = vunpack.c.h.b16 %v1727
    %v2378 = vunpack.c.l.b16 %v1728
    %v2379 = vunpack.c.h.b16 %v1728
    %v2380 = vunpack.c.l.b16 %v1729
    %v2381 = vunpack.c.h.b16 %v1729
    %v2382 = vunpack.c.l.b16 %v1730
    %v2383 = vunpack.c.h.b16 %v1730
    %v2384 = vunpack.c.l.b16 %v1731
    %v2385 = vunpack.c.h.b16 %v1731
    %v2386 = vunpack.c.l.b16 %v1732
    %v2387 = vunpack.c.h.b16 %v1732
    %v2388 = vunpack.c.l.b16 %v1733
    %v2389 = vunpack.c.h.b16 %v1733
    %v2390 = vunpack.c.l.b16 %v1734
    %v2391 = vunpack.c.h.b16 %v1734
    %v2392 = vunpack.c.l.b16 %v1735
    %v2393 = vunpack.c.h.b16 %v1735
    %v2394 = vunpack.c.l.b16 %v1736
    %v2395 = vunpack.c.h.b16 %v1736
    %v2396 = vunpack.c.l.b16 %v1737
    %v2397 = vunpack.c.h.b16 %v1737
    %v2398 = vunpack.c.l.b16 %v1738
    %v2399 = vunpack.c.h.b16 %v1738
    %v2400 = vunpack.c.l.b16 %v1739
    %v2401 = vunpack.c.h.b16 %v1739
    %v2402 = vunpack.c.l.b16 %v1740
    %v2403 = vunpack.c.h.b16 %v1740
    %v2404 = vunpack.c.l.b16 %v1741
    %v2405 = vunpack.c.h.b16 %v1741
    %v2406 = vunpack.c.l.b16 %v1742
    %v2407 = vunpack.c.h.b16 %v1742
    %v2408 = vunpack.c.l.b16 %v1743
    %v2409 = vunpack.c.h.b16 %v1743
    %v2410 = vunpack.c.l.b16 %v1744
    %v2411 = vunpack.c.h.b16 %v1744
    %v2412 = vunpack.c.l.b16 %v1745
    %v2413 = vunpack.c.h.b16 %v1745
    %v2414 = vunpack.c.l.b16 %v1746
    %v2415 = vunpack.c.h.b16 %v1746
    %v2416 = vunpack.c.l.b16 %v1747
    %v2417 = vunpack.c.h.b16 %v1747
    %v2418 = vunpack.c.l.b16 %v1748
    %v2419 = vunpack.c.h.b16 %v1748
    %v2420 = vunpack.c.l.b16 %v1749
    %v2421 = vunpack.c.h.b16 %v1749
    %v2422 = vunpack.c.l.b16 %v1750
    %v2423 = vunpack.c.h.b16 %v1750
    %v2424 = vunpack.c.l.b16 %v1751
    %v2425 = vunpack.c.h.b16 %v1751
    %v2426 = vunpack.c.l.b16 %v1752
    %v2427 = vunpack.c.h.b16 %v1752
    %v2428 = vunpack.c.l.b16 %v1753
    %v2429 = vunpack.c.h.b16 %v1753
    %v2430 = vunpack.c.l.b16 %v1754
    %v2431 = vunpack.c.h.b16 %v1754
    %v2432 = vunpack.c.l.b16 %v1755
    %v2433 = vunpack.c.h.b16 %v1755
    %v2434 = vunpack.c.l.b16 %v1756
    %v2435 = vunpack.c.h.b16 %v1756
    %v2436 = vunpack.c.l.b16 %v1757
    %v2437 = vunpack.c.h.b16 %v1757
    %v2438 = vunpack.c.l.b16 %v1758
    %v2439 = vunpack.c.h.b16 %v1758
    %v2440 = vunpack.c.l.b16 %v1759
    %v2441 = vunpack.c.h.b16 %v1759
    %v2442 = vunpack.c.l.b16 %v1760
    %v2443 = vunpack.c.h.b16 %v1760
    %v2444 = vunpack.c.l.b16 %v1761
    %v2445 = vunpack.c.h.b16 %v1761
    %v2446 = vunpack.c.l.b16 %v1762
    %v2447 = vunpack.c.h.b16 %v1762
    %v2448 = vunpack.c.l.b16 %v1763
    %v2449 = vunpack.c.h.b16 %v1763
    %v2450 = vunpack.c.l.b16 %v1764
    %v2451 = vunpack.c.h.b16 %v1764
    %v2452 = vunpack.c.l.b16 %v1765
    %v2453 = vunpack.c.h.b16 %v1765
    %v2454 = vunpack.c.l.b16 %v1766
    %v2455 = vunpack.c.h.b16 %v1766
    %v2456 = vunpack.c.l.b16 %v1767
    %v2457 = vunpack.c.h.b16 %v1767
    %v2458 = vunpack.c.l.b16 %v1768
    %v2459 = vunpack.c.h.b16 %v1768
    %v2460 = vunpack.c.l.b16 %v1769
    %v2461 = vunpack.c.h.b16 %v1769
    %v2462 = vunpack.c.l.b16 %v1770
    %v2463 = vunpack.c.h.b16 %v1770
    %v2464 = vunpack.c.l.b16 %v1771
    %v2465 = vunpack.c.h.b16 %v1771
    %v2466 = vunpack.c.l.b16 %v1772
    %v2467 = vunpack.c.h.b16 %v1772
    %v2468 = vunpack.c.l.b16 %v1773
    %v2469 = vunpack.c.h.b16 %v1773
    %v2470 = vunpack.c.l.b16 %v1774
    %v2471 = vunpack.c.h.b16 %v1774
    %v2472 = vunpack.c.l.b16 %v1775
    %v2473 = vunpack.c.h.b16 %v1775
    %v2474 = vunpack.c.l.b16 %v1776
    %v2475 = vunpack.c.h.b16 %v1776
    %v2476 = vunpack.c.l.b16 %v1777
    %v2477 = vunpack.c.h.b16 %v1777
    %v2478 = vunpack.c.l.b16 %v1778
    %v2479 = vunpack.c.h.b16 %v1778
    %v2480 = vunpack.c.l.b16 %v1779
    %v2481 = vunpack.c.h.b16 %v1779
    %v2482 = vunpack.c.l.b16 %v1780
    %v2483 = vunpack.c.h.b16 %v1780
    %v2484 = vunpack.c.l.b16 %v1781
    %v2485 = vunpack.c.h.b16 %v1781
    %v2486 = vunpack.c.l.b16 %v1782
    %v2487 = vunpack.c.h.b16 %v1782
    %v2488 = vunpack.c.l.b16 %v1783
    %v2489 = vunpack.c.h.b16 %v1783
    %v2490 = vunpack.c.l.b16 %v1784
    %v2491 = vunpack.c.h.b16 %v1784
    %v2492 = vunpack.c.l.b16 %v1785
    %v2493 = vunpack.c.h.b16 %v1785
    %v2494 = vunpack.c.l.b16 %v1786
    %v2495 = vunpack.c.h.b16 %v1786
    %v2496 = vunpack.c.l.b16 %v1787
    %v2497 = vunpack.c.h.b16 %v1787
    %v2498 = vunpack.c.l.b16 %v1788
    %v2499 = vunpack.c.h.b16 %v1788
    %v2500 = vunpack.c.l.b16 %v1789
    %v2501 = vunpack.c.h.b16 %v1789
    %v2502 = vunpack.c.l.b16 %v1790
    %v2503 = vunpack.c.h.b16 %v1790
    %v2504 = vunpack.c.l.b16 %v1791
    %v2505 = vunpack.c.h.b16 %v1791
    %v2506 = vunpack.c.l.b16 %v1792
    %v2507 = vunpack.c.h.b16 %v1792
    %v2508 = vunpack.c.l.b16 %v1793
    %v2509 = vunpack.c.h.b16 %v1793
    %v2510 = vunpack.c.l.b16 %v1794
    %v2511 = vunpack.c.h.b16 %v1794
    %v2512 = vunpack.c.l.b16 %v1795
    %v2513 = vunpack.c.h.b16 %v1795
    %v2514 = vunpack.c.l.b16 %v1796
    %v2515 = vunpack.c.h.b16 %v1796
    %v2516 = vunpack.c.l.b16 %v1797
    %v2517 = vunpack.c.h.b16 %v1797
    %v2518 = vunpack.c.l.b16 %v1798
    %v2519 = vunpack.c.h.b16 %v1798
    %v2520 = vunpack.c.l.b16 %v1799
    %v2521 = vunpack.c.h.b16 %v1799
    %v2522 = vunpack.c.l.b16 %v1800
    %v2523 = vunpack.c.h.b16 %v1800
    %v2524 = vunpack.c.l.b16 %v1801
    %v2525 = vunpack.c.h.b16 %v1801
    %v2526 = vunpack.c.l.b16 %v1802
    %v2527 = vunpack.c.h.b16 %v1802
    %v2528 = vunpack.c.l.b16 %v1803
    %v2529 = vunpack.c.h.b16 %v1803
    %v2530 = vunpack.c.l.b16 %v1804
    %v2531 = vunpack.c.h.b16 %v1804
    %v2532 = vunpack.c.l.b16 %v1805
    %v2533 = vunpack.c.h.b16 %v1805
    %v2534 = vunpack.c.l.b16 %v1806
    %v2535 = vunpack.c.h.b16 %v1806
    %v2536 = vunpack.c.l.b16 %v1807
    %v2537 = vunpack.c.h.b16 %v1807
    %v2538 = vunpack.c.l.b16 %v1808
    %v2539 = vunpack.c.h.b16 %v1808
    %v2540 = vunpack.c.l.b16 %v1809
    %v2541 = vunpack.c.h.b16 %v1809
    %v2542 = vunpack.c.l.b16 %v1810
    %v2543 = vunpack.c.h.b16 %v1810
    %v2544 = vunpack.c.l.b16 %v1811
    %v2545 = vunpack.c.h.b16 %v1811
    %v2546 = vunpack.c.l.b16 %v1812
    %v2547 = vunpack.c.h.b16 %v1812
    %v2548 = vunpack.c.l.b16 %v1813
    %v2549 = vunpack.c.h.b16 %v1813
    %v2550 = vunpack.c.l.b16 %v1814
    %v2551 = vunpack.c.h.b16 %v1814
    %v2552 = vunpack.c.l.b16 %v1815
    %v2553 = vunpack.c.h.b16 %v1815
    %v2554 = vunpack.c.l.b16 %v1816
    %v2555 = vunpack.c.h.b16 %v1816
    %v2556 = vunpack.c.l.b16 %v1817
    %v2557 = vunpack.c.h.b16 %v1817
    %v2558 = vunpack.c.l.b16 %v1818
    %v2559 = vunpack.c.h.b16 %v1818
    %v2560 = vunpack.c.l.b16 %v1819
    %v2561 = vunpack.c.h.b16 %v1819
    %v2562 = vunpack.c.l.b16 %v1820
    %v2563 = vunpack.c.h.b16 %v1820
    %v2564 = vunpack.c.l.b16 %v1821
    %v2565 = vunpack.c.h.b16 %v1821
    %v2566 = vunpack.c.l.b16 %v1822
    %v2567 = vunpack.c.h.b16 %v1822
    %v2568 = vunpack.c.l.b16 %v1823
    %v2569 = vunpack.c.h.b16 %v1823
    %v2570 = vunpack.c.l.b16 %v1824
    %v2571 = vunpack.c.h.b16 %v1824
    %v2572 = vunpack.c.l.b16 %v1825
    %v2573 = vunpack.c.h.b16 %v1825
    %v2574 = vunpack.c.l.b16 %v1826
    %v2575 = vunpack.c.h.b16 %v1826
    %v2576 = vunpack.c.l.b16 %v1827
    %v2577 = vunpack.c.h.b16 %v1827
    %v2578 = vunpack.c.l.b16 %v1828
    %v2579 = vunpack.c.h.b16 %v1828
    %v2580 = vunpack.c.l.b16 %v1829
    %v2581 = vunpack.c.h.b16 %v1829
    %v2582 = vunpack.c.l.b16 %v1830
    %v2583 = vunpack.c.h.b16 %v1830
    %v2584 = vunpack.c.l.b16 %v1831
    %v2585 = vunpack.c.h.b16 %v1831
    %v2586 = vunpack.c.l.b16 %v1832
    %v2587 = vunpack.c.h.b16 %v1832
    %v2588 = vunpack.c.l.b16 %v1833
    %v2589 = vunpack.c.h.b16 %v1833
    %v2590 = vunpack.c.l.b16 %v1834
    %v2591 = vunpack.c.h.b16 %v1834
    %v2592 = vunpack.c.l.b16 %v1835
    %v2593 = vunpack.c.h.b16 %v1835
    %v2594 = vunpack.c.l.b16 %v1836
    %v2595 = vunpack.c.h.b16 %v1836
    %v2596 = vunpack.c.l.b16 %v1837
    %v2597 = vunpack.c.h.b16 %v1837
    %v2598 = vunpack.c.l.b16 %v1838
    %v2599 = vunpack.c.h.b16 %v1838
    %v2600 = vunpack.c.l.b16 %v1839
    %v2601 = vunpack.c.h.b16 %v1839
    %v2602 = vunpack.c.l.b16 %v1840
    %v2603 = vunpack.c.h.b16 %v1840
    %v2604 = vunpack.c.l.b16 %v1841
    %v2605 = vunpack.c.h.b16 %v1841
    %v2606 = vunpack.c.l.b16 %v1842
    %v2607 = vunpack.c.h.b16 %v1842
    %v2608 = vunpack.c.l.b16 %v1843
    %v2609 = vunpack.c.h.b16 %v1843
    %v2610 = vunpack.c.l.b16 %v1844
    %v2611 = vunpack.c.h.b16 %v1844
    %v2612 = vunpack.c.l.b16 %v1845
    %v2613 = vunpack.c.h.b16 %v1845
    %v2614 = vunpack.c.l.b16 %v1846
    %v2615 = vunpack.c.h.b16 %v1846
    %v2616 = vunpack.c.l.b16 %v1847
    %v2617 = vunpack.c.h.b16 %v1847
    %v2618 = vunpack.c.l.b16 %v1848
    %v2619 = vunpack.c.h.b16 %v1848
    %v2620 = vunpack.c.l.b16 %v1849
    %v2621 = vunpack.c.h.b16 %v1849
    %v2622 = vunpack.c.l.b16 %v1850
    %v2623 = vunpack.c.h.b16 %v1850
    %v2624 = vunpack.c.l.b16 %v1851
    %v2625 = vunpack.c.h.b16 %v1851
    %v2626 = vunpack.c.l.b16 %v1852
    %v2627 = vunpack.c.h.b16 %v1852
    %v2628 = vunpack.c.l.b16 %v1853
    %v2629 = vunpack.c.h.b16 %v1853
    %v2630 = vunpack.c.l.b16 %v1854
    %v2631 = vunpack.c.h.b16 %v1854
    %v2632 = vunpack.c.l.b16 %v1855
    %v2633 = vunpack.c.h.b16 %v1855
    %v2634 = vunpack.c.l.b16 %v1856
    %v2635 = vunpack.c.h.b16 %v1856
    %v2636 = vunpack.c.l.b16 %v1857
    %v2637 = vunpack.c.h.b16 %v1857
    %v2638 = vunpack.c.l.b16 %v1858
    %v2639 = vunpack.c.h.b16 %v1858
    %v2640 = vunpack.c.l.b16 %v1859
    %v2641 = vunpack.c.h.b16 %v1859
    %v2642 = vunpack.c.l.b16 %v1860
    %v2643 = vunpack.c.h.b16 %v1860
    %v2644 = vunpack.c.l.b16 %v1861
    %v2645 = vunpack.c.h.b16 %v1861
    %v2646 = vunpack.c.l.b16 %v1862
    %v2647 = vunpack.c.h.b16 %v1862
    %v2648 = vunpack.c.l.b16 %v1863
    %v2649 = vunpack.c.h.b16 %v1863
    %v2650 = vunpack.c.l.b16 %v1864
    %v2651 = vunpack.c.h.b16 %v1864
    %v2652 = vunpack.c.l.b16 %v1865
    %v2653 = vunpack.c.h.b16 %v1865
    %v2654 = vunpack.c.l.b16 %v1866
    %v2655 = vunpack.c.h.b16 %v1866
    %v2656 = vunpack.c.l.b16 %v1867
    %v2657 = vunpack.c.h.b16 %v1867
    %v2658 = vunpack.c.l.b16 %v1868
    %v2659 = vunpack.c.h.b16 %v1868
    %v2660 = vunpack.c.l.b16 %v1869
    %v2661 = vunpack.c.h.b16 %v1869
    %v2662 = vunpack.c.l.b16 %v1870
    %v2663 = vunpack.c.h.b16 %v1870
    %v2664 = vunpack.c.l.b16 %v1871
    %v2665 = vunpack.c.h.b16 %v1871
    %v2666 = vunpack.c.l.b16 %v1872
    %v2667 = vunpack.c.h.b16 %v1872
    %v2668 = vunpack.c.l.b16 %v1873
    %v2669 = vunpack.c.h.b16 %v1873
    %v2670 = vunpack.c.l.b16 %v1874
    %v2671 = vunpack.c.h.b16 %v1874
    %v2672 = vunpack.c.l.b16 %v1875
    %v2673 = vunpack.c.h.b16 %v1875
    %v2674 = vunpack.c.l.b16 %v1876
    %v2675 = vunpack.c.h.b16 %v1876
    %v2676 = vunpack.c.l.b16 %v1877
    %v2677 = vunpack.c.h.b16 %v1877
    %v2678 = vunpack.c.l.b16 %v1878
    %v2679 = vunpack.c.h.b16 %v1878
    %v2680 = vunpack.c.l.b16 %v1879
    %v2681 = vunpack.c.h.b16 %v1879
    %v2682 = vunpack.c.l.b16 %v1880
    %v2683 = vunpack.c.h.b16 %v1880
    %v2684 = vunpack.c.l.b16 %v1881
    %v2685 = vunpack.c.h.b16 %v1881
    %v2686 = vunpack.c.l.b16 %v1882
    %v2687 = vunpack.c.h.b16 %v1882
    %v2688 = vunpack.c.l.b16 %v1883
    %v2689 = vunpack.c.h.b16 %v1883
    %v2690 = vunpack.c.l.b16 %v1884
    %v2691 = vunpack.c.h.b16 %v1884
    %v2692 = vunpack.c.l.b16 %v1885
    %v2693 = vunpack.c.h.b16 %v1885
    %v2694 = vunpack.c.l.b16 %v1886
    %v2695 = vunpack.c.h.b16 %v1886
    %v2696 = vunpack.c.l.b16 %v1887
    %v2697 = vunpack.c.h.b16 %v1887
    %v2698 = vpack.c.b16 %v2194, %v2186
    %v2699 = vpack.c.b16 %v2195, %v2187
    %v2700 = vpack.c.b16 %v2196, %v2188
    %v2701 = vpack.c.b16 %v2197, %v2189
    %v2702 = vpack.c.b16 %v2198, %v2190
    %v2703 = vpack.c.b16 %v2199, %v2191
    %v2704 = vpack.c.b16 %v2200, %v2192
    %v2705 = vpack.c.b16 %v2201, %v2193
    %v2706 = vpack.c.b16 %v2210, %v2202
    %v2707 = vpack.c.b16 %v2211, %v2203
    %v2708 = vpack.c.b16 %v2212, %v2204
    %v2709 = vpack.c.b16 %v2213, %v2205
    %v2710 = vpack.c.b16 %v2214, %v2206
    %v2711 = vpack.c.b16 %v2215, %v2207
    %v2712 = vpack.c.b16 %v2216, %v2208
    %v2713 = vpack.c.b16 %v2217, %v2209
    %v2714 = vpack.c.b16 %v2226, %v2218
    %v2715 = vpack.c.b16 %v2227, %v2219
    %v2716 = vpack.c.b16 %v2228, %v2220
    %v2717 = vpack.c.b16 %v2229, %v2221
    %v2718 = vpack.c.b16 %v2230, %v2222
    %v2719 = vpack.c.b16 %v2231, %v2223
    %v2720 = vpack.c.b16 %v2232, %v2224
    %v2721 = vpack.c.b16 %v2233, %v2225
    %v2722 = vpack.c.b16 %v2242, %v2234
    %v2723 = vpack.c.b16 %v2243, %v2235
    %v2724 = vpack.c.b16 %v2244, %v2236
    %v2725 = vpack.c.b16 %v2245, %v2237
    %v2726 = vpack.c.b16 %v2246, %v2238
    %v2727 = vpack.c.b16 %v2247, %v2239
    %v2728 = vpack.c.b16 %v2248, %v2240
    %v2729 = vpack.c.b16 %v2249, %v2241
    %v2730 = vpack.c.b16 %v2258, %v2250
    %v2731 = vpack.c.b16 %v2259, %v2251
    %v2732 = vpack.c.b16 %v2260, %v2252
    %v2733 = vpack.c.b16 %v2261, %v2253
    %v2734 = vpack.c.b16 %v2262, %v2254
    %v2735 = vpack.c.b16 %v2263, %v2255
    %v2736 = vpack.c.b16 %v2264, %v2256
    %v2737 = vpack.c.b16 %v2265, %v2257
    %v2738 = vpack.c.b16 %v2274, %v2266
    %v2739 = vpack.c.b16 %v2275, %v2267
    %v2740 = vpack.c.b16 %v2276, %v2268
    %v2741 = vpack.c.b16 %v2277, %v2269
    %v2742 = vpack.c.b16 %v2278, %v2270
    %v2743 = vpack.c.b16 %v2279, %v2271
    %v2744 = vpack.c.b16 %v2280, %v2272
    %v2745 = vpack.c.b16 %v2281, %v2273
    %v2746 = vpack.c.b16 %v2290, %v2282
    %v2747 = vpack.c.b16 %v2291, %v2283
    %v2748 = vpack.c.b16 %v2292, %v2284
    %v2749 = vpack.c.b16 %v2293, %v2285
    %v2750 = vpack.c.b16 %v2294, %v2286
    %v2751 = vpack.c.b16 %v2295, %v2287
    %v2752 = vpack.c.b16 %v2296, %v2288
    %v2753 = vpack.c.b16 %v2297, %v2289
    %v2754 = vpack.c.b16 %v2306, %v2298
    %v2755 = vpack.c.b16 %v2307, %v2299
    %v2756 = vpack.c.b16 %v2308, %v2300
    %v2757 = vpack.c.b16 %v2309, %v2301
    %v2758 = vpack.c.b16 %v2310, %v2302
    %v2759 = vpack.c.b16 %v2311, %v2303
    %v2760 = vpack.c.b16 %v2312, %v2304
    %v2761 = vpack.c.b16 %v2313, %v2305
    %v2762 = vpack.c.b16 %v2322, %v2314
    %v2763 = vpack.c.b16 %v2323, %v2315
    %v2764 = vpack.c.b16 %v2324, %v2316
    %v2765 = vpack.c.b16 %v2325, %v2317
    %v2766 = vpack.c.b16 %v2326, %v2318
    %v2767 = vpack.c.b16 %v2327, %v2319
    %v2768 = vpack.c.b16 %v2328, %v2320
    %v2769 = vpack.c.b16 %v2329, %v2321
    %v2770 = vpack.c.b16 %v2338, %v2330
    %v2771 = vpack.c.b16 %v2339, %v2331
    %v2772 = vpack.c.b16 %v2340, %v2332
    %v2773 = vpack.c.b16 %v2341, %v2333
    %v2774 = vpack.c.b16 %v2342, %v2334
    %v2775 = vpack.c.b16 %v2343, %v2335
    %v2776 = vpack.c.b16 %v2344, %v2336
    %v2777 = vpack.c.b16 %v2345, %v2337
    %v2778 = vpack.c.b16 %v2354, %v2346
    %v2779 = vpack.c.b16 %v2355, %v2347
    %v2780 = vpack.c.b16 %v2356, %v2348
    %v2781 = vpack.c.b16 %v2357, %v2349
    %v2782 = vpack.c.b16 %v2358, %v2350
    %v2783 = vpack.c.b16 %v2359, %v2351
    %v2784 = vpack.c.b16 %v2360, %v2352
    %v2785 = vpack.c.b16 %v2361, %v2353
    %v2786 = vpack.c.b16 %v2370, %v2362
    %v2787 = vpack.c.b16 %v2371, %v2363
    %v2788 = vpack.c.b16 %v2372, %v2364
    %v2789 = vpack.c.b16 %v2373, %v2365
    %v2790 = vpack.c.b16 %v2374, %v2366
    %v2791 = vpack.c.b16 %v2375, %v2367
    %v2792 = vpack.c.b16 %v2376, %v2368
    %v2793 = vpack.c.b16 %v2377, %v2369
    %v2794 = vpack.c.b16 %v2386, %v2378
    %v2795 = vpack.c.b16 %v2387, %v2379
    %v2796 = vpack.c.b16 %v2388, %v2380
    %v2797 = vpack.c.b16 %v2389, %v2381
    %v2798 = vpack.c.b16 %v2390, %v2382
    %v2799 = vpack.c.b16 %v2391, %v2383
    %v2800 = vpack.c.b16 %v2392, %v2384
    %v2801 = vpack.c.b16 %v2393, %v2385
    %v2802 = vpack.c.b16 %v2402, %v2394
    %v2803 = vpack.c.b16 %v2403, %v2395
    %v2804 = vpack.c.b16 %v2404, %v2396
    %v2805 = vpack.c.b16 %v2405, %v2397
    %v2806 = vpack.c.b16 %v2406, %v2398
    %v2807 = vpack.c.b16 %v2407, %v2399
    %v2808 = vpack.c.b16 %v2408, %v2400
    %v2809 = vpack.c.b16 %v2409, %v2401
    %v2810 = vpack.c.b16 %v2418, %v2410
    %v2811 = vpack.c.b16 %v2419, %v2411
    %v2812 = vpack.c.b16 %v2420, %v2412
    %v2813 = vpack.c.b16 %v2421, %v2413
    %v2814 = vpack.c.b16 %v2422, %v2414
    %v2815 = vpack.c.b16 %v2423, %v2415
    %v2816 = vpack.c.b16 %v2424, %v2416
    %v2817 = vpack.c.b16 %v2425, %v2417
    %v2818 = vpack.c.b16 %v2434, %v2426
    %v2819 = vpack.c.b16 %v2435, %v2427
    %v2820 = vpack.c.b16 %v2436, %v2428
    %v2821 = vpack.c.b16 %v2437, %v2429
    %v2822 = vpack.c.b16 %v2438, %v2430
    %v2823 = vpack.c.b16 %v2439, %v2431
    %v2824 = vpack.c.b16 %v2440, %v2432
    %v2825 = vpack.c.b16 %v2441, %v2433
    %v2826 = vpack.c.b16 %v2450, %v2442
    %v2827 = vpack.c.b16 %v2451, %v2443
    %v2828 = vpack.c.b16 %v2452, %v2444
    %v2829 = vpack.c.b16 %v2453, %v2445
    %v2830 = vpack.c.b16 %v2454, %v2446
    %v2831 = vpack.c.b16 %v2455, %v2447
    %v2832 = vpack.c.b16 %v2456, %v2448
    %v2833 = vpack.c.b16 %v2457, %v2449
    %v2834 = vpack.c.b16 %v2466, %v2458
    %v2835 = vpack.c.b16 %v2467, %v2459
    %v2836 = vpack.c.b16 %v2468, %v2460
    %v2837 = vpack.c.b16 %v2469, %v2461
    %v2838 = vpack.c.b16 %v2470, %v2462
    %v2839 = vpack.c.b16 %v2471, %v2463
    %v2840 = vpack.c.b16 %v2472, %v2464
    %v2841 = vpack.c.b16 %v2473, %v2465
    %v2842 = vpack.c.b16 %v2482, %v2474
    %v2843 = vpack.c.b16 %v2483, %v2475
    %v2844 = vpack.c.b16 %v2484, %v2476
    %v2845 = vpack.c.b16 %v2485, %v2477
    %v2846 = vpack.c.b16 %v2486, %v2478
    %v2847 = vpack.c.b16 %v2487, %v2479
    %v2848 = vpack.c.b16 %v2488, %v2480
    %v2849 = vpack.c.b16 %v2489, %v2481
    %v2850 = vpack.c.b16 %v2498, %v2490
    %v2851 = vpack.c.b16 %v2499, %v2491
    %v2852 = vpack.c.b16 %v2500, %v2492
    %v2853 = vpack.c.b16 %v2501, %v2493
    %v2854 = vpack.c.b16 %v2502, %v2494
    %v2855 = vpack.c.b16 %v2503, %v2495
    %v2856 = vpack.c.b16 %v2504, %v2496
    %v2857 = vpack.c.b16 %v2505, %v2497
    %v2858 = vpack.c.b16 %v2514, %v2506
    %v2859 = vpack.c.b16 %v2515, %v2507
    %v2860 = vpack.c.b16 %v2516, %v2508
    %v2861 = vpack.c.b16 %v2517, %v2509
    %v2862 = vpack.c.b16 %v2518, %v2510
    %v2863 = vpack.c.b16 %v2519, %v2511
    %v2864 = vpack.c.b16 %v2520, %v2512
    %v2865 = vpack.c.b16 %v2521, %v2513
    %v2866 = vpack.c.b16 %v2530, %v2522
    %v2867 = vpack.c.b16 %v2531, %v2523
    %v2868 = vpack.c.b16 %v2532, %v2524
    %v2869 = vpack.c.b16 %v2533, %v2525
    %v2870 = vpack.c.b16 %v2534, %v2526
    %v2871 = vpack.c.b16 %v2535, %v2527
    %v2872 = vpack.c.b16 %v2536, %v2528
    %v2873 = vpack.c.b16 %v2537, %v2529
    %v2874 = vpack.c.b16 %v2546, %v2538
    %v2875 = vpack.c.b16 %v2547, %v2539
    %v2876 = vpack.c.b16 %v2548, %v2540
    %v2877 = vpack.c.b16 %v2549, %v2541
    %v2878 = vpack.c.b16 %v2550, %v2542
    %v2879 = vpack.c.b16 %v2551, %v2543
    %v2880 = vpack.c.b16 %v2552, %v2544
    %v2881 = vpack.c.b16 %v2553, %v2545
    %v2882 = vpack.c.b16 %v2562, %v2554
    %v2883 = vpack.c.b16 %v2563, %v2555
    %v2884 = vpack.c.b16 %v2564, %v2556
    %v2885 = vpack.c.b16 %v2565, %v2557
    %v2886 = vpack.c.b16 %v2566, %v2558
    %v2887 = vpack.c.b16 %v2567, %v2559
    %v2888 = vpack.c.b16 %v2568, %v2560
    %v2889 = vpack.c.b16 %v2569, %v2561
    %v2890 = vpack.c.b16 %v2578, %v2570
    %v2891 = vpack.c.b16 %v2579, %v2571
    %v2892 = vpack.c.b16 %v2580, %v2572
    %v2893 = vpack.c.b16 %v2581, %v2573
    %v2894 = vpack.c.b16 %v2582, %v2574
    %v2895 = vpack.c.b16 %v2583, %v2575
    %v2896 = vpack.c.b16 %v2584, %v2576
    %v2897 = vpack.c.b16 %v2585, %v2577
    %v2898 = vpack.c.b16 %v2594, %v2586
    %v2899 = vpack.c.b16 %v2595, %v2587
    %v2900 = vpack.c.b16 %v2596, %v2588
    %v2901 = vpack.c.b16 %v2597, %v2589
    %v2902 = vpack.c.b16 %v2598, %v2590
    %v2903 = vpack.c.b16 %v2599, %v2591
    %v2904 = vpack.c.b16 %v2600, %v2592
    %v2905 = vpack.c.b16 %v2601, %v2593
    %v2906 = vpack.c.b16 %v2610, %v2602
    %v2907 = vpack.c.b16 %v2611, %v2603
    %v2908 = vpack.c.b16 %v2612, %v2604
    %v2909 = vpack.c.b16 %v2613, %v2605
    %v2910 = vpack.c.b16 %v2614, %v2606
    %v2911 = vpack.c.b16 %v2615, %v2607
    %v2912 = vpack.c.b16 %v2616, %v2608
    %v2913 = vpack.c.b16 %v2617, %v2609
    %v2914 = vpack.c.b16 %v2626, %v2618
    %v2915 = vpack.c.b16 %v2627, %v2619
    %v2916 = vpack.c.b16 %v2628, %v2620
    %v2917 = vpack.c.b16 %v2629, %v2621
    %v2918 = vpack.c.b16 %v2630, %v2622
    %v2919 = vpack.c.b16 %v2631, %v2623
    %v2920 = vpack.c.b16 %v2632, %v2624
    %v2921 = vpack.c.b16 %v2633, %v2625
    %v2922 = vpack.c.b16 %v2642, %v2634
    %v2923 = vpack.c.b16 %v2643, %v2635
    %v2924 = vpack.c.b16 %v2644, %v2636
    %v2925 = vpack.c.b16 %v2645, %v2637
    %v2926 = vpack.c.b16 %v2646, %v2638
    %v2927 = vpack.c.b16 %v2647, %v2639
    %v2928 = vpack.c.b16 %v2648, %v2640
    %v2929 = vpack.c.b16 %v2649, %v2641
    %v2930 = vpack.c.b16 %v2658, %v2650
    %v2931 = vpack.c.b16 %v2659, %v2651
    %v2932 = vpack.c.b16 %v2660, %v2652
    %v2933 = vpack.c.b16 %v2661, %v2653
    %v2934 = vpack.c.b16 %v2662, %v2654
    %v2935 = vpack.c.b16 %v2663, %v2655
    %v2936 = vpack.c.b16 %v2664, %v2656
    %v2937 = vpack.c.b16 %v2665, %v2657
    %v2938 = vpack.c.b16 %v2674, %v2666
    %v2939 = vpack.c.b16 %v2675, %v2667
    %v2940 = vpack.c.b16 %v2676, %v2668
    %v2941 = vpack.c.b16 %v2677, %v2669
    %v2942 = vpack.c.b16 %v2678, %v2670
    %v2943 = vpack.c.b16 %v2679, %v2671
    %v2944 = vpack.c.b16 %v2680, %v2672
    %v2945 = vpack.c.b16 %v2681, %v2673
    %v2946 = vpack.c.b16 %v2690, %v2682
    %v2947 = vpack.c.b16 %v2691, %v2683
    %v2948 = vpack.c.b16 %v2692, %v2684
    %v2949 = vpack.c.b16 %v2693, %v2685
    %v2950 = vpack.c.b16 %v2694, %v2686
    %v2951 = vpack.c.b16 %v2695, %v2687
    %v2952 = vpack.c.b16 %v2696, %v2688
    %v2953 = vpack.c.b16 %v2697, %v2689
    %3210 = vmatprep.subr.bf16.mxu0 %v2699
    %3211 = vmatpush1.bf16.msra.mxu0 %v2698
    %3212 = vmatprep.subr.bf16.mxu0 %v2707
    %3213 = vmatpush1.bf16.msra.mxu0 %v2706
    %3214 = vmatprep.subr.bf16.mxu0 %v2715
    %3215 = vmatpush1.bf16.msra.mxu0 %v2714
    %3216 = vmatprep.subr.bf16.mxu0 %v2723
    %3217 = vmatpush1.bf16.msra.mxu0 %v2722
    %3218 = vmatprep.subr.bf16.mxu0 %v2731
    %3219 = vmatpush1.bf16.msra.mxu0 %v2730
    %3220 = vmatprep.subr.bf16.mxu0 %v2739
    %3221 = vmatpush1.bf16.msra.mxu0 %v2738
    %3222 = vmatprep.subr.bf16.mxu0 %v2747
    %3223 = vmatpush1.bf16.msra.mxu0 %v2746
    %3224 = vmatprep.subr.bf16.mxu0 %v2755
    %3225 = vmatpush1.bf16.msra.mxu0 %v2754
    %3226 = vmatprep.subr.bf16.mxu0 %v2763
    %3227 = vmatpush1.bf16.msra.mxu0 %v2762
    %3228 = vmatprep.subr.bf16.mxu0 %v2771
    %3229 = vmatpush1.bf16.msra.mxu0 %v2770
    %3230 = vmatprep.subr.bf16.mxu0 %v2779
    %3231 = vmatpush1.bf16.msra.mxu0 %v2778
    %3232 = vmatprep.subr.bf16.mxu0 %v2787
    %3233 = vmatpush1.bf16.msra.mxu0 %v2786
    %3234 = vmatprep.subr.bf16.mxu0 %v2795
    %3235 = vmatpush1.bf16.msra.mxu0 %v2794
    %3236 = vmatprep.subr.bf16.mxu0 %v2803
    %3237 = vmatpush1.bf16.msra.mxu0 %v2802
    %3238 = vmatprep.subr.bf16.mxu0 %v2811
    %3239 = vmatpush1.bf16.msra.mxu0 %v2810
    %3240 = vmatprep.subr.bf16.mxu0 %v2819
    %3241 = vmatpush1.bf16.msra.mxu0 %v2818
    %3242 = vmatprep.mubr.bf16.mxu0 %v1629
    %3243 = vmatmul.mubr.bf16.gmra.mrb[0].mxu0 %v1628
    %v3244 = vpop.f32.mrb[0].mxu0
    %v3245 = vadd.f32 %v1893, %v3244
    %v3246 = vpop.f32.mrb[0].mxu0
    %v3247 = vadd.f32 %v1897, %v3246
    %v3248 = vpop.f32.mrb[0].mxu0
    %v3249 = vpop.f32.mrb[0].mxu0
    %3250 = vdwg.mxu0
    %3251 = vmatprep.subr.bf16.mxu0 %v2827
    %3252 = vmatpush1.bf16.msra.mxu0 %v2826
    %3253 = vmatprep.subr.bf16.mxu0 %v2835
    %3254 = vmatpush1.bf16.msra.mxu0 %v2834
    %3255 = vmatprep.subr.bf16.mxu0 %v2843
    %3256 = vmatpush1.bf16.msra.mxu0 %v2842
    %3257 = vmatprep.subr.bf16.mxu0 %v2851
    %3258 = vmatpush1.bf16.msra.mxu0 %v2850
    %3259 = vmatprep.subr.bf16.mxu0 %v2859
    %3260 = vmatpush1.bf16.msra.mxu0 %v2858
    %3261 = vmatprep.subr.bf16.mxu0 %v2867
    %3262 = vmatpush1.bf16.msra.mxu0 %v2866
    %3263 = vmatprep.subr.bf16.mxu0 %v2875
    %3264 = vmatpush1.bf16.msra.mxu0 %v2874
    %3265 = vmatprep.subr.bf16.mxu0 %v2883
    %3266 = vmatpush1.bf16.msra.mxu0 %v2882
    %3267 = vmatprep.subr.bf16.mxu0 %v2891
    %3268 = vmatpush1.bf16.msra.mxu0 %v2890
    %3269 = vmatprep.subr.bf16.mxu0 %v2899
    %3270 = vmatpush1.bf16.msra.mxu0 %v2898
    %3271 = vmatprep.subr.bf16.mxu0 %v2907
    %3272 = vmatpush1.bf16.msra.mxu0 %v2906
    %3273 = vmatprep.subr.bf16.mxu0 %v2915
    %3274 = vmatpush1.bf16.msra.mxu0 %v2914
    %3275 = vmatprep.subr.bf16.mxu0 %v2923
    %3276 = vmatpush1.bf16.msra.mxu0 %v2922
    %3277 = vmatprep.subr.bf16.mxu0 %v2931
    %3278 = vmatpush1.bf16.msra.mxu0 %v2930
    %3279 = vmatprep.subr.bf16.mxu0 %v2939
    %3280 = vmatpush1.bf16.msra.mxu0 %v2938
    %3281 = vmatprep.subr.bf16.mxu0 %v2947
    %3282 = vmatpush1.bf16.msra.mxu0 %v2946
    %3283 = vmatprep.mubr.bf16.mxu0 %v1631
    %3284 = vmatmul.mubr.bf16.gmra.mrb[0].mxu0 %v1630
    %v3285 = vpop.f32.mrb[0].mxu0
    %v3286 = vadd.f32 %v3245, %v3285
    %v3287 = vpop.f32.mrb[0].mxu0
    %v3288 = vadd.f32 %v3247, %v3287
    %v3289 = vpop.f32.mrb[0].mxu0
    %v3290 = vpop.f32.mrb[0].mxu0
    %3291 = vdwg.mxu0
    %3292 = vmatprep.subr.bf16.mxu0 %v2701
    %3293 = vmatpush1.bf16.msra.mxu0 %v2700
    %3294 = vmatprep.subr.bf16.mxu0 %v2709
    %3295 = vmatpush1.bf16.msra.mxu0 %v2708
    %3296 = vmatprep.subr.bf16.mxu0 %v2717
    %3297 = vmatpush1.bf16.msra.mxu0 %v2716
    %3298 = vmatprep.subr.bf16.mxu0 %v2725
    %3299 = vmatpush1.bf16.msra.mxu0 %v2724
    %3300 = vmatprep.subr.bf16.mxu0 %v2733
    %3301 = vmatpush1.bf16.msra.mxu0 %v2732
    %3302 = vmatprep.subr.bf16.mxu0 %v2741
    %3303 = vmatpush1.bf16.msra.mxu0 %v2740
    %3304 = vmatprep.subr.bf16.mxu0 %v2749
    %3305 = vmatpush1.bf16.msra.mxu0 %v2748
    %3306 = vmatprep.subr.bf16.mxu0 %v2757
    %3307 = vmatpush1.bf16.msra.mxu0 %v2756
    %3308 = vmatprep.subr.bf16.mxu0 %v2765
    %3309 = vmatpush1.bf16.msra.mxu0 %v2764
    %3310 = vmatprep.subr.bf16.mxu0 %v2773
    %3311 = vmatpush1.bf16.msra.mxu0 %v2772
    %3312 = vmatprep.subr.bf16.mxu0 %v2781
    %3313 = vmatpush1.bf16.msra.mxu0 %v2780
    %3314 = vmatprep.subr.bf16.mxu0 %v2789
    %3315 = vmatpush1.bf16.msra.mxu0 %v2788
    %3316 = vmatprep.subr.bf16.mxu0 %v2797
    %3317 = vmatpush1.bf16.msra.mxu0 %v2796
    %3318 = vmatprep.subr.bf16.mxu0 %v2805
    %3319 = vmatpush1.bf16.msra.mxu0 %v2804
    %3320 = vmatprep.subr.bf16.mxu0 %v2813
    %3321 = vmatpush1.bf16.msra.mxu0 %v2812
    %3322 = vmatprep.subr.bf16.mxu0 %v2821
    %3323 = vmatpush1.bf16.msra.mxu0 %v2820
    %3324 = vmatprep.mubr.bf16.mxu0 %v1629
    %3325 = vmatmul.mubr.bf16.gmra.mrb[0].mxu0 %v1628
    %v3326 = vpop.f32.mrb[0].mxu0
    %v3327 = vadd.f32 %v1901, %v3326
    %v3328 = vpop.f32.mrb[0].mxu0
    %v3329 = vadd.f32 %v1905, %v3328
    %v3330 = vpop.f32.mrb[0].mxu0
    %v3331 = vpop.f32.mrb[0].mxu0
    %3332 = vdwg.mxu0
    %3333 = vmatprep.subr.bf16.mxu0 %v2829
    %3334 = vmatpush1.bf16.msra.mxu0 %v2828
    %3335 = vmatprep.subr.bf16.mxu0 %v2837
    %3336 = vmatpush1.bf16.msra.mxu0 %v2836
    %3337 = vmatprep.subr.bf16.mxu0 %v2845
    %3338 = vmatpush1.bf16.msra.mxu0 %v2844
    %3339 = vmatprep.subr.bf16.mxu0 %v2853
    %3340 = vmatpush1.bf16.msra.mxu0 %v2852
    %3341 = vmatprep.subr.bf16.mxu0 %v2861
    %3342 = vmatpush1.bf16.msra.mxu0 %v2860
    %3343 = vmatprep.subr.bf16.mxu0 %v2869
    %3344 = vmatpush1.bf16.msra.mxu0 %v2868
    %3345 = vmatprep.subr.bf16.mxu0 %v2877
    %3346 = vmatpush1.bf16.msra.mxu0 %v2876
    %3347 = vmatprep.subr.bf16.mxu0 %v2885
    %3348 = vmatpush1.bf16.msra.mxu0 %v2884
    %3349 = vmatprep.subr.bf16.mxu0 %v2893
    %3350 = vmatpush1.bf16.msra.mxu0 %v2892
    %3351 = vmatprep.subr.bf16.mxu0 %v2901
    %3352 = vmatpush1.bf16.msra.mxu0 %v2900
    %3353 = vmatprep.subr.bf16.mxu0 %v2909
    %3354 = vmatpush1.bf16.msra.mxu0 %v2908
    %3355 = vmatprep.subr.bf16.mxu0 %v2917
    %3356 = vmatpush1.bf16.msra.mxu0 %v2916
    %3357 = vmatprep.subr.bf16.mxu0 %v2925
    %3358 = vmatpush1.bf16.msra.mxu0 %v2924
    %3359 = vmatprep.subr.bf16.mxu0 %v2933
    %3360 = vmatpush1.bf16.msra.mxu0 %v2932
    %3361 = vmatprep.subr.bf16.mxu0 %v2941
    %3362 = vmatpush1.bf16.msra.mxu0 %v2940
    %3363 = vmatprep.subr.bf16.mxu0 %v2949
    %3364 = vmatpush1.bf16.msra.mxu0 %v2948
    %3365 = vmatprep.mubr.bf16.mxu0 %v1631
    %3366 = vmatmul.mubr.bf16.gmra.mrb[0].mxu0 %v1630
    %v3367 = vpop.f32.mrb[0].mxu0
    %v3368 = vadd.f32 %v3327, %v3367
    %v3369 = vpop.f32.mrb[0].mxu0
    %v3370 = vadd.f32 %v3329, %v3369
    %v3371 = vpop.f32.mrb[0].mxu0
    %v3372 = vpop.f32.mrb[0].mxu0
    %3373 = vdwg.mxu0
    %3374 = vmatprep.subr.bf16.mxu0 %v2703
    %3375 = vmatpush1.bf16.msra.mxu0 %v2702
    %3376 = vmatprep.subr.bf16.mxu0 %v2711
    %3377 = vmatpush1.bf16.msra.mxu0 %v2710
    %3378 = vmatprep.subr.bf16.mxu0 %v2719
    %3379 = vmatpush1.bf16.msra.mxu0 %v2718
    %3380 = vmatprep.subr.bf16.mxu0 %v2727
    %3381 = vmatpush1.bf16.msra.mxu0 %v2726
    %3382 = vmatprep.subr.bf16.mxu0 %v2735
    %3383 = vmatpush1.bf16.msra.mxu0 %v2734
    %3384 = vmatprep.subr.bf16.mxu0 %v2743
    %3385 = vmatpush1.bf16.msra.mxu0 %v2742
    %3386 = vmatprep.subr.bf16.mxu0 %v2751
    %3387 = vmatpush1.bf16.msra.mxu0 %v2750
    %3388 = vmatprep.subr.bf16.mxu0 %v2759
    %3389 = vmatpush1.bf16.msra.mxu0 %v2758
    %3390 = vmatprep.subr.bf16.mxu0 %v2767
    %3391 = vmatpush1.bf16.msra.mxu0 %v2766
    %3392 = vmatprep.subr.bf16.mxu0 %v2775
    %3393 = vmatpush1.bf16.msra.mxu0 %v2774
    %3394 = vmatprep.subr.bf16.mxu0 %v2783
    %3395 = vmatpush1.bf16.msra.mxu0 %v2782
    %3396 = vmatprep.subr.bf16.mxu0 %v2791
    %3397 = vmatpush1.bf16.msra.mxu0 %v2790
    %3398 = vmatprep.subr.bf16.mxu0 %v2799
    %3399 = vmatpush1.bf16.msra.mxu0 %v2798
    %3400 = vmatprep.subr.bf16.mxu0 %v2807
    %3401 = vmatpush1.bf16.msra.mxu0 %v2806
    %3402 = vmatprep.subr.bf16.mxu0 %v2815
    %3403 = vmatpush1.bf16.msra.mxu0 %v2814
    %3404 = vmatprep.subr.bf16.mxu0 %v2823
    %3405 = vmatpush1.bf16.msra.mxu0 %v2822
    %3406 = vmatprep.mubr.bf16.mxu0 %v1629
    %3407 = vmatmul.mubr.bf16.gmra.mrb[0].mxu0 %v1628
    %v3408 = vpop.f32.mrb[0].mxu0
    %v3409 = vadd.f32 %v1909, %v3408
    %v3410 = vpop.f32.mrb[0].mxu0
    %v3411 = vadd.f32 %v1913, %v3410
    %v3412 = vpop.f32.mrb[0].mxu0
    %v3413 = vpop.f32.mrb[0].mxu0
    %3414 = vdwg.mxu0
    %3415 = vmatprep.subr.bf16.mxu0 %v2831
    %3416 = vmatpush1.bf16.msra.mxu0 %v2830
    %3417 = vmatprep.subr.bf16.mxu0 %v2839
    %3418 = vmatpush1.bf16.msra.mxu0 %v2838
    %3419 = vmatprep.subr.bf16.mxu0 %v2847
    %3420 = vmatpush1.bf16.msra.mxu0 %v2846
    %3421 = vmatprep.subr.bf16.mxu0 %v2855
    %3422 = vmatpush1.bf16.msra.mxu0 %v2854
    %3423 = vmatprep.subr.bf16.mxu0 %v2863
    %3424 = vmatpush1.bf16.msra.mxu0 %v2862
    %3425 = vmatprep.subr.bf16.mxu0 %v2871
    %3426 = vmatpush1.bf16.msra.mxu0 %v2870
    %3427 = vmatprep.subr.bf16.mxu0 %v2879
    %3428 = vmatpush1.bf16.msra.mxu0 %v2878
    %3429 = vmatprep.subr.bf16.mxu0 %v2887
    %3430 = vmatpush1.bf16.msra.mxu0 %v2886
    %3431 = vmatprep.subr.bf16.mxu0 %v2895
    %3432 = vmatpush1.bf16.msra.mxu0 %v2894
    %3433 = vmatprep.subr.bf16.mxu0 %v2903
    %3434 = vmatpush1.bf16.msra.mxu0 %v2902
    %3435 = vmatprep.subr.bf16.mxu0 %v2911
    %3436 = vmatpush1.bf16.msra.mxu0 %v2910
    %3437 = vmatprep.subr.bf16.mxu0 %v2919
    %3438 = vmatpush1.bf16.msra.mxu0 %v2918
    %3439 = vmatprep.subr.bf16.mxu0 %v2927
    %3440 = vmatpush1.bf16.msra.mxu0 %v2926
    %3441 = vmatprep.subr.bf16.mxu0 %v2935
    %3442 = vmatpush1.bf16.msra.mxu0 %v2934
    %3443 = vmatprep.subr.bf16.mxu0 %v2943
    %3444 = vmatpush1.bf16.msra.mxu0 %v2942
    %3445 = vmatprep.subr.bf16.mxu0 %v2951
    %3446 = vmatpush1.bf16.msra.mxu0 %v2950
    %3447 = vmatprep.mubr.bf16.mxu0 %v1631
    %3448 = vmatmul.mubr.bf16.gmra.mrb[0].mxu0 %v1630
    %v3449 = vpop.f32.mrb[0].mxu0
    %v3450 = vadd.f32 %v3409, %v3449
    %v3451 = vpop.f32.mrb[0].mxu0
    %v3452 = vadd.f32 %v3411, %v3451
    %v3453 = vpop.f32.mrb[0].mxu0
    %v3454 = vpop.f32.mrb[0].mxu0
    %3455 = vdwg.mxu0
    %3456 = vmatprep.subr.bf16.mxu0 %v2705
    %3457 = vmatpush1.bf16.msra.mxu0 %v2704
    %3458 = vmatprep.subr.bf16.mxu0 %v2713
    %3459 = vmatpush1.bf16.msra.mxu0 %v2712
    %3460 = vmatprep.subr.bf16.mxu0 %v2721
    %3461 = vmatpush1.bf16.msra.mxu0 %v2720
    %3462 = vmatprep.subr.bf16.mxu0 %v2729
    %3463 = vmatpush1.bf16.msra.mxu0 %v2728
    %3464 = vmatprep.subr.bf16.mxu0 %v2737
    %3465 = vmatpush1.bf16.msra.mxu0 %v2736
    %3466 = vmatprep.subr.bf16.mxu0 %v2745
    %3467 = vmatpush1.bf16.msra.mxu0 %v2744
    %3468 = vmatprep.subr.bf16.mxu0 %v2753
    %3469 = vmatpush1.bf16.msra.mxu0 %v2752
    %3470 = vmatprep.subr.bf16.mxu0 %v2761
    %3471 = vmatpush1.bf16.msra.mxu0 %v2760
    %3472 = vmatprep.subr.bf16.mxu0 %v2769
    %3473 = vmatpush1.bf16.msra.mxu0 %v2768
    %3474 = vmatprep.subr.bf16.mxu0 %v2777
    %3475 = vmatpush1.bf16.msra.mxu0 %v2776
    %3476 = vmatprep.subr.bf16.mxu0 %v2785
    %3477 = vmatpush1.bf16.msra.mxu0 %v2784
    %3478 = vmatprep.subr.bf16.mxu0 %v2793
    %3479 = vmatpush1.bf16.msra.mxu0 %v2792
    %3480 = vmatprep.subr.bf16.mxu0 %v2801
    %3481 = vmatpush1.bf16.msra.mxu0 %v2800
    %3482 = vmatprep.subr.bf16.mxu0 %v2809
    %3483 = vmatpush1.bf16.msra.mxu0 %v2808
    %3484 = vmatprep.subr.bf16.mxu0 %v2817
    %3485 = vmatpush1.bf16.msra.mxu0 %v2816
    %3486 = vmatprep.subr.bf16.mxu0 %v2825
    %3487 = vmatpush1.bf16.msra.mxu0 %v2824
    %3488 = vmatprep.mubr.bf16.mxu0 %v1629
    %3489 = vmatmul.mubr.bf16.gmra.mrb[0].mxu0 %v1628
    %v3490 = vpop.f32.mrb[0].mxu0
    %v3491 = vadd.f32 %v1917, %v3490
    %v3492 = vpop.f32.mrb[0].mxu0
    %v3493 = vadd.f32 %v1921, %v3492
    %v3494 = vpop.f32.mrb[0].mxu0
    %v3495 = vpop.f32.mrb[0].mxu0
    %3496 = vdwg.mxu0
    %3497 = vmatprep.subr.bf16.mxu0 %v2833
    %3498 = vmatpush1.bf16.msra.mxu0 %v2832
    %3499 = vmatprep.subr.bf16.mxu0 %v2841
    %3500 = vmatpush1.bf16.msra.mxu0 %v2840
    %3501 = vmatprep.subr.bf16.mxu0 %v2849
    %3502 = vmatpush1.bf16.msra.mxu0 %v2848
    %3503 = vmatprep.subr.bf16.mxu0 %v2857
    %3504 = vmatpush1.bf16.msra.mxu0 %v2856
    %3505 = vmatprep.subr.bf16.mxu0 %v2865
    %3506 = vmatpush1.bf16.msra.mxu0 %v2864
    %3507 = vmatprep.subr.bf16.mxu0 %v2873
    %3508 = vmatpush1.bf16.msra.mxu0 %v2872
    %3509 = vmatprep.subr.bf16.mxu0 %v2881
    %3510 = vmatpush1.bf16.msra.mxu0 %v2880
    %3511 = vmatprep.subr.bf16.mxu0 %v2889
    %3512 = vmatpush1.bf16.msra.mxu0 %v2888
    %3513 = vmatprep.subr.bf16.mxu0 %v2897
    %3514 = vmatpush1.bf16.msra.mxu0 %v2896
    %3515 = vmatprep.subr.bf16.mxu0 %v2905
    %3516 = vmatpush1.bf16.msra.mxu0 %v2904
    %3517 = vmatprep.subr.bf16.mxu0 %v2913
    %3518 = vmatpush1.bf16.msra.mxu0 %v2912
    %3519 = vmatprep.subr.bf16.mxu0 %v2921
    %3520 = vmatpush1.bf16.msra.mxu0 %v2920
    %3521 = vmatprep.subr.bf16.mxu0 %v2929
    %3522 = vmatpush1.bf16.msra.mxu0 %v2928
    %3523 = vmatprep.subr.bf16.mxu0 %v2937
    %3524 = vmatpush1.bf16.msra.mxu0 %v2936
    %3525 = vmatprep.subr.bf16.mxu0 %v2945
    %3526 = vmatpush1.bf16.msra.mxu0 %v2944
    %3527 = vmatprep.subr.bf16.mxu0 %v2953
    %3528 = vmatpush1.bf16.msra.mxu0 %v2952
    %3529 = vmatprep.mubr.bf16.mxu0 %v1631
    %3530 = vmatmul.mubr.bf16.gmra.mrb[0].mxu0 %v1630
    %v3531 = vpop.f32.mrb[0].mxu0
    %v3532 = vadd.f32 %v3491, %v3531
    %v3533 = vpop.f32.mrb[0].mxu0
    %v3534 = vadd.f32 %v3493, %v3533
    %v3535 = vpop.f32.mrb[0].mxu0
    %v3536 = vpop.f32.mrb[0].mxu0
    %3537 = vdwg.mxu0
    %v3538 = vmax.f32 %v3286, 0.0
    %v3539 = vmax.f32 %v3288, 0.0
    %v3540 = vmax.f32 %v3368, 0.0
    %v3541 = vmax.f32 %v3370, 0.0
    %v3542 = vmax.f32 %v3450, 0.0
    %v3543 = vmax.f32 %v3452, 0.0
    %v3544 = vmax.f32 %v3532, 0.0
    %v3545 = vmax.f32 %v3534, 0.0
    %v3546 = vpack.c.bf16 %v3538, %v3538
    %v3547 = vpack.c.bf16 %v3539, %v3539
    %v3548 = vpack.c.bf16 %v3540, %v3540
    %v3549 = vpack.c.bf16 %v3541, %v3541
    %v3550 = vpack.c.bf16 %v3542, %v3542
    %v3551 = vpack.c.bf16 %v3543, %v3543
    %v3552 = vpack.c.bf16 %v3544, %v3544
    %v3553 = vpack.c.bf16 %v3545, %v3545
    %v3554 = vld [vmem:[#allocation6] sm:$0xff]
    %v3555 = vld [vmem:[#allocation6 + $0x8] sm:$0xff]
    %v3556 = vld [vmem:[#allocation6 + $0x10] sm:$0xff]
    %v3557 = vld [vmem:[#allocation6 + $0x18] sm:$0xff]
    %v3558 = vld [vmem:[#allocation6 + $0x20] sm:$0xff]
    %v3559 = vld [vmem:[#allocation6 + $0x28] sm:$0xff]
    %v3560 = vld [vmem:[#allocation6 + $0x30] sm:$0xff]
    %v3561 = vld [vmem:[#allocation6 + $0x38] sm:$0xff]
    %v3562 = vld [vmem:[#allocation6 + $0x40] sm:$0xff]
    %v3563 = vld [vmem:[#allocation6 + $0x48] sm:$0xff]
    %v3564 = vld [vmem:[#allocation6 + $0x50] sm:$0xff]
    %v3565 = vld [vmem:[#allocation6 + $0x58] sm:$0xff]
    %v3566 = vld [vmem:[#allocation6 + $0x60] sm:$0xff]
    %v3567 = vld [vmem:[#allocation6 + $0x68] sm:$0xff]
    %v3568 = vld [vmem:[#allocation6 + $0x70] sm:$0xff]
    %v3569 = vld [vmem:[#allocation6 + $0x78] sm:$0xff]
    %v3570 = vld [vmem:[#allocation6 + $0x80] sm:$0xff]
    %v3571 = vld [vmem:[#allocation6 + $0x88] sm:$0xff]
    %v3572 = vld [vmem:[#allocation6 + $0x90] sm:$0xff]
    %v3573 = vld [vmem:[#allocation6 + $0x98] sm:$0xff]
    %v3574 = vld [vmem:[#allocation6 + $0xa0] sm:$0xff]
    %v3575 = vld [vmem:[#allocation6 + $0xa8] sm:$0xff]
    %v3576 = vld [vmem:[#allocation6 + $0xb0] sm:$0xff]
    %v3577 = vld [vmem:[#allocation6 + $0xb8] sm:$0xff]
    %v3578 = vld [vmem:[#allocation6 + $0xc0] sm:$0xff]
    %v3579 = vld [vmem:[#allocation6 + $0xc8] sm:$0xff]
    %v3580 = vld [vmem:[#allocation6 + $0xd0] sm:$0xff]
    %v3581 = vld [vmem:[#allocation6 + $0xd8] sm:$0xff]
    %v3582 = vld [vmem:[#allocation6 + $0xe0] sm:$0xff]
    %v3583 = vld [vmem:[#allocation6 + $0xe8] sm:$0xff]
    %v3584 = vld [vmem:[#allocation6 + $0xf0] sm:$0xff]
    %v3585 = vld [vmem:[#allocation6 + $0xf8] sm:$0xff]
    %v3586 = vld [vmem:[#allocation6 + $0x100] sm:$0xff]
    %v3587 = vld [vmem:[#allocation6 + $0x108] sm:$0xff]
    %v3588 = vld [vmem:[#allocation6 + $0x110] sm:$0xff]
    %v3589 = vld [vmem:[#allocation6 + $0x118] sm:$0xff]
    %v3590 = vld [vmem:[#allocation6 + $0x120] sm:$0xff]
    %v3591 = vld [vmem:[#allocation6 + $0x128] sm:$0xff]
    %v3592 = vld [vmem:[#allocation6 + $0x130] sm:$0xff]
    %v3593 = vld [vmem:[#allocation6 + $0x138] sm:$0xff]
    %v3594 = vld [vmem:[#allocation6 + $0x140] sm:$0xff]
    %v3595 = vld [vmem:[#allocation6 + $0x148] sm:$0xff]
    %v3596 = vld [vmem:[#allocation6 + $0x150] sm:$0xff]
    %v3597 = vld [vmem:[#allocation6 + $0x158] sm:$0xff]
    %v3598 = vld [vmem:[#allocation6 + $0x160] sm:$0xff]
    %v3599 = vld [vmem:[#allocation6 + $0x168] sm:$0xff]
    %v3600 = vld [vmem:[#allocation6 + $0x170] sm:$0xff]
    %v3601 = vld [vmem:[#allocation6 + $0x178] sm:$0xff]
    %v3602 = vld [vmem:[#allocation6 + $0x180] sm:$0xff]
    %v3603 = vld [vmem:[#allocation6 + $0x188] sm:$0xff]
    %v3604 = vld [vmem:[#allocation6 + $0x190] sm:$0xff]
    %v3605 = vld [vmem:[#allocation6 + $0x198] sm:$0xff]
    %v3606 = vld [vmem:[#allocation6 + $0x1a0] sm:$0xff]
    %v3607 = vld [vmem:[#allocation6 + $0x1a8] sm:$0xff]
    %v3608 = vld [vmem:[#allocation6 + $0x1b0] sm:$0xff]
    %v3609 = vld [vmem:[#allocation6 + $0x1b8] sm:$0xff]
    %v3610 = vld [vmem:[#allocation6 + $0x1c0] sm:$0xff]
    %v3611 = vld [vmem:[#allocation6 + $0x1c8] sm:$0xff]
    %v3612 = vld [vmem:[#allocation6 + $0x1d0] sm:$0xff]
    %v3613 = vld [vmem:[#allocation6 + $0x1d8] sm:$0xff]
    %v3614 = vld [vmem:[#allocation6 + $0x1e0] sm:$0xff]
    %v3615 = vld [vmem:[#allocation6 + $0x1e8] sm:$0xff]
    %v3616 = vld [vmem:[#allocation6 + $0x1f0] sm:$0xff]
    %v3617 = vld [vmem:[#allocation6 + $0x1f8] sm:$0xff]
    %v3618 = vld [vmem:[#allocation6 + $0x200] sm:$0xff]
    %v3619 = vld [vmem:[#allocation6 + $0x208] sm:$0xff]
    %v3620 = vld [vmem:[#allocation6 + $0x210] sm:$0xff]
    %v3621 = vld [vmem:[#allocation6 + $0x218] sm:$0xff]
    %v3622 = vld [vmem:[#allocation6 + $0x220] sm:$0xff]
    %v3623 = vld [vmem:[#allocation6 + $0x228] sm:$0xff]
    %v3624 = vld [vmem:[#allocation6 + $0x230] sm:$0xff]
    %v3625 = vld [vmem:[#allocation6 + $0x238] sm:$0xff]
    %v3626 = vld [vmem:[#allocation6 + $0x240] sm:$0xff]
    %v3627 = vld [vmem:[#allocation6 + $0x248] sm:$0xff]
    %v3628 = vld [vmem:[#allocation6 + $0x250] sm:$0xff]
    %v3629 = vld [vmem:[#allocation6 + $0x258] sm:$0xff]
    %v3630 = vld [vmem:[#allocation6 + $0x260] sm:$0xff]
    %v3631 = vld [vmem:[#allocation6 + $0x268] sm:$0xff]
    %v3632 = vld [vmem:[#allocation6 + $0x270] sm:$0xff]
    %v3633 = vld [vmem:[#allocation6 + $0x278] sm:$0xff]
    %v3634 = vld [vmem:[#allocation6 + $0x280] sm:$0xff]
    %v3635 = vld [vmem:[#allocation6 + $0x288] sm:$0xff]
    %v3636 = vld [vmem:[#allocation6 + $0x290] sm:$0xff]
    %v3637 = vld [vmem:[#allocation6 + $0x298] sm:$0xff]
    %v3638 = vld [vmem:[#allocation6 + $0x2a0] sm:$0xff]
    %v3639 = vld [vmem:[#allocation6 + $0x2a8] sm:$0xff]
    %v3640 = vld [vmem:[#allocation6 + $0x2b0] sm:$0xff]
    %v3641 = vld [vmem:[#allocation6 + $0x2b8] sm:$0xff]
    %v3642 = vld [vmem:[#allocation6 + $0x2c0] sm:$0xff]
    %v3643 = vld [vmem:[#allocation6 + $0x2c8] sm:$0xff]
    %v3644 = vld [vmem:[#allocation6 + $0x2d0] sm:$0xff]
    %v3645 = vld [vmem:[#allocation6 + $0x2d8] sm:$0xff]
    %v3646 = vld [vmem:[#allocation6 + $0x2e0] sm:$0xff]
    %v3647 = vld [vmem:[#allocation6 + $0x2e8] sm:$0xff]
    %v3648 = vld [vmem:[#allocation6 + $0x2f0] sm:$0xff]
    %v3649 = vld [vmem:[#allocation6 + $0x2f8] sm:$0xff]
    %v3650 = vld [vmem:[#allocation6 + $0x300] sm:$0xff]
    %v3651 = vld [vmem:[#allocation6 + $0x308] sm:$0xff]
    %v3652 = vld [vmem:[#allocation6 + $0x310] sm:$0xff]
    %v3653 = vld [vmem:[#allocation6 + $0x318] sm:$0xff]
    %v3654 = vld [vmem:[#allocation6 + $0x320] sm:$0xff]
    %v3655 = vld [vmem:[#allocation6 + $0x328] sm:$0xff]
    %v3656 = vld [vmem:[#allocation6 + $0x330] sm:$0xff]
    %v3657 = vld [vmem:[#allocation6 + $0x338] sm:$0xff]
    %v3658 = vld [vmem:[#allocation6 + $0x340] sm:$0xff]
    %v3659 = vld [vmem:[#allocation6 + $0x348] sm:$0xff]
    %v3660 = vld [vmem:[#allocation6 + $0x350] sm:$0xff]
    %v3661 = vld [vmem:[#allocation6 + $0x358] sm:$0xff]
    %v3662 = vld [vmem:[#allocation6 + $0x360] sm:$0xff]
    %v3663 = vld [vmem:[#allocation6 + $0x368] sm:$0xff]
    %v3664 = vld [vmem:[#allocation6 + $0x370] sm:$0xff]
    %v3665 = vld [vmem:[#allocation6 + $0x378] sm:$0xff]
    %v3666 = vld [vmem:[#allocation6 + $0x380] sm:$0xff]
    %v3667 = vld [vmem:[#allocation6 + $0x388] sm:$0xff]
    %v3668 = vld [vmem:[#allocation6 + $0x390] sm:$0xff]
    %v3669 = vld [vmem:[#allocation6 + $0x398] sm:$0xff]
    %v3670 = vld [vmem:[#allocation6 + $0x3a0] sm:$0xff]
    %v3671 = vld [vmem:[#allocation6 + $0x3a8] sm:$0xff]
    %v3672 = vld [vmem:[#allocation6 + $0x3b0] sm:$0xff]
    %v3673 = vld [vmem:[#allocation6 + $0x3b8] sm:$0xff]
    %v3674 = vld [vmem:[#allocation6 + $0x3c0] sm:$0xff]
    %v3675 = vld [vmem:[#allocation6 + $0x3c8] sm:$0xff]
    %v3676 = vld [vmem:[#allocation6 + $0x3d0] sm:$0xff]
    %v3677 = vld [vmem:[#allocation6 + $0x3d8] sm:$0xff]
    %v3678 = vld [vmem:[#allocation6 + $0x3e0] sm:$0xff]
    %v3679 = vld [vmem:[#allocation6 + $0x3e8] sm:$0xff]
    %v3680 = vld [vmem:[#allocation6 + $0x3f0] sm:$0xff]
    %v3681 = vld [vmem:[#allocation6 + $0x3f8] sm:$0xff]
    %v3682 = vld [vmem:[#allocation6 + $0x400] sm:$0xff]
    %v3683 = vld [vmem:[#allocation6 + $0x408] sm:$0xff]
    %v3684 = vld [vmem:[#allocation6 + $0x410] sm:$0xff]
    %v3685 = vld [vmem:[#allocation6 + $0x418] sm:$0xff]
    %v3686 = vld [vmem:[#allocation6 + $0x420] sm:$0xff]
    %v3687 = vld [vmem:[#allocation6 + $0x428] sm:$0xff]
    %v3688 = vld [vmem:[#allocation6 + $0x430] sm:$0xff]
    %v3689 = vld [vmem:[#allocation6 + $0x438] sm:$0xff]
    %v3690 = vld [vmem:[#allocation6 + $0x440] sm:$0xff]
    %v3691 = vld [vmem:[#allocation6 + $0x448] sm:$0xff]
    %v3692 = vld [vmem:[#allocation6 + $0x450] sm:$0xff]
    %v3693 = vld [vmem:[#allocation6 + $0x458] sm:$0xff]
    %v3694 = vld [vmem:[#allocation6 + $0x460] sm:$0xff]
    %v3695 = vld [vmem:[#allocation6 + $0x468] sm:$0xff]
    %v3696 = vld [vmem:[#allocation6 + $0x470] sm:$0xff]
    %v3697 = vld [vmem:[#allocation6 + $0x478] sm:$0xff]
    %v3698 = vld [vmem:[#allocation6 + $0x480] sm:$0xff]
    %v3699 = vld [vmem:[#allocation6 + $0x488] sm:$0xff]
    %v3700 = vld [vmem:[#allocation6 + $0x490] sm:$0xff]
    %v3701 = vld [vmem:[#allocation6 + $0x498] sm:$0xff]
    %v3702 = vld [vmem:[#allocation6 + $0x4a0] sm:$0xff]
    %v3703 = vld [vmem:[#allocation6 + $0x4a8] sm:$0xff]
    %v3704 = vld [vmem:[#allocation6 + $0x4b0] sm:$0xff]
    %v3705 = vld [vmem:[#allocation6 + $0x4b8] sm:$0xff]
    %v3706 = vld [vmem:[#allocation6 + $0x4c0] sm:$0xff]
    %v3707 = vld [vmem:[#allocation6 + $0x4c8] sm:$0xff]
    %v3708 = vld [vmem:[#allocation6 + $0x4d0] sm:$0xff]
    %v3709 = vld [vmem:[#allocation6 + $0x4d8] sm:$0xff]
    %v3710 = vld [vmem:[#allocation6 + $0x4e0] sm:$0xff]
    %v3711 = vld [vmem:[#allocation6 + $0x4e8] sm:$0xff]
    %v3712 = vld [vmem:[#allocation6 + $0x4f0] sm:$0xff]
    %v3713 = vld [vmem:[#allocation6 + $0x4f8] sm:$0xff]
    %v3714 = vld [vmem:[#allocation6 + $0x500] sm:$0xff]
    %v3715 = vld [vmem:[#allocation6 + $0x508] sm:$0xff]
    %v3716 = vld [vmem:[#allocation6 + $0x510] sm:$0xff]
    %v3717 = vld [vmem:[#allocation6 + $0x518] sm:$0xff]
    %v3718 = vld [vmem:[#allocation6 + $0x520] sm:$0xff]
    %v3719 = vld [vmem:[#allocation6 + $0x528] sm:$0xff]
    %v3720 = vld [vmem:[#allocation6 + $0x530] sm:$0xff]
    %v3721 = vld [vmem:[#allocation6 + $0x538] sm:$0xff]
    %v3722 = vld [vmem:[#allocation6 + $0x540] sm:$0xff]
    %v3723 = vld [vmem:[#allocation6 + $0x548] sm:$0xff]
    %v3724 = vld [vmem:[#allocation6 + $0x550] sm:$0xff]
    %v3725 = vld [vmem:[#allocation6 + $0x558] sm:$0xff]
    %v3726 = vld [vmem:[#allocation6 + $0x560] sm:$0xff]
    %v3727 = vld [vmem:[#allocation6 + $0x568] sm:$0xff]
    %v3728 = vld [vmem:[#allocation6 + $0x570] sm:$0xff]
    %v3729 = vld [vmem:[#allocation6 + $0x578] sm:$0xff]
    %v3730 = vld [vmem:[#allocation6 + $0x580] sm:$0xff]
    %v3731 = vld [vmem:[#allocation6 + $0x588] sm:$0xff]
    %v3732 = vld [vmem:[#allocation6 + $0x590] sm:$0xff]
    %v3733 = vld [vmem:[#allocation6 + $0x598] sm:$0xff]
    %v3734 = vld [vmem:[#allocation6 + $0x5a0] sm:$0xff]
    %v3735 = vld [vmem:[#allocation6 + $0x5a8] sm:$0xff]
    %v3736 = vld [vmem:[#allocation6 + $0x5b0] sm:$0xff]
    %v3737 = vld [vmem:[#allocation6 + $0x5b8] sm:$0xff]
    %v3738 = vld [vmem:[#allocation6 + $0x5c0] sm:$0xff]
    %v3739 = vld [vmem:[#allocation6 + $0x5c8] sm:$0xff]
    %v3740 = vld [vmem:[#allocation6 + $0x5d0] sm:$0xff]
    %v3741 = vld [vmem:[#allocation6 + $0x5d8] sm:$0xff]
    %v3742 = vld [vmem:[#allocation6 + $0x5e0] sm:$0xff]
    %v3743 = vld [vmem:[#allocation6 + $0x5e8] sm:$0xff]
    %v3744 = vld [vmem:[#allocation6 + $0x5f0] sm:$0xff]
    %v3745 = vld [vmem:[#allocation6 + $0x5f8] sm:$0xff]
    %v3746 = vld [vmem:[#allocation6 + $0x600] sm:$0xff]
    %v3747 = vld [vmem:[#allocation6 + $0x608] sm:$0xff]
    %v3748 = vld [vmem:[#allocation6 + $0x610] sm:$0xff]
    %v3749 = vld [vmem:[#allocation6 + $0x618] sm:$0xff]
    %v3750 = vld [vmem:[#allocation6 + $0x620] sm:$0xff]
    %v3751 = vld [vmem:[#allocation6 + $0x628] sm:$0xff]
    %v3752 = vld [vmem:[#allocation6 + $0x630] sm:$0xff]
    %v3753 = vld [vmem:[#allocation6 + $0x638] sm:$0xff]
    %v3754 = vld [vmem:[#allocation6 + $0x640] sm:$0xff]
    %v3755 = vld [vmem:[#allocation6 + $0x648] sm:$0xff]
    %v3756 = vld [vmem:[#allocation6 + $0x650] sm:$0xff]
    %v3757 = vld [vmem:[#allocation6 + $0x658] sm:$0xff]
    %v3758 = vld [vmem:[#allocation6 + $0x660] sm:$0xff]
    %v3759 = vld [vmem:[#allocation6 + $0x668] sm:$0xff]
    %v3760 = vld [vmem:[#allocation6 + $0x670] sm:$0xff]
    %v3761 = vld [vmem:[#allocation6 + $0x678] sm:$0xff]
    %v3762 = vld [vmem:[#allocation6 + $0x680] sm:$0xff]
    %v3763 = vld [vmem:[#allocation6 + $0x688] sm:$0xff]
    %v3764 = vld [vmem:[#allocation6 + $0x690] sm:$0xff]
    %v3765 = vld [vmem:[#allocation6 + $0x698] sm:$0xff]
    %v3766 = vld [vmem:[#allocation6 + $0x6a0] sm:$0xff]
    %v3767 = vld [vmem:[#allocation6 + $0x6a8] sm:$0xff]
    %v3768 = vld [vmem:[#allocation6 + $0x6b0] sm:$0xff]
    %v3769 = vld [vmem:[#allocation6 + $0x6b8] sm:$0xff]
    %v3770 = vld [vmem:[#allocation6 + $0x6c0] sm:$0xff]
    %v3771 = vld [vmem:[#allocation6 + $0x6c8] sm:$0xff]
    %v3772 = vld [vmem:[#allocation6 + $0x6d0] sm:$0xff]
    %v3773 = vld [vmem:[#allocation6 + $0x6d8] sm:$0xff]
    %v3774 = vld [vmem:[#allocation6 + $0x6e0] sm:$0xff]
    %v3775 = vld [vmem:[#allocation6 + $0x6e8] sm:$0xff]
    %v3776 = vld [vmem:[#allocation6 + $0x6f0] sm:$0xff]
    %v3777 = vld [vmem:[#allocation6 + $0x6f8] sm:$0xff]
    %v3778 = vld [vmem:[#allocation6 + $0x700] sm:$0xff]
    %v3779 = vld [vmem:[#allocation6 + $0x708] sm:$0xff]
    %v3780 = vld [vmem:[#allocation6 + $0x710] sm:$0xff]
    %v3781 = vld [vmem:[#allocation6 + $0x718] sm:$0xff]
    %v3782 = vld [vmem:[#allocation6 + $0x720] sm:$0xff]
    %v3783 = vld [vmem:[#allocation6 + $0x728] sm:$0xff]
    %v3784 = vld [vmem:[#allocation6 + $0x730] sm:$0xff]
    %v3785 = vld [vmem:[#allocation6 + $0x738] sm:$0xff]
    %v3786 = vld [vmem:[#allocation6 + $0x740] sm:$0xff]
    %v3787 = vld [vmem:[#allocation6 + $0x748] sm:$0xff]
    %v3788 = vld [vmem:[#allocation6 + $0x750] sm:$0xff]
    %v3789 = vld [vmem:[#allocation6 + $0x758] sm:$0xff]
    %v3790 = vld [vmem:[#allocation6 + $0x760] sm:$0xff]
    %v3791 = vld [vmem:[#allocation6 + $0x768] sm:$0xff]
    %v3792 = vld [vmem:[#allocation6 + $0x770] sm:$0xff]
    %v3793 = vld [vmem:[#allocation6 + $0x778] sm:$0xff]
    %v3794 = vld [vmem:[#allocation6 + $0x780] sm:$0xff]
    %v3795 = vld [vmem:[#allocation6 + $0x788] sm:$0xff]
    %v3796 = vld [vmem:[#allocation6 + $0x790] sm:$0xff]
    %v3797 = vld [vmem:[#allocation6 + $0x798] sm:$0xff]
    %v3798 = vld [vmem:[#allocation6 + $0x7a0] sm:$0xff]
    %v3799 = vld [vmem:[#allocation6 + $0x7a8] sm:$0xff]
    %v3800 = vld [vmem:[#allocation6 + $0x7b0] sm:$0xff]
    %v3801 = vld [vmem:[#allocation6 + $0x7b8] sm:$0xff]
    %v3802 = vld [vmem:[#allocation6 + $0x7c0] sm:$0xff]
    %v3803 = vld [vmem:[#allocation6 + $0x7c8] sm:$0xff]
    %v3804 = vld [vmem:[#allocation6 + $0x7d0] sm:$0xff]
    %v3805 = vld [vmem:[#allocation6 + $0x7d8] sm:$0xff]
    %v3806 = vld [vmem:[#allocation6 + $0x7e0] sm:$0xff]
    %v3807 = vld [vmem:[#allocation6 + $0x7e8] sm:$0xff]
    %v3808 = vld [vmem:[#allocation6 + $0x7f0] sm:$0xff]
    %v3809 = vld [vmem:[#allocation6 + $0x7f8] sm:$0xff]
    %v3810 = vld [vmem:[%s6] sm:$0xf]
    %v3812 = vlaneseq
    %v3813 = vshrl.u32 %v3812, 7
    %v3814 = vsub.s32 0, %v3813
    %v3815 = vrot.slane %v3810, %v3814
    %v3816 = vlaneseq
    %v3817 = vshrl.u32 %v3816, 7
    %v3818 = vsub.s32 1, %v3817
    %v3819 = vrot.slane %v3810, %v3818
    %v3820 = vlaneseq
    %v3821 = vshrl.u32 %v3820, 7
    %v3822 = vsub.s32 2, %v3821
    %v3823 = vrot.slane %v3810, %v3822
    %v3824 = vlaneseq
    %v3825 = vshrl.u32 %v3824, 7
    %v3826 = vsub.s32 3, %v3825
    %v3827 = vrot.slane %v3810, %v3826
    %v4088 = vunpack.c.l.b16 %v3554
    %v4089 = vunpack.c.h.b16 %v3554
    %v4090 = vunpack.c.l.b16 %v3555
    %v4091 = vunpack.c.h.b16 %v3555
    %v4092 = vunpack.c.l.b16 %v3556
    %v4093 = vunpack.c.h.b16 %v3556
    %v4094 = vunpack.c.l.b16 %v3557
    %v4095 = vunpack.c.h.b16 %v3557
    %v4096 = vunpack.c.l.b16 %v3558
    %v4097 = vunpack.c.h.b16 %v3558
    %v4098 = vunpack.c.l.b16 %v3559
    %v4099 = vunpack.c.h.b16 %v3559
    %v4100 = vunpack.c.l.b16 %v3560
    %v4101 = vunpack.c.h.b16 %v3560
    %v4102 = vunpack.c.l.b16 %v3561
    %v4103 = vunpack.c.h.b16 %v3561
    %v4104 = vunpack.c.l.b16 %v3562
    %v4105 = vunpack.c.h.b16 %v3562
    %v4106 = vunpack.c.l.b16 %v3563
    %v4107 = vunpack.c.h.b16 %v3563
    %v4108 = vunpack.c.l.b16 %v3564
    %v4109 = vunpack.c.h.b16 %v3564
    %v4110 = vunpack.c.l.b16 %v3565
    %v4111 = vunpack.c.h.b16 %v3565
    %v4112 = vunpack.c.l.b16 %v3566
    %v4113 = vunpack.c.h.b16 %v3566
    %v4114 = vunpack.c.l.b16 %v3567
    %v4115 = vunpack.c.h.b16 %v3567
    %v4116 = vunpack.c.l.b16 %v3568
    %v4117 = vunpack.c.h.b16 %v3568
    %v4118 = vunpack.c.l.b16 %v3569
    %v4119 = vunpack.c.h.b16 %v3569
    %v4120 = vunpack.c.l.b16 %v3570
    %v4121 = vunpack.c.h.b16 %v3570
    %v4122 = vunpack.c.l.b16 %v3571
    %v4123 = vunpack.c.h.b16 %v3571
    %v4124 = vunpack.c.l.b16 %v3572
    %v4125 = vunpack.c.h.b16 %v3572
    %v4126 = vunpack.c.l.b16 %v3573
    %v4127 = vunpack.c.h.b16 %v3573
    %v4128 = vunpack.c.l.b16 %v3574
    %v4129 = vunpack.c.h.b16 %v3574
    %v4130 = vunpack.c.l.b16 %v3575
    %v4131 = vunpack.c.h.b16 %v3575
    %v4132 = vunpack.c.l.b16 %v3576
    %v4133 = vunpack.c.h.b16 %v3576
    %v4134 = vunpack.c.l.b16 %v3577
    %v4135 = vunpack.c.h.b16 %v3577
    %v4136 = vunpack.c.l.b16 %v3578
    %v4137 = vunpack.c.h.b16 %v3578
    %v4138 = vunpack.c.l.b16 %v3579
    %v4139 = vunpack.c.h.b16 %v3579
    %v4140 = vunpack.c.l.b16 %v3580
    %v4141 = vunpack.c.h.b16 %v3580
    %v4142 = vunpack.c.l.b16 %v3581
    %v4143 = vunpack.c.h.b16 %v3581
    %v4144 = vunpack.c.l.b16 %v3582
    %v4145 = vunpack.c.h.b16 %v3582
    %v4146 = vunpack.c.l.b16 %v3583
    %v4147 = vunpack.c.h.b16 %v3583
    %v4148 = vunpack.c.l.b16 %v3584
    %v4149 = vunpack.c.h.b16 %v3584
    %v4150 = vunpack.c.l.b16 %v3585
    %v4151 = vunpack.c.h.b16 %v3585
    %v4152 = vunpack.c.l.b16 %v3586
    %v4153 = vunpack.c.h.b16 %v3586
    %v4154 = vunpack.c.l.b16 %v3587
    %v4155 = vunpack.c.h.b16 %v3587
    %v4156 = vunpack.c.l.b16 %v3588
    %v4157 = vunpack.c.h.b16 %v3588
    %v4158 = vunpack.c.l.b16 %v3589
    %v4159 = vunpack.c.h.b16 %v3589
    %v4160 = vunpack.c.l.b16 %v3590
    %v4161 = vunpack.c.h.b16 %v3590
    %v4162 = vunpack.c.l.b16 %v3591
    %v4163 = vunpack.c.h.b16 %v3591
    %v4164 = vunpack.c.l.b16 %v3592
    %v4165 = vunpack.c.h.b16 %v3592
    %v4166 = vunpack.c.l.b16 %v3593
    %v4167 = vunpack.c.h.b16 %v3593
    %v4168 = vunpack.c.l.b16 %v3594
    %v4169 = vunpack.c.h.b16 %v3594
    %v4170 = vunpack.c.l.b16 %v3595
    %v4171 = vunpack.c.h.b16 %v3595
    %v4172 = vunpack.c.l.b16 %v3596
    %v4173 = vunpack.c.h.b16 %v3596
    %v4174 = vunpack.c.l.b16 %v3597
    %v4175 = vunpack.c.h.b16 %v3597
    %v4176 = vunpack.c.l.b16 %v3598
    %v4177 = vunpack.c.h.b16 %v3598
    %v4178 = vunpack.c.l.b16 %v3599
    %v4179 = vunpack.c.h.b16 %v3599
    %v4180 = vunpack.c.l.b16 %v3600
    %v4181 = vunpack.c.h.b16 %v3600
    %v4182 = vunpack.c.l.b16 %v3601
    %v4183 = vunpack.c.h.b16 %v3601
    %v4184 = vunpack.c.l.b16 %v3602
    %v4185 = vunpack.c.h.b16 %v3602
    %v4186 = vunpack.c.l.b16 %v3603
    %v4187 = vunpack.c.h.b16 %v3603
    %v4188 = vunpack.c.l.b16 %v3604
    %v4189 = vunpack.c.h.b16 %v3604
    %v4190 = vunpack.c.l.b16 %v3605
    %v4191 = vunpack.c.h.b16 %v3605
    %v4192 = vunpack.c.l.b16 %v3606
    %v4193 = vunpack.c.h.b16 %v3606
    %v4194 = vunpack.c.l.b16 %v3607
    %v4195 = vunpack.c.h.b16 %v3607
    %v4196 = vunpack.c.l.b16 %v3608
    %v4197 = vunpack.c.h.b16 %v3608
    %v4198 = vunpack.c.l.b16 %v3609
    %v4199 = vunpack.c.h.b16 %v3609
    %v4200 = vunpack.c.l.b16 %v3610
    %v4201 = vunpack.c.h.b16 %v3610
    %v4202 = vunpack.c.l.b16 %v3611
    %v4203 = vunpack.c.h.b16 %v3611
    %v4204 = vunpack.c.l.b16 %v3612
    %v4205 = vunpack.c.h.b16 %v3612
    %v4206 = vunpack.c.l.b16 %v3613
    %v4207 = vunpack.c.h.b16 %v3613
    %v4208 = vunpack.c.l.b16 %v3614
    %v4209 = vunpack.c.h.b16 %v3614
    %v4210 = vunpack.c.l.b16 %v3615
    %v4211 = vunpack.c.h.b16 %v3615
    %v4212 = vunpack.c.l.b16 %v3616
    %v4213 = vunpack.c.h.b16 %v3616
    %v4214 = vunpack.c.l.b16 %v3617
    %v4215 = vunpack.c.h.b16 %v3617
    %v4216 = vunpack.c.l.b16 %v3618
    %v4217 = vunpack.c.h.b16 %v3618
    %v4218 = vunpack.c.l.b16 %v3619
    %v4219 = vunpack.c.h.b16 %v3619
    %v4220 = vunpack.c.l.b16 %v3620
    %v4221 = vunpack.c.h.b16 %v3620
    %v4222 = vunpack.c.l.b16 %v3621
    %v4223 = vunpack.c.h.b16 %v3621
    %v4224 = vunpack.c.l.b16 %v3622
    %v4225 = vunpack.c.h.b16 %v3622
    %v4226 = vunpack.c.l.b16 %v3623
    %v4227 = vunpack.c.h.b16 %v3623
    %v4228 = vunpack.c.l.b16 %v3624
    %v4229 = vunpack.c.h.b16 %v3624
    %v4230 = vunpack.c.l.b16 %v3625
    %v4231 = vunpack.c.h.b16 %v3625
    %v4232 = vunpack.c.l.b16 %v3626
    %v4233 = vunpack.c.h.b16 %v3626
    %v4234 = vunpack.c.l.b16 %v3627
    %v4235 = vunpack.c.h.b16 %v3627
    %v4236 = vunpack.c.l.b16 %v3628
    %v4237 = vunpack.c.h.b16 %v3628
    %v4238 = vunpack.c.l.b16 %v3629
    %v4239 = vunpack.c.h.b16 %v3629
    %v4240 = vunpack.c.l.b16 %v3630
    %v4241 = vunpack.c.h.b16 %v3630
    %v4242 = vunpack.c.l.b16 %v3631
    %v4243 = vunpack.c.h.b16 %v3631
    %v4244 = vunpack.c.l.b16 %v3632
    %v4245 = vunpack.c.h.b16 %v3632
    %v4246 = vunpack.c.l.b16 %v3633
    %v4247 = vunpack.c.h.b16 %v3633
    %v4248 = vunpack.c.l.b16 %v3634
    %v4249 = vunpack.c.h.b16 %v3634
    %v4250 = vunpack.c.l.b16 %v3635
    %v4251 = vunpack.c.h.b16 %v3635
    %v4252 = vunpack.c.l.b16 %v3636
    %v4253 = vunpack.c.h.b16 %v3636
    %v4254 = vunpack.c.l.b16 %v3637
    %v4255 = vunpack.c.h.b16 %v3637
    %v4256 = vunpack.c.l.b16 %v3638
    %v4257 = vunpack.c.h.b16 %v3638
    %v4258 = vunpack.c.l.b16 %v3639
    %v4259 = vunpack.c.h.b16 %v3639
    %v4260 = vunpack.c.l.b16 %v3640
    %v4261 = vunpack.c.h.b16 %v3640
    %v4262 = vunpack.c.l.b16 %v3641
    %v4263 = vunpack.c.h.b16 %v3641
    %v4264 = vunpack.c.l.b16 %v3642
    %v4265 = vunpack.c.h.b16 %v3642
    %v4266 = vunpack.c.l.b16 %v3643
    %v4267 = vunpack.c.h.b16 %v3643
    %v4268 = vunpack.c.l.b16 %v3644
    %v4269 = vunpack.c.h.b16 %v3644
    %v4270 = vunpack.c.l.b16 %v3645
    %v4271 = vunpack.c.h.b16 %v3645
    %v4272 = vunpack.c.l.b16 %v3646
    %v4273 = vunpack.c.h.b16 %v3646
    %v4274 = vunpack.c.l.b16 %v3647
    %v4275 = vunpack.c.h.b16 %v3647
    %v4276 = vunpack.c.l.b16 %v3648
    %v4277 = vunpack.c.h.b16 %v3648
    %v4278 = vunpack.c.l.b16 %v3649
    %v4279 = vunpack.c.h.b16 %v3649
    %v4280 = vunpack.c.l.b16 %v3650
    %v4281 = vunpack.c.h.b16 %v3650
    %v4282 = vunpack.c.l.b16 %v3651
    %v4283 = vunpack.c.h.b16 %v3651
    %v4284 = vunpack.c.l.b16 %v3652
    %v4285 = vunpack.c.h.b16 %v3652
    %v4286 = vunpack.c.l.b16 %v3653
    %v4287 = vunpack.c.h.b16 %v3653
    %v4288 = vunpack.c.l.b16 %v3654
    %v4289 = vunpack.c.h.b16 %v3654
    %v4290 = vunpack.c.l.b16 %v3655
    %v4291 = vunpack.c.h.b16 %v3655
    %v4292 = vunpack.c.l.b16 %v3656
    %v4293 = vunpack.c.h.b16 %v3656
    %v4294 = vunpack.c.l.b16 %v3657
    %v4295 = vunpack.c.h.b16 %v3657
    %v4296 = vunpack.c.l.b16 %v3658
    %v4297 = vunpack.c.h.b16 %v3658
    %v4298 = vunpack.c.l.b16 %v3659
    %v4299 = vunpack.c.h.b16 %v3659
    %v4300 = vunpack.c.l.b16 %v3660
    %v4301 = vunpack.c.h.b16 %v3660
    %v4302 = vunpack.c.l.b16 %v3661
    %v4303 = vunpack.c.h.b16 %v3661
    %v4304 = vunpack.c.l.b16 %v3662
    %v4305 = vunpack.c.h.b16 %v3662
    %v4306 = vunpack.c.l.b16 %v3663
    %v4307 = vunpack.c.h.b16 %v3663
    %v4308 = vunpack.c.l.b16 %v3664
    %v4309 = vunpack.c.h.b16 %v3664
    %v4310 = vunpack.c.l.b16 %v3665
    %v4311 = vunpack.c.h.b16 %v3665
    %v4312 = vunpack.c.l.b16 %v3666
    %v4313 = vunpack.c.h.b16 %v3666
    %v4314 = vunpack.c.l.b16 %v3667
    %v4315 = vunpack.c.h.b16 %v3667
    %v4316 = vunpack.c.l.b16 %v3668
    %v4317 = vunpack.c.h.b16 %v3668
    %v4318 = vunpack.c.l.b16 %v3669
    %v4319 = vunpack.c.h.b16 %v3669
    %v4320 = vunpack.c.l.b16 %v3670
    %v4321 = vunpack.c.h.b16 %v3670
    %v4322 = vunpack.c.l.b16 %v3671
    %v4323 = vunpack.c.h.b16 %v3671
    %v4324 = vunpack.c.l.b16 %v3672
    %v4325 = vunpack.c.h.b16 %v3672
    %v4326 = vunpack.c.l.b16 %v3673
    %v4327 = vunpack.c.h.b16 %v3673
    %v4328 = vunpack.c.l.b16 %v3674
    %v4329 = vunpack.c.h.b16 %v3674
    %v4330 = vunpack.c.l.b16 %v3675
    %v4331 = vunpack.c.h.b16 %v3675
    %v4332 = vunpack.c.l.b16 %v3676
    %v4333 = vunpack.c.h.b16 %v3676
    %v4334 = vunpack.c.l.b16 %v3677
    %v4335 = vunpack.c.h.b16 %v3677
    %v4336 = vunpack.c.l.b16 %v3678
    %v4337 = vunpack.c.h.b16 %v3678
    %v4338 = vunpack.c.l.b16 %v3679
    %v4339 = vunpack.c.h.b16 %v3679
    %v4340 = vunpack.c.l.b16 %v3680
    %v4341 = vunpack.c.h.b16 %v3680
    %v4342 = vunpack.c.l.b16 %v3681
    %v4343 = vunpack.c.h.b16 %v3681
    %v4344 = vunpack.c.l.b16 %v3682
    %v4345 = vunpack.c.h.b16 %v3682
    %v4346 = vunpack.c.l.b16 %v3683
    %v4347 = vunpack.c.h.b16 %v3683
    %v4348 = vunpack.c.l.b16 %v3684
    %v4349 = vunpack.c.h.b16 %v3684
    %v4350 = vunpack.c.l.b16 %v3685
    %v4351 = vunpack.c.h.b16 %v3685
    %v4352 = vunpack.c.l.b16 %v3686
    %v4353 = vunpack.c.h.b16 %v3686
    %v4354 = vunpack.c.l.b16 %v3687
    %v4355 = vunpack.c.h.b16 %v3687
    %v4356 = vunpack.c.l.b16 %v3688
    %v4357 = vunpack.c.h.b16 %v3688
    %v4358 = vunpack.c.l.b16 %v3689
    %v4359 = vunpack.c.h.b16 %v3689
    %v4360 = vunpack.c.l.b16 %v3690
    %v4361 = vunpack.c.h.b16 %v3690
    %v4362 = vunpack.c.l.b16 %v3691
    %v4363 = vunpack.c.h.b16 %v3691
    %v4364 = vunpack.c.l.b16 %v3692
    %v4365 = vunpack.c.h.b16 %v3692
    %v4366 = vunpack.c.l.b16 %v3693
    %v4367 = vunpack.c.h.b16 %v3693
    %v4368 = vunpack.c.l.b16 %v3694
    %v4369 = vunpack.c.h.b16 %v3694
    %v4370 = vunpack.c.l.b16 %v3695
    %v4371 = vunpack.c.h.b16 %v3695
    %v4372 = vunpack.c.l.b16 %v3696
    %v4373 = vunpack.c.h.b16 %v3696
    %v4374 = vunpack.c.l.b16 %v3697
    %v4375 = vunpack.c.h.b16 %v3697
    %v4376 = vunpack.c.l.b16 %v3698
    %v4377 = vunpack.c.h.b16 %v3698
    %v4378 = vunpack.c.l.b16 %v3699
    %v4379 = vunpack.c.h.b16 %v3699
    %v4380 = vunpack.c.l.b16 %v3700
    %v4381 = vunpack.c.h.b16 %v3700
    %v4382 = vunpack.c.l.b16 %v3701
    %v4383 = vunpack.c.h.b16 %v3701
    %v4384 = vunpack.c.l.b16 %v3702
    %v4385 = vunpack.c.h.b16 %v3702
    %v4386 = vunpack.c.l.b16 %v3703
    %v4387 = vunpack.c.h.b16 %v3703
    %v4388 = vunpack.c.l.b16 %v3704
    %v4389 = vunpack.c.h.b16 %v3704
    %v4390 = vunpack.c.l.b16 %v3705
    %v4391 = vunpack.c.h.b16 %v3705
    %v4392 = vunpack.c.l.b16 %v3706
    %v4393 = vunpack.c.h.b16 %v3706
    %v4394 = vunpack.c.l.b16 %v3707
    %v4395 = vunpack.c.h.b16 %v3707
    %v4396 = vunpack.c.l.b16 %v3708
    %v4397 = vunpack.c.h.b16 %v3708
    %v4398 = vunpack.c.l.b16 %v3709
    %v4399 = vunpack.c.h.b16 %v3709
    %v4400 = vunpack.c.l.b16 %v3710
    %v4401 = vunpack.c.h.b16 %v3710
    %v4402 = vunpack.c.l.b16 %v3711
    %v4403 = vunpack.c.h.b16 %v3711
    %v4404 = vunpack.c.l.b16 %v3712
    %v4405 = vunpack.c.h.b16 %v3712
    %v4406 = vunpack.c.l.b16 %v3713
    %v4407 = vunpack.c.h.b16 %v3713
    %v4408 = vunpack.c.l.b16 %v3714
    %v4409 = vunpack.c.h.b16 %v3714
    %v4410 = vunpack.c.l.b16 %v3715
    %v4411 = vunpack.c.h.b16 %v3715
    %v4412 = vunpack.c.l.b16 %v3716
    %v4413 = vunpack.c.h.b16 %v3716
    %v4414 = vunpack.c.l.b16 %v3717
    %v4415 = vunpack.c.h.b16 %v3717
    %v4416 = vunpack.c.l.b16 %v3718
    %v4417 = vunpack.c.h.b16 %v3718
    %v4418 = vunpack.c.l.b16 %v3719
    %v4419 = vunpack.c.h.b16 %v3719
    %v4420 = vunpack.c.l.b16 %v3720
    %v4421 = vunpack.c.h.b16 %v3720
    %v4422 = vunpack.c.l.b16 %v3721
    %v4423 = vunpack.c.h.b16 %v3721
    %v4424 = vunpack.c.l.b16 %v3722
    %v4425 = vunpack.c.h.b16 %v3722
    %v4426 = vunpack.c.l.b16 %v3723
    %v4427 = vunpack.c.h.b16 %v3723
    %v4428 = vunpack.c.l.b16 %v3724
    %v4429 = vunpack.c.h.b16 %v3724
    %v4430 = vunpack.c.l.b16 %v3725
    %v4431 = vunpack.c.h.b16 %v3725
    %v4432 = vunpack.c.l.b16 %v3726
    %v4433 = vunpack.c.h.b16 %v3726
    %v4434 = vunpack.c.l.b16 %v3727
    %v4435 = vunpack.c.h.b16 %v3727
    %v4436 = vunpack.c.l.b16 %v3728
    %v4437 = vunpack.c.h.b16 %v3728
    %v4438 = vunpack.c.l.b16 %v3729
    %v4439 = vunpack.c.h.b16 %v3729
    %v4440 = vunpack.c.l.b16 %v3730
    %v4441 = vunpack.c.h.b16 %v3730
    %v4442 = vunpack.c.l.b16 %v3731
    %v4443 = vunpack.c.h.b16 %v3731
    %v4444 = vunpack.c.l.b16 %v3732
    %v4445 = vunpack.c.h.b16 %v3732
    %v4446 = vunpack.c.l.b16 %v3733
    %v4447 = vunpack.c.h.b16 %v3733
    %v4448 = vunpack.c.l.b16 %v3734
    %v4449 = vunpack.c.h.b16 %v3734
    %v4450 = vunpack.c.l.b16 %v3735
    %v4451 = vunpack.c.h.b16 %v3735
    %v4452 = vunpack.c.l.b16 %v3736
    %v4453 = vunpack.c.h.b16 %v3736
    %v4454 = vunpack.c.l.b16 %v3737
    %v4455 = vunpack.c.h.b16 %v3737
    %v4456 = vunpack.c.l.b16 %v3738
    %v4457 = vunpack.c.h.b16 %v3738
    %v4458 = vunpack.c.l.b16 %v3739
    %v4459 = vunpack.c.h.b16 %v3739
    %v4460 = vunpack.c.l.b16 %v3740
    %v4461 = vunpack.c.h.b16 %v3740
    %v4462 = vunpack.c.l.b16 %v3741
    %v4463 = vunpack.c.h.b16 %v3741
    %v4464 = vunpack.c.l.b16 %v3742
    %v4465 = vunpack.c.h.b16 %v3742
    %v4466 = vunpack.c.l.b16 %v3743
    %v4467 = vunpack.c.h.b16 %v3743
    %v4468 = vunpack.c.l.b16 %v3744
    %v4469 = vunpack.c.h.b16 %v3744
    %v4470 = vunpack.c.l.b16 %v3745
    %v4471 = vunpack.c.h.b16 %v3745
    %v4472 = vunpack.c.l.b16 %v3746
    %v4473 = vunpack.c.h.b16 %v3746
    %v4474 = vunpack.c.l.b16 %v3747
    %v4475 = vunpack.c.h.b16 %v3747
    %v4476 = vunpack.c.l.b16 %v3748
    %v4477 = vunpack.c.h.b16 %v3748
    %v4478 = vunpack.c.l.b16 %v3749
    %v4479 = vunpack.c.h.b16 %v3749
    %v4480 = vunpack.c.l.b16 %v3750
    %v4481 = vunpack.c.h.b16 %v3750
    %v4482 = vunpack.c.l.b16 %v3751
    %v4483 = vunpack.c.h.b16 %v3751
    %v4484 = vunpack.c.l.b16 %v3752
    %v4485 = vunpack.c.h.b16 %v3752
    %v4486 = vunpack.c.l.b16 %v3753
    %v4487 = vunpack.c.h.b16 %v3753
    %v4488 = vunpack.c.l.b16 %v3754
    %v4489 = vunpack.c.h.b16 %v3754
    %v4490 = vunpack.c.l.b16 %v3755
    %v4491 = vunpack.c.h.b16 %v3755
    %v4492 = vunpack.c.l.b16 %v3756
    %v4493 = vunpack.c.h.b16 %v3756
    %v4494 = vunpack.c.l.b16 %v3757
    %v4495 = vunpack.c.h.b16 %v3757
    %v4496 = vunpack.c.l.b16 %v3758
    %v4497 = vunpack.c.h.b16 %v3758
    %v4498 = vunpack.c.l.b16 %v3759
    %v4499 = vunpack.c.h.b16 %v3759
    %v4500 = vunpack.c.l.b16 %v3760
    %v4501 = vunpack.c.h.b16 %v3760
    %v4502 = vunpack.c.l.b16 %v3761
    %v4503 = vunpack.c.h.b16 %v3761
    %v4504 = vunpack.c.l.b16 %v3762
    %v4505 = vunpack.c.h.b16 %v3762
    %v4506 = vunpack.c.l.b16 %v3763
    %v4507 = vunpack.c.h.b16 %v3763
    %v4508 = vunpack.c.l.b16 %v3764
    %v4509 = vunpack.c.h.b16 %v3764
    %v4510 = vunpack.c.l.b16 %v3765
    %v4511 = vunpack.c.h.b16 %v3765
    %v4512 = vunpack.c.l.b16 %v3766
    %v4513 = vunpack.c.h.b16 %v3766
    %v4514 = vunpack.c.l.b16 %v3767
    %v4515 = vunpack.c.h.b16 %v3767
    %v4516 = vunpack.c.l.b16 %v3768
    %v4517 = vunpack.c.h.b16 %v3768
    %v4518 = vunpack.c.l.b16 %v3769
    %v4519 = vunpack.c.h.b16 %v3769
    %v4520 = vunpack.c.l.b16 %v3770
    %v4521 = vunpack.c.h.b16 %v3770
    %v4522 = vunpack.c.l.b16 %v3771
    %v4523 = vunpack.c.h.b16 %v3771
    %v4524 = vunpack.c.l.b16 %v3772
    %v4525 = vunpack.c.h.b16 %v3772
    %v4526 = vunpack.c.l.b16 %v3773
    %v4527 = vunpack.c.h.b16 %v3773
    %v4528 = vunpack.c.l.b16 %v3774
    %v4529 = vunpack.c.h.b16 %v3774
    %v4530 = vunpack.c.l.b16 %v3775
    %v4531 = vunpack.c.h.b16 %v3775
    %v4532 = vunpack.c.l.b16 %v3776
    %v4533 = vunpack.c.h.b16 %v3776
    %v4534 = vunpack.c.l.b16 %v3777
    %v4535 = vunpack.c.h.b16 %v3777
    %v4536 = vunpack.c.l.b16 %v3778
    %v4537 = vunpack.c.h.b16 %v3778
    %v4538 = vunpack.c.l.b16 %v3779
    %v4539 = vunpack.c.h.b16 %v3779
    %v4540 = vunpack.c.l.b16 %v3780
    %v4541 = vunpack.c.h.b16 %v3780
    %v4542 = vunpack.c.l.b16 %v3781
    %v4543 = vunpack.c.h.b16 %v3781
    %v4544 = vunpack.c.l.b16 %v3782
    %v4545 = vunpack.c.h.b16 %v3782
    %v4546 = vunpack.c.l.b16 %v3783
    %v4547 = vunpack.c.h.b16 %v3783
    %v4548 = vunpack.c.l.b16 %v3784
    %v4549 = vunpack.c.h.b16 %v3784
    %v4550 = vunpack.c.l.b16 %v3785
    %v4551 = vunpack.c.h.b16 %v3785
    %v4552 = vunpack.c.l.b16 %v3786
    %v4553 = vunpack.c.h.b16 %v3786
    %v4554 = vunpack.c.l.b16 %v3787
    %v4555 = vunpack.c.h.b16 %v3787
    %v4556 = vunpack.c.l.b16 %v3788
    %v4557 = vunpack.c.h.b16 %v3788
    %v4558 = vunpack.c.l.b16 %v3789
    %v4559 = vunpack.c.h.b16 %v3789
    %v4560 = vunpack.c.l.b16 %v3790
    %v4561 = vunpack.c.h.b16 %v3790
    %v4562 = vunpack.c.l.b16 %v3791
    %v4563 = vunpack.c.h.b16 %v3791
    %v4564 = vunpack.c.l.b16 %v3792
    %v4565 = vunpack.c.h.b16 %v3792
    %v4566 = vunpack.c.l.b16 %v3793
    %v4567 = vunpack.c.h.b16 %v3793
    %v4568 = vunpack.c.l.b16 %v3794
    %v4569 = vunpack.c.h.b16 %v3794
    %v4570 = vunpack.c.l.b16 %v3795
    %v4571 = vunpack.c.h.b16 %v3795
    %v4572 = vunpack.c.l.b16 %v3796
    %v4573 = vunpack.c.h.b16 %v3796
    %v4574 = vunpack.c.l.b16 %v3797
    %v4575 = vunpack.c.h.b16 %v3797
    %v4576 = vunpack.c.l.b16 %v3798
    %v4577 = vunpack.c.h.b16 %v3798
    %v4578 = vunpack.c.l.b16 %v3799
    %v4579 = vunpack.c.h.b16 %v3799
    %v4580 = vunpack.c.l.b16 %v3800
    %v4581 = vunpack.c.h.b16 %v3800
    %v4582 = vunpack.c.l.b16 %v3801
    %v4583 = vunpack.c.h.b16 %v3801
    %v4584 = vunpack.c.l.b16 %v3802
    %v4585 = vunpack.c.h.b16 %v3802
    %v4586 = vunpack.c.l.b16 %v3803
    %v4587 = vunpack.c.h.b16 %v3803
    %v4588 = vunpack.c.l.b16 %v3804
    %v4589 = vunpack.c.h.b16 %v3804
    %v4590 = vunpack.c.l.b16 %v3805
    %v4591 = vunpack.c.h.b16 %v3805
    %v4592 = vunpack.c.l.b16 %v3806
    %v4593 = vunpack.c.h.b16 %v3806
    %v4594 = vunpack.c.l.b16 %v3807
    %v4595 = vunpack.c.h.b16 %v3807
    %v4596 = vunpack.c.l.b16 %v3808
    %v4597 = vunpack.c.h.b16 %v3808
    %v4598 = vunpack.c.l.b16 %v3809
    %v4599 = vunpack.c.h.b16 %v3809
    %v4600 = vpack.c.b16 %v4092, %v4088
    %v4601 = vpack.c.b16 %v4093, %v4089
    %v4602 = vpack.c.b16 %v4094, %v4090
    %v4603 = vpack.c.b16 %v4095, %v4091
    %v4604 = vpack.c.b16 %v4100, %v4096
    %v4605 = vpack.c.b16 %v4101, %v4097
    %v4606 = vpack.c.b16 %v4102, %v4098
    %v4607 = vpack.c.b16 %v4103, %v4099
    %v4608 = vpack.c.b16 %v4108, %v4104
    %v4609 = vpack.c.b16 %v4109, %v4105
    %v4610 = vpack.c.b16 %v4110, %v4106
    %v4611 = vpack.c.b16 %v4111, %v4107
    %v4612 = vpack.c.b16 %v4116, %v4112
    %v4613 = vpack.c.b16 %v4117, %v4113
    %v4614 = vpack.c.b16 %v4118, %v4114
    %v4615 = vpack.c.b16 %v4119, %v4115
    %v4616 = vpack.c.b16 %v4124, %v4120
    %v4617 = vpack.c.b16 %v4125, %v4121
    %v4618 = vpack.c.b16 %v4126, %v4122
    %v4619 = vpack.c.b16 %v4127, %v4123
    %v4620 = vpack.c.b16 %v4132, %v4128
    %v4621 = vpack.c.b16 %v4133, %v4129
    %v4622 = vpack.c.b16 %v4134, %v4130
    %v4623 = vpack.c.b16 %v4135, %v4131
    %v4624 = vpack.c.b16 %v4140, %v4136
    %v4625 = vpack.c.b16 %v4141, %v4137
    %v4626 = vpack.c.b16 %v4142, %v4138
    %v4627 = vpack.c.b16 %v4143, %v4139
    %v4628 = vpack.c.b16 %v4148, %v4144
    %v4629 = vpack.c.b16 %v4149, %v4145
    %v4630 = vpack.c.b16 %v4150, %v4146
    %v4631 = vpack.c.b16 %v4151, %v4147
    %v4632 = vpack.c.b16 %v4156, %v4152
    %v4633 = vpack.c.b16 %v4157, %v4153
    %v4634 = vpack.c.b16 %v4158, %v4154
    %v4635 = vpack.c.b16 %v4159, %v4155
    %v4636 = vpack.c.b16 %v4164, %v4160
    %v4637 = vpack.c.b16 %v4165, %v4161
    %v4638 = vpack.c.b16 %v4166, %v4162
    %v4639 = vpack.c.b16 %v4167, %v4163
    %v4640 = vpack.c.b16 %v4172, %v4168
    %v4641 = vpack.c.b16 %v4173, %v4169
    %v4642 = vpack.c.b16 %v4174, %v4170
    %v4643 = vpack.c.b16 %v4175, %v4171
    %v4644 = vpack.c.b16 %v4180, %v4176
    %v4645 = vpack.c.b16 %v4181, %v4177
    %v4646 = vpack.c.b16 %v4182, %v4178
    %v4647 = vpack.c.b16 %v4183, %v4179
    %v4648 = vpack.c.b16 %v4188, %v4184
    %v4649 = vpack.c.b16 %v4189, %v4185
    %v4650 = vpack.c.b16 %v4190, %v4186
    %v4651 = vpack.c.b16 %v4191, %v4187
    %v4652 = vpack.c.b16 %v4196, %v4192
    %v4653 = vpack.c.b16 %v4197, %v4193
    %v4654 = vpack.c.b16 %v4198, %v4194
    %v4655 = vpack.c.b16 %v4199, %v4195
    %v4656 = vpack.c.b16 %v4204, %v4200
    %v4657 = vpack.c.b16 %v4205, %v4201
    %v4658 = vpack.c.b16 %v4206, %v4202
    %v4659 = vpack.c.b16 %v4207, %v4203
    %v4660 = vpack.c.b16 %v4212, %v4208
    %v4661 = vpack.c.b16 %v4213, %v4209
    %v4662 = vpack.c.b16 %v4214, %v4210
    %v4663 = vpack.c.b16 %v4215, %v4211
    %v4664 = vpack.c.b16 %v4220, %v4216
    %v4665 = vpack.c.b16 %v4221, %v4217
    %v4666 = vpack.c.b16 %v4222, %v4218
    %v4667 = vpack.c.b16 %v4223, %v4219
    %v4668 = vpack.c.b16 %v4228, %v4224
    %v4669 = vpack.c.b16 %v4229, %v4225
    %v4670 = vpack.c.b16 %v4230, %v4226
    %v4671 = vpack.c.b16 %v4231, %v4227
    %v4672 = vpack.c.b16 %v4236, %v4232
    %v4673 = vpack.c.b16 %v4237, %v4233
    %v4674 = vpack.c.b16 %v4238, %v4234
    %v4675 = vpack.c.b16 %v4239, %v4235
    %v4676 = vpack.c.b16 %v4244, %v4240
    %v4677 = vpack.c.b16 %v4245, %v4241
    %v4678 = vpack.c.b16 %v4246, %v4242
    %v4679 = vpack.c.b16 %v4247, %v4243
    %v4680 = vpack.c.b16 %v4252, %v4248
    %v4681 = vpack.c.b16 %v4253, %v4249
    %v4682 = vpack.c.b16 %v4254, %v4250
    %v4683 = vpack.c.b16 %v4255, %v4251
    %v4684 = vpack.c.b16 %v4260, %v4256
    %v4685 = vpack.c.b16 %v4261, %v4257
    %v4686 = vpack.c.b16 %v4262, %v4258
    %v4687 = vpack.c.b16 %v4263, %v4259
    %v4688 = vpack.c.b16 %v4268, %v4264
    %v4689 = vpack.c.b16 %v4269, %v4265
    %v4690 = vpack.c.b16 %v4270, %v4266
    %v4691 = vpack.c.b16 %v4271, %v4267
    %v4692 = vpack.c.b16 %v4276, %v4272
    %v4693 = vpack.c.b16 %v4277, %v4273
    %v4694 = vpack.c.b16 %v4278, %v4274
    %v4695 = vpack.c.b16 %v4279, %v4275
    %v4696 = vpack.c.b16 %v4284, %v4280
    %v4697 = vpack.c.b16 %v4285, %v4281
    %v4698 = vpack.c.b16 %v4286, %v4282
    %v4699 = vpack.c.b16 %v4287, %v4283
    %v4700 = vpack.c.b16 %v4292, %v4288
    %v4701 = vpack.c.b16 %v4293, %v4289
    %v4702 = vpack.c.b16 %v4294, %v4290
    %v4703 = vpack.c.b16 %v4295, %v4291
    %v4704 = vpack.c.b16 %v4300, %v4296
    %v4705 = vpack.c.b16 %v4301, %v4297
    %v4706 = vpack.c.b16 %v4302, %v4298
    %v4707 = vpack.c.b16 %v4303, %v4299
    %v4708 = vpack.c.b16 %v4308, %v4304
    %v4709 = vpack.c.b16 %v4309, %v4305
    %v4710 = vpack.c.b16 %v4310, %v4306
    %v4711 = vpack.c.b16 %v4311, %v4307
    %v4712 = vpack.c.b16 %v4316, %v4312
    %v4713 = vpack.c.b16 %v4317, %v4313
    %v4714 = vpack.c.b16 %v4318, %v4314
    %v4715 = vpack.c.b16 %v4319, %v4315
    %v4716 = vpack.c.b16 %v4324, %v4320
    %v4717 = vpack.c.b16 %v4325, %v4321
    %v4718 = vpack.c.b16 %v4326, %v4322
    %v4719 = vpack.c.b16 %v4327, %v4323
    %v4720 = vpack.c.b16 %v4332, %v4328
    %v4721 = vpack.c.b16 %v4333, %v4329
    %v4722 = vpack.c.b16 %v4334, %v4330
    %v4723 = vpack.c.b16 %v4335, %v4331
    %v4724 = vpack.c.b16 %v4340, %v4336
    %v4725 = vpack.c.b16 %v4341, %v4337
    %v4726 = vpack.c.b16 %v4342, %v4338
    %v4727 = vpack.c.b16 %v4343, %v4339
    %v4728 = vpack.c.b16 %v4348, %v4344
    %v4729 = vpack.c.b16 %v4349, %v4345
    %v4730 = vpack.c.b16 %v4350, %v4346
    %v4731 = vpack.c.b16 %v4351, %v4347
    %v4732 = vpack.c.b16 %v4356, %v4352
    %v4733 = vpack.c.b16 %v4357, %v4353
    %v4734 = vpack.c.b16 %v4358, %v4354
    %v4735 = vpack.c.b16 %v4359, %v4355
    %v4736 = vpack.c.b16 %v4364, %v4360
    %v4737 = vpack.c.b16 %v4365, %v4361
    %v4738 = vpack.c.b16 %v4366, %v4362
    %v4739 = vpack.c.b16 %v4367, %v4363
    %v4740 = vpack.c.b16 %v4372, %v4368
    %v4741 = vpack.c.b16 %v4373, %v4369
    %v4742 = vpack.c.b16 %v4374, %v4370
    %v4743 = vpack.c.b16 %v4375, %v4371
    %v4744 = vpack.c.b16 %v4380, %v4376
    %v4745 = vpack.c.b16 %v4381, %v4377
    %v4746 = vpack.c.b16 %v4382, %v4378
    %v4747 = vpack.c.b16 %v4383, %v4379
    %v4748 = vpack.c.b16 %v4388, %v4384
    %v4749 = vpack.c.b16 %v4389, %v4385
    %v4750 = vpack.c.b16 %v4390, %v4386
    %v4751 = vpack.c.b16 %v4391, %v4387
    %v4752 = vpack.c.b16 %v4396, %v4392
    %v4753 = vpack.c.b16 %v4397, %v4393
    %v4754 = vpack.c.b16 %v4398, %v4394
    %v4755 = vpack.c.b16 %v4399, %v4395
    %v4756 = vpack.c.b16 %v4404, %v4400
    %v4757 = vpack.c.b16 %v4405, %v4401
    %v4758 = vpack.c.b16 %v4406, %v4402
    %v4759 = vpack.c.b16 %v4407, %v4403
    %v4760 = vpack.c.b16 %v4412, %v4408
    %v4761 = vpack.c.b16 %v4413, %v4409
    %v4762 = vpack.c.b16 %v4414, %v4410
    %v4763 = vpack.c.b16 %v4415, %v4411
    %v4764 = vpack.c.b16 %v4420, %v4416
    %v4765 = vpack.c.b16 %v4421, %v4417
    %v4766 = vpack.c.b16 %v4422, %v4418
    %v4767 = vpack.c.b16 %v4423, %v4419
    %v4768 = vpack.c.b16 %v4428, %v4424
    %v4769 = vpack.c.b16 %v4429, %v4425
    %v4770 = vpack.c.b16 %v4430, %v4426
    %v4771 = vpack.c.b16 %v4431, %v4427
    %v4772 = vpack.c.b16 %v4436, %v4432
    %v4773 = vpack.c.b16 %v4437, %v4433
    %v4774 = vpack.c.b16 %v4438, %v4434
    %v4775 = vpack.c.b16 %v4439, %v4435
    %v4776 = vpack.c.b16 %v4444, %v4440
    %v4777 = vpack.c.b16 %v4445, %v4441
    %v4778 = vpack.c.b16 %v4446, %v4442
    %v4779 = vpack.c.b16 %v4447, %v4443
    %v4780 = vpack.c.b16 %v4452, %v4448
    %v4781 = vpack.c.b16 %v4453, %v4449
    %v4782 = vpack.c.b16 %v4454, %v4450
    %v4783 = vpack.c.b16 %v4455, %v4451
    %v4784 = vpack.c.b16 %v4460, %v4456
    %v4785 = vpack.c.b16 %v4461, %v4457
    %v4786 = vpack.c.b16 %v4462, %v4458
    %v4787 = vpack.c.b16 %v4463, %v4459
    %v4788 = vpack.c.b16 %v4468, %v4464
    %v4789 = vpack.c.b16 %v4469, %v4465
    %v4790 = vpack.c.b16 %v4470, %v4466
    %v4791 = vpack.c.b16 %v4471, %v4467
    %v4792 = vpack.c.b16 %v4476, %v4472
    %v4793 = vpack.c.b16 %v4477, %v4473
    %v4794 = vpack.c.b16 %v4478, %v4474
    %v4795 = vpack.c.b16 %v4479, %v4475
    %v4796 = vpack.c.b16 %v4484, %v4480
    %v4797 = vpack.c.b16 %v4485, %v4481
    %v4798 = vpack.c.b16 %v4486, %v4482
    %v4799 = vpack.c.b16 %v4487, %v4483
    %v4800 = vpack.c.b16 %v4492, %v4488
    %v4801 = vpack.c.b16 %v4493, %v4489
    %v4802 = vpack.c.b16 %v4494, %v4490
    %v4803 = vpack.c.b16 %v4495, %v4491
    %v4804 = vpack.c.b16 %v4500, %v4496
    %v4805 = vpack.c.b16 %v4501, %v4497
    %v4806 = vpack.c.b16 %v4502, %v4498
    %v4807 = vpack.c.b16 %v4503, %v4499
    %v4808 = vpack.c.b16 %v4508, %v4504
    %v4809 = vpack.c.b16 %v4509, %v4505
    %v4810 = vpack.c.b16 %v4510, %v4506
    %v4811 = vpack.c.b16 %v4511, %v4507
    %v4812 = vpack.c.b16 %v4516, %v4512
    %v4813 = vpack.c.b16 %v4517, %v4513
    %v4814 = vpack.c.b16 %v4518, %v4514
    %v4815 = vpack.c.b16 %v4519, %v4515
    %v4816 = vpack.c.b16 %v4524, %v4520
    %v4817 = vpack.c.b16 %v4525, %v4521
    %v4818 = vpack.c.b16 %v4526, %v4522
    %v4819 = vpack.c.b16 %v4527, %v4523
    %v4820 = vpack.c.b16 %v4532, %v4528
    %v4821 = vpack.c.b16 %v4533, %v4529
    %v4822 = vpack.c.b16 %v4534, %v4530
    %v4823 = vpack.c.b16 %v4535, %v4531
    %v4824 = vpack.c.b16 %v4540, %v4536
    %v4825 = vpack.c.b16 %v4541, %v4537
    %v4826 = vpack.c.b16 %v4542, %v4538
    %v4827 = vpack.c.b16 %v4543, %v4539
    %v4828 = vpack.c.b16 %v4548, %v4544
    %v4829 = vpack.c.b16 %v4549, %v4545
    %v4830 = vpack.c.b16 %v4550, %v4546
    %v4831 = vpack.c.b16 %v4551, %v4547
    %v4832 = vpack.c.b16 %v4556, %v4552
    %v4833 = vpack.c.b16 %v4557, %v4553
    %v4834 = vpack.c.b16 %v4558, %v4554
    %v4835 = vpack.c.b16 %v4559, %v4555
    %v4836 = vpack.c.b16 %v4564, %v4560
    %v4837 = vpack.c.b16 %v4565, %v4561
    %v4838 = vpack.c.b16 %v4566, %v4562
    %v4839 = vpack.c.b16 %v4567, %v4563
    %v4840 = vpack.c.b16 %v4572, %v4568
    %v4841 = vpack.c.b16 %v4573, %v4569
    %v4842 = vpack.c.b16 %v4574, %v4570
    %v4843 = vpack.c.b16 %v4575, %v4571
    %v4844 = vpack.c.b16 %v4580, %v4576
    %v4845 = vpack.c.b16 %v4581, %v4577
    %v4846 = vpack.c.b16 %v4582, %v4578
    %v4847 = vpack.c.b16 %v4583, %v4579
    %v4848 = vpack.c.b16 %v4588, %v4584
    %v4849 = vpack.c.b16 %v4589, %v4585
    %v4850 = vpack.c.b16 %v4590, %v4586
    %v4851 = vpack.c.b16 %v4591, %v4587
    %v4852 = vpack.c.b16 %v4596, %v4592
    %v4853 = vpack.c.b16 %v4597, %v4593
    %v4854 = vpack.c.b16 %v4598, %v4594
    %v4855 = vpack.c.b16 %v4599, %v4595
    %5112 = vmatprep.subr.bf16.mxu0 %v4601
    %5113 = vmatpush1.bf16.msra.mxu0 %v4600
    %5114 = vmatprep.subr.bf16.mxu0 %v4605
    %5115 = vmatpush1.bf16.msra.mxu0 %v4604
    %5116 = vmatprep.subr.bf16.mxu0 %v4609
    %5117 = vmatpush1.bf16.msra.mxu0 %v4608
    %5118 = vmatprep.subr.bf16.mxu0 %v4613
    %5119 = vmatpush1.bf16.msra.mxu0 %v4612
    %5120 = vmatprep.subr.bf16.mxu0 %v4617
    %5121 = vmatpush1.bf16.msra.mxu0 %v4616
    %5122 = vmatprep.subr.bf16.mxu0 %v4621
    %5123 = vmatpush1.bf16.msra.mxu0 %v4620
    %5124 = vmatprep.subr.bf16.mxu0 %v4625
    %5125 = vmatpush1.bf16.msra.mxu0 %v4624
    %5126 = vmatprep.subr.bf16.mxu0 %v4629
    %5127 = vmatpush1.bf16.msra.mxu0 %v4628
    %5128 = vmatprep.subr.bf16.mxu0 %v4633
    %5129 = vmatpush1.bf16.msra.mxu0 %v4632
    %5130 = vmatprep.subr.bf16.mxu0 %v4637
    %5131 = vmatpush1.bf16.msra.mxu0 %v4636
    %5132 = vmatprep.subr.bf16.mxu0 %v4641
    %5133 = vmatpush1.bf16.msra.mxu0 %v4640
    %5134 = vmatprep.subr.bf16.mxu0 %v4645
    %5135 = vmatpush1.bf16.msra.mxu0 %v4644
    %5136 = vmatprep.subr.bf16.mxu0 %v4649
    %5137 = vmatpush1.bf16.msra.mxu0 %v4648
    %5138 = vmatprep.subr.bf16.mxu0 %v4653
    %5139 = vmatpush1.bf16.msra.mxu0 %v4652
    %5140 = vmatprep.subr.bf16.mxu0 %v4657
    %5141 = vmatpush1.bf16.msra.mxu0 %v4656
    %5142 = vmatprep.subr.bf16.mxu0 %v4661
    %5143 = vmatpush1.bf16.msra.mxu0 %v4660
    %5144 = vmatprep.mubr.bf16.mxu0 %v3547
    %5145 = vmatmul.mubr.bf16.gmra.mrb[0].mxu0 %v3546
    %v5146 = vpop.f32.mrb[0].mxu0
    %v5147 = vadd.f32 %v3815, %v5146
    %v5148 = vpop.f32.mrb[0].mxu0
    %v5149 = vadd.f32 %v3819, %v5148
    %v5150 = vpop.f32.mrb[0].mxu0
    %v5151 = vpop.f32.mrb[0].mxu0
    %5152 = vdwg.mxu0
    %5153 = vmatprep.subr.bf16.mxu0 %v4665
    %5154 = vmatpush1.bf16.msra.mxu0 %v4664
    %5155 = vmatprep.subr.bf16.mxu0 %v4669
    %5156 = vmatpush1.bf16.msra.mxu0 %v4668
    %5157 = vmatprep.subr.bf16.mxu0 %v4673
    %5158 = vmatpush1.bf16.msra.mxu0 %v4672
    %5159 = vmatprep.subr.bf16.mxu0 %v4677
    %5160 = vmatpush1.bf16.msra.mxu0 %v4676
    %5161 = vmatprep.subr.bf16.mxu0 %v4681
    %5162 = vmatpush1.bf16.msra.mxu0 %v4680
    %5163 = vmatprep.subr.bf16.mxu0 %v4685
    %5164 = vmatpush1.bf16.msra.mxu0 %v4684
    %5165 = vmatprep.subr.bf16.mxu0 %v4689
    %5166 = vmatpush1.bf16.msra.mxu0 %v4688
    %5167 = vmatprep.subr.bf16.mxu0 %v4693
    %5168 = vmatpush1.bf16.msra.mxu0 %v4692
    %5169 = vmatprep.subr.bf16.mxu0 %v4697
    %5170 = vmatpush1.bf16.msra.mxu0 %v4696
    %5171 = vmatprep.subr.bf16.mxu0 %v4701
    %5172 = vmatpush1.bf16.msra.mxu0 %v4700
    %5173 = vmatprep.subr.bf16.mxu0 %v4705
    %5174 = vmatpush1.bf16.msra.mxu0 %v4704
    %5175 = vmatprep.subr.bf16.mxu0 %v4709
    %5176 = vmatpush1.bf16.msra.mxu0 %v4708
    %5177 = vmatprep.subr.bf16.mxu0 %v4713
    %5178 = vmatpush1.bf16.msra.mxu0 %v4712
    %5179 = vmatprep.subr.bf16.mxu0 %v4717
    %5180 = vmatpush1.bf16.msra.mxu0 %v4716
    %5181 = vmatprep.subr.bf16.mxu0 %v4721
    %5182 = vmatpush1.bf16.msra.mxu0 %v4720
    %5183 = vmatprep.subr.bf16.mxu0 %v4725
    %5184 = vmatpush1.bf16.msra.mxu0 %v4724
    %5185 = vmatprep.mubr.bf16.mxu0 %v3549
    %5186 = vmatmul.mubr.bf16.gmra.mrb[0].mxu0 %v3548
    %v5187 = vpop.f32.mrb[0].mxu0
    %v5188 = vadd.f32 %v5147, %v5187
    %v5189 = vpop.f32.mrb[0].mxu0
    %v5190 = vadd.f32 %v5149, %v5189
    %v5191 = vpop.f32.mrb[0].mxu0
    %v5192 = vpop.f32.mrb[0].mxu0
    %5193 = vdwg.mxu0
    %5194 = vmatprep.subr.bf16.mxu0 %v4729
    %5195 = vmatpush1.bf16.msra.mxu0 %v4728
    %5196 = vmatprep.subr.bf16.mxu0 %v4733
    %5197 = vmatpush1.bf16.msra.mxu0 %v4732
    %5198 = vmatprep.subr.bf16.mxu0 %v4737
    %5199 = vmatpush1.bf16.msra.mxu0 %v4736
    %5200 = vmatprep.subr.bf16.mxu0 %v4741
    %5201 = vmatpush1.bf16.msra.mxu0 %v4740
    %5202 = vmatprep.subr.bf16.mxu0 %v4745
    %5203 = vmatpush1.bf16.msra.mxu0 %v4744
    %5204 = vmatprep.subr.bf16.mxu0 %v4749
    %5205 = vmatpush1.bf16.msra.mxu0 %v4748
    %5206 = vmatprep.subr.bf16.mxu0 %v4753
    %5207 = vmatpush1.bf16.msra.mxu0 %v4752
    %5208 = vmatprep.subr.bf16.mxu0 %v4757
    %5209 = vmatpush1.bf16.msra.mxu0 %v4756
    %5210 = vmatprep.subr.bf16.mxu0 %v4761
    %5211 = vmatpush1.bf16.msra.mxu0 %v4760
    %5212 = vmatprep.subr.bf16.mxu0 %v4765
    %5213 = vmatpush1.bf16.msra.mxu0 %v4764
    %5214 = vmatprep.subr.bf16.mxu0 %v4769
    %5215 = vmatpush1.bf16.msra.mxu0 %v4768
    %5216 = vmatprep.subr.bf16.mxu0 %v4773
    %5217 = vmatpush1.bf16.msra.mxu0 %v4772
    %5218 = vmatprep.subr.bf16.mxu0 %v4777
    %5219 = vmatpush1.bf16.msra.mxu0 %v4776
    %5220 = vmatprep.subr.bf16.mxu0 %v4781
    %5221 = vmatpush1.bf16.msra.mxu0 %v4780
    %5222 = vmatprep.subr.bf16.mxu0 %v4785
    %5223 = vmatpush1.bf16.msra.mxu0 %v4784
    %5224 = vmatprep.subr.bf16.mxu0 %v4789
    %5225 = vmatpush1.bf16.msra.mxu0 %v4788
    %5226 = vmatprep.mubr.bf16.mxu0 %v3551
    %5227 = vmatmul.mubr.bf16.gmra.mrb[0].mxu0 %v3550
    %v5228 = vpop.f32.mrb[0].mxu0
    %v5229 = vadd.f32 %v5188, %v5228
    %v5230 = vpop.f32.mrb[0].mxu0
    %v5231 = vadd.f32 %v5190, %v5230
    %v5232 = vpop.f32.mrb[0].mxu0
    %v5233 = vpop.f32.mrb[0].mxu0
    %5234 = vdwg.mxu0
    %5235 = vmatprep.subr.bf16.mxu0 %v4793
    %5236 = vmatpush1.bf16.msra.mxu0 %v4792
    %5237 = vmatprep.subr.bf16.mxu0 %v4797
    %5238 = vmatpush1.bf16.msra.mxu0 %v4796
    %5239 = vmatprep.subr.bf16.mxu0 %v4801
    %5240 = vmatpush1.bf16.msra.mxu0 %v4800
    %5241 = vmatprep.subr.bf16.mxu0 %v4805
    %5242 = vmatpush1.bf16.msra.mxu0 %v4804
    %5243 = vmatprep.subr.bf16.mxu0 %v4809
    %5244 = vmatpush1.bf16.msra.mxu0 %v4808
    %5245 = vmatprep.subr.bf16.mxu0 %v4813
    %5246 = vmatpush1.bf16.msra.mxu0 %v4812
    %5247 = vmatprep.subr.bf16.mxu0 %v4817
    %5248 = vmatpush1.bf16.msra.mxu0 %v4816
    %5249 = vmatprep.subr.bf16.mxu0 %v4821
    %5250 = vmatpush1.bf16.msra.mxu0 %v4820
    %5251 = vmatprep.subr.bf16.mxu0 %v4825
    %5252 = vmatpush1.bf16.msra.mxu0 %v4824
    %5253 = vmatprep.subr.bf16.mxu0 %v4829
    %5254 = vmatpush1.bf16.msra.mxu0 %v4828
    %5255 = vmatprep.subr.bf16.mxu0 %v4833
    %5256 = vmatpush1.bf16.msra.mxu0 %v4832
    %5257 = vmatprep.subr.bf16.mxu0 %v4837
    %5258 = vmatpush1.bf16.msra.mxu0 %v4836
    %5259 = vmatprep.subr.bf16.mxu0 %v4841
    %5260 = vmatpush1.bf16.msra.mxu0 %v4840
    %5261 = vmatprep.subr.bf16.mxu0 %v4845
    %5262 = vmatpush1.bf16.msra.mxu0 %v4844
    %5263 = vmatprep.subr.bf16.mxu0 %v4849
    %5264 = vmatpush1.bf16.msra.mxu0 %v4848
    %5265 = vmatprep.subr.bf16.mxu0 %v4853
    %5266 = vmatpush1.bf16.msra.mxu0 %v4852
    %5267 = vmatprep.mubr.bf16.mxu0 %v3553
    %5268 = vmatmul.mubr.bf16.gmra.mrb[0].mxu0 %v3552
    %v5269 = vpop.f32.mrb[0].mxu0
    %v5270 = vadd.f32 %v5229, %v5269
    %v5271 = vpop.f32.mrb[0].mxu0
    %v5272 = vadd.f32 %v5231, %v5271
    %v5273 = vpop.f32.mrb[0].mxu0
    %v5274 = vpop.f32.mrb[0].mxu0
    %5275 = vdwg.mxu0
    %5276 = vmatprep.subr.bf16.mxu0 %v4603
    %5277 = vmatpush1.bf16.msra.mxu0 %v4602
    %5278 = vmatprep.subr.bf16.mxu0 %v4607
    %5279 = vmatpush1.bf16.msra.mxu0 %v4606
    %5280 = vmatprep.subr.bf16.mxu0 %v4611
    %5281 = vmatpush1.bf16.msra.mxu0 %v4610
    %5282 = vmatprep.subr.bf16.mxu0 %v4615
    %5283 = vmatpush1.bf16.msra.mxu0 %v4614
    %5284 = vmatprep.subr.bf16.mxu0 %v4619
    %5285 = vmatpush1.bf16.msra.mxu0 %v4618
    %5286 = vmatprep.subr.bf16.mxu0 %v4623
    %5287 = vmatpush1.bf16.msra.mxu0 %v4622
    %5288 = vmatprep.subr.bf16.mxu0 %v4627
    %5289 = vmatpush1.bf16.msra.mxu0 %v4626
    %5290 = vmatprep.subr.bf16.mxu0 %v4631
    %5291 = vmatpush1.bf16.msra.mxu0 %v4630
    %5292 = vmatprep.subr.bf16.mxu0 %v4635
    %5293 = vmatpush1.bf16.msra.mxu0 %v4634
    %5294 = vmatprep.subr.bf16.mxu0 %v4639
    %5295 = vmatpush1.bf16.msra.mxu0 %v4638
    %5296 = vmatprep.subr.bf16.mxu0 %v4643
    %5297 = vmatpush1.bf16.msra.mxu0 %v4642
    %5298 = vmatprep.subr.bf16.mxu0 %v4647
    %5299 = vmatpush1.bf16.msra.mxu0 %v4646
    %5300 = vmatprep.subr.bf16.mxu0 %v4651
    %5301 = vmatpush1.bf16.msra.mxu0 %v4650
    %5302 = vmatprep.subr.bf16.mxu0 %v4655
    %5303 = vmatpush1.bf16.msra.mxu0 %v4654
    %5304 = vmatprep.subr.bf16.mxu0 %v4659
    %5305 = vmatpush1.bf16.msra.mxu0 %v4658
    %5306 = vmatprep.subr.bf16.mxu0 %v4663
    %5307 = vmatpush1.bf16.msra.mxu0 %v4662
    %5308 = vmatprep.mubr.bf16.mxu0 %v3547
    %5309 = vmatmul.mubr.bf16.gmra.mrb[0].mxu0 %v3546
    %v5310 = vpop.f32.mrb[0].mxu0
    %v5311 = vadd.f32 %v3823, %v5310
    %v5312 = vpop.f32.mrb[0].mxu0
    %v5313 = vadd.f32 %v3827, %v5312
    %v5314 = vpop.f32.mrb[0].mxu0
    %v5315 = vpop.f32.mrb[0].mxu0
    %5316 = vdwg.mxu0
    %5317 = vmatprep.subr.bf16.mxu0 %v4667
    %5318 = vmatpush1.bf16.msra.mxu0 %v4666
    %5319 = vmatprep.subr.bf16.mxu0 %v4671
    %5320 = vmatpush1.bf16.msra.mxu0 %v4670
    %5321 = vmatprep.subr.bf16.mxu0 %v4675
    %5322 = vmatpush1.bf16.msra.mxu0 %v4674
    %5323 = vmatprep.subr.bf16.mxu0 %v4679
    %5324 = vmatpush1.bf16.msra.mxu0 %v4678
    %5325 = vmatprep.subr.bf16.mxu0 %v4683
    %5326 = vmatpush1.bf16.msra.mxu0 %v4682
    %5327 = vmatprep.subr.bf16.mxu0 %v4687
    %5328 = vmatpush1.bf16.msra.mxu0 %v4686
    %5329 = vmatprep.subr.bf16.mxu0 %v4691
    %5330 = vmatpush1.bf16.msra.mxu0 %v4690
    %5331 = vmatprep.subr.bf16.mxu0 %v4695
    %5332 = vmatpush1.bf16.msra.mxu0 %v4694
    %5333 = vmatprep.subr.bf16.mxu0 %v4699
    %5334 = vmatpush1.bf16.msra.mxu0 %v4698
    %5335 = vmatprep.subr.bf16.mxu0 %v4703
    %5336 = vmatpush1.bf16.msra.mxu0 %v4702
    %5337 = vmatprep.subr.bf16.mxu0 %v4707
    %5338 = vmatpush1.bf16.msra.mxu0 %v4706
    %5339 = vmatprep.subr.bf16.mxu0 %v4711
    %5340 = vmatpush1.bf16.msra.mxu0 %v4710
    %5341 = vmatprep.subr.bf16.mxu0 %v4715
    %5342 = vmatpush1.bf16.msra.mxu0 %v4714
    %5343 = vmatprep.subr.bf16.mxu0 %v4719
    %5344 = vmatpush1.bf16.msra.mxu0 %v4718
    %5345 = vmatprep.subr.bf16.mxu0 %v4723
    %5346 = vmatpush1.bf16.msra.mxu0 %v4722
    %5347 = vmatprep.subr.bf16.mxu0 %v4727
    %5348 = vmatpush1.bf16.msra.mxu0 %v4726
    %5349 = vmatprep.mubr.bf16.mxu0 %v3549
    %5350 = vmatmul.mubr.bf16.gmra.mrb[0].mxu0 %v3548
    %v5351 = vpop.f32.mrb[0].mxu0
    %v5352 = vadd.f32 %v5311, %v5351
    %v5353 = vpop.f32.mrb[0].mxu0
    %v5354 = vadd.f32 %v5313, %v5353
    %v5355 = vpop.f32.mrb[0].mxu0
    %v5356 = vpop.f32.mrb[0].mxu0
    %5357 = vdwg.mxu0
    %5358 = vmatprep.subr.bf16.mxu0 %v4731
    %5359 = vmatpush1.bf16.msra.mxu0 %v4730
    %5360 = vmatprep.subr.bf16.mxu0 %v4735
    %5361 = vmatpush1.bf16.msra.mxu0 %v4734
    %5362 = vmatprep.subr.bf16.mxu0 %v4739
    %5363 = vmatpush1.bf16.msra.mxu0 %v4738
    %5364 = vmatprep.subr.bf16.mxu0 %v4743
    %5365 = vmatpush1.bf16.msra.mxu0 %v4742
    %5366 = vmatprep.subr.bf16.mxu0 %v4747
    %5367 = vmatpush1.bf16.msra.mxu0 %v4746
    %5368 = vmatprep.subr.bf16.mxu0 %v4751
    %5369 = vmatpush1.bf16.msra.mxu0 %v4750
    %5370 = vmatprep.subr.bf16.mxu0 %v4755
    %5371 = vmatpush1.bf16.msra.mxu0 %v4754
    %5372 = vmatprep.subr.bf16.mxu0 %v4759
    %5373 = vmatpush1.bf16.msra.mxu0 %v4758
    %5374 = vmatprep.subr.bf16.mxu0 %v4763
    %5375 = vmatpush1.bf16.msra.mxu0 %v4762
    %5376 = vmatprep.subr.bf16.mxu0 %v4767
    %5377 = vmatpush1.bf16.msra.mxu0 %v4766
    %5378 = vmatprep.subr.bf16.mxu0 %v4771
    %5379 = vmatpush1.bf16.msra.mxu0 %v4770
    %5380 = vmatprep.subr.bf16.mxu0 %v4775
    %5381 = vmatpush1.bf16.msra.mxu0 %v4774
    %5382 = vmatprep.subr.bf16.mxu0 %v4779
    %5383 = vmatpush1.bf16.msra.mxu0 %v4778
    %5384 = vmatprep.subr.bf16.mxu0 %v4783
    %5385 = vmatpush1.bf16.msra.mxu0 %v4782
    %5386 = vmatprep.subr.bf16.mxu0 %v4787
    %5387 = vmatpush1.bf16.msra.mxu0 %v4786
    %5388 = vmatprep.subr.bf16.mxu0 %v4791
    %5389 = vmatpush1.bf16.msra.mxu0 %v4790
    %5390 = vmatprep.mubr.bf16.mxu0 %v3551
    %5391 = vmatmul.mubr.bf16.gmra.mrb[0].mxu0 %v3550
    %v5392 = vpop.f32.mrb[0].mxu0
    %v5393 = vadd.f32 %v5352, %v5392
    %v5394 = vpop.f32.mrb[0].mxu0
    %v5395 = vadd.f32 %v5354, %v5394
    %v5396 = vpop.f32.mrb[0].mxu0
    %v5397 = vpop.f32.mrb[0].mxu0
    %5398 = vdwg.mxu0
    %5399 = vmatprep.subr.bf16.mxu0 %v4795
    %5400 = vmatpush1.bf16.msra.mxu0 %v4794
    %5401 = vmatprep.subr.bf16.mxu0 %v4799
    %5402 = vmatpush1.bf16.msra.mxu0 %v4798
    %5403 = vmatprep.subr.bf16.mxu0 %v4803
    %5404 = vmatpush1.bf16.msra.mxu0 %v4802
    %5405 = vmatprep.subr.bf16.mxu0 %v4807
    %5406 = vmatpush1.bf16.msra.mxu0 %v4806
    %5407 = vmatprep.subr.bf16.mxu0 %v4811
    %5408 = vmatpush1.bf16.msra.mxu0 %v4810
    %5409 = vmatprep.subr.bf16.mxu0 %v4815
    %5410 = vmatpush1.bf16.msra.mxu0 %v4814
    %5411 = vmatprep.subr.bf16.mxu0 %v4819
    %5412 = vmatpush1.bf16.msra.mxu0 %v4818
    %5413 = vmatprep.subr.bf16.mxu0 %v4823
    %5414 = vmatpush1.bf16.msra.mxu0 %v4822
    %5415 = vmatprep.subr.bf16.mxu0 %v4827
    %5416 = vmatpush1.bf16.msra.mxu0 %v4826
    %5417 = vmatprep.subr.bf16.mxu0 %v4831
    %5418 = vmatpush1.bf16.msra.mxu0 %v4830
    %5419 = vmatprep.subr.bf16.mxu0 %v4835
    %5420 = vmatpush1.bf16.msra.mxu0 %v4834
    %5421 = vmatprep.subr.bf16.mxu0 %v4839
    %5422 = vmatpush1.bf16.msra.mxu0 %v4838
    %5423 = vmatprep.subr.bf16.mxu0 %v4843
    %5424 = vmatpush1.bf16.msra.mxu0 %v4842
    %5425 = vmatprep.subr.bf16.mxu0 %v4847
    %5426 = vmatpush1.bf16.msra.mxu0 %v4846
    %5427 = vmatprep.subr.bf16.mxu0 %v4851
    %5428 = vmatpush1.bf16.msra.mxu0 %v4850
    %5429 = vmatprep.subr.bf16.mxu0 %v4855
    %5430 = vmatpush1.bf16.msra.mxu0 %v4854
    %5431 = vmatprep.mubr.bf16.mxu0 %v3553
    %5432 = vmatmul.mubr.bf16.gmra.mrb[0].mxu0 %v3552
    %v5433 = vpop.f32.mrb[0].mxu0
    %v5434 = vadd.f32 %v5393, %v5433
    %v5435 = vpop.f32.mrb[0].mxu0
    %v5436 = vadd.f32 %v5395, %v5435
    %v5437 = vpop.f32.mrb[0].mxu0
    %v5438 = vpop.f32.mrb[0].mxu0
    %5439 = vdwg.mxu0
    %v5440 = vmax.f32 %v5270, 0.0
    %v5441 = vmax.f32 %v5272, 0.0
    %v5442 = vmax.f32 %v5434, 0.0
    %v5443 = vmax.f32 %v5436, 0.0
    %v5444 = vpack.c.bf16 %v5440, %v5440
    %v5445 = vpack.c.bf16 %v5441, %v5441
    %v5446 = vpack.c.bf16 %v5442, %v5442
    %v5447 = vpack.c.bf16 %v5443, %v5443
    %v5448 = vld [vmem:[%s7] sm:$0xff]
    %v5449 = vld [vmem:[%s7 + $0x8] sm:$0xff]
    %v5450 = vld [vmem:[%s7 + $0x10] sm:$0xff]
    %v5451 = vld [vmem:[%s7 + $0x18] sm:$0xff]
    %v5452 = vld [vmem:[%s7 + $0x20] sm:$0xff]
    %v5453 = vld [vmem:[%s7 + $0x28] sm:$0xff]
    %v5454 = vld [vmem:[%s7 + $0x30] sm:$0xff]
    %v5455 = vld [vmem:[%s7 + $0x38] sm:$0xff]
    %v5456 = vld [vmem:[%s7 + $0x40] sm:$0xff]
    %v5457 = vld [vmem:[%s7 + $0x48] sm:$0xff]
    %v5458 = vld [vmem:[%s7 + $0x50] sm:$0xff]
    %v5459 = vld [vmem:[%s7 + $0x58] sm:$0xff]
    %v5460 = vld [vmem:[%s7 + $0x60] sm:$0xff]
    %v5461 = vld [vmem:[%s7 + $0x68] sm:$0xff]
    %v5462 = vld [vmem:[%s7 + $0x70] sm:$0xff]
    %v5463 = vld [vmem:[%s7 + $0x78] sm:$0xff]
    %v5464 = vld [vmem:[%s7 + $0x80] sm:$0xff]
    %v5465 = vld [vmem:[%s7 + $0x88] sm:$0xff]
    %v5466 = vld [vmem:[%s7 + $0x90] sm:$0xff]
    %v5467 = vld [vmem:[%s7 + $0x98] sm:$0xff]
    %v5468 = vld [vmem:[%s7 + $0xa0] sm:$0xff]
    %v5469 = vld [vmem:[%s7 + $0xa8] sm:$0xff]
    %v5470 = vld [vmem:[%s7 + $0xb0] sm:$0xff]
    %v5471 = vld [vmem:[%s7 + $0xb8] sm:$0xff]
    %v5472 = vld [vmem:[%s7 + $0xc0] sm:$0xff]
    %v5473 = vld [vmem:[%s7 + $0xc8] sm:$0xff]
    %v5474 = vld [vmem:[%s7 + $0xd0] sm:$0xff]
    %v5475 = vld [vmem:[%s7 + $0xd8] sm:$0xff]
    %v5476 = vld [vmem:[%s7 + $0xe0] sm:$0xff]
    %v5477 = vld [vmem:[%s7 + $0xe8] sm:$0xff]
    %v5478 = vld [vmem:[%s7 + $0xf0] sm:$0xff]
    %v5479 = vld [vmem:[%s7 + $0xf8] sm:$0xff]
    %v5480 = vld [vmem:[%s7 + $0x100] sm:$0xff]
    %v5481 = vld [vmem:[%s7 + $0x108] sm:$0xff]
    %v5482 = vld [vmem:[%s7 + $0x110] sm:$0xff]
    %v5483 = vld [vmem:[%s7 + $0x118] sm:$0xff]
    %v5484 = vld [vmem:[%s7 + $0x120] sm:$0xff]
    %v5485 = vld [vmem:[%s7 + $0x128] sm:$0xff]
    %v5486 = vld [vmem:[%s7 + $0x130] sm:$0xff]
    %v5487 = vld [vmem:[%s7 + $0x138] sm:$0xff]
    %v5488 = vld [vmem:[%s7 + $0x140] sm:$0xff]
    %v5489 = vld [vmem:[%s7 + $0x148] sm:$0xff]
    %v5490 = vld [vmem:[%s7 + $0x150] sm:$0xff]
    %v5491 = vld [vmem:[%s7 + $0x158] sm:$0xff]
    %v5492 = vld [vmem:[%s7 + $0x160] sm:$0xff]
    %v5493 = vld [vmem:[%s7 + $0x168] sm:$0xff]
    %v5494 = vld [vmem:[%s7 + $0x170] sm:$0xff]
    %v5495 = vld [vmem:[%s7 + $0x178] sm:$0xff]
    %v5496 = vld [vmem:[%s7 + $0x180] sm:$0xff]
    %v5497 = vld [vmem:[%s7 + $0x188] sm:$0xff]
    %v5498 = vld [vmem:[%s7 + $0x190] sm:$0xff]
    %v5499 = vld [vmem:[%s7 + $0x198] sm:$0xff]
    %v5500 = vld [vmem:[%s7 + $0x1a0] sm:$0xff]
    %v5501 = vld [vmem:[%s7 + $0x1a8] sm:$0xff]
    %v5502 = vld [vmem:[%s7 + $0x1b0] sm:$0xff]
    %v5503 = vld [vmem:[%s7 + $0x1b8] sm:$0xff]
    %v5504 = vld [vmem:[%s7 + $0x1c0] sm:$0xff]
    %v5505 = vld [vmem:[%s7 + $0x1c8] sm:$0xff]
    %v5506 = vld [vmem:[%s7 + $0x1d0] sm:$0xff]
    %v5507 = vld [vmem:[%s7 + $0x1d8] sm:$0xff]
    %v5508 = vld [vmem:[%s7 + $0x1e0] sm:$0xff]
    %v5509 = vld [vmem:[%s7 + $0x1e8] sm:$0xff]
    %v5510 = vld [vmem:[%s7 + $0x1f0] sm:$0xff]
    %v5511 = vld [vmem:[%s7 + $0x1f8] sm:$0xff]
    %v5512 = vld [vmem:[%s8] sm:$0x3]
    %v5514 = vlaneseq
    %v5515 = vshrl.u32 %v5514, 7
    %v5516 = vsub.s32 0, %v5515
    %v5517 = vrot.slane %v5512, %v5516
    %v5518 = vlaneseq
    %v5519 = vshrl.u32 %v5518, 7
    %v5520 = vsub.s32 1, %v5519
    %v5521 = vrot.slane %v5512, %v5520
    %v5588 = vunpack.c.l.b16 %v5448
    %v5589 = vunpack.c.h.b16 %v5448
    %v5590 = vunpack.c.l.b16 %v5449
    %v5591 = vunpack.c.h.b16 %v5449
    %v5592 = vunpack.c.l.b16 %v5450
    %v5593 = vunpack.c.h.b16 %v5450
    %v5594 = vunpack.c.l.b16 %v5451
    %v5595 = vunpack.c.h.b16 %v5451
    %v5596 = vunpack.c.l.b16 %v5452
    %v5597 = vunpack.c.h.b16 %v5452
    %v5598 = vunpack.c.l.b16 %v5453
    %v5599 = vunpack.c.h.b16 %v5453
    %v5600 = vunpack.c.l.b16 %v5454
    %v5601 = vunpack.c.h.b16 %v5454
    %v5602 = vunpack.c.l.b16 %v5455
    %v5603 = vunpack.c.h.b16 %v5455
    %v5604 = vunpack.c.l.b16 %v5456
    %v5605 = vunpack.c.h.b16 %v5456
    %v5606 = vunpack.c.l.b16 %v5457
    %v5607 = vunpack.c.h.b16 %v5457
    %v5608 = vunpack.c.l.b16 %v5458
    %v5609 = vunpack.c.h.b16 %v5458
    %v5610 = vunpack.c.l.b16 %v5459
    %v5611 = vunpack.c.h.b16 %v5459
    %v5612 = vunpack.c.l.b16 %v5460
    %v5613 = vunpack.c.h.b16 %v5460
    %v5614 = vunpack.c.l.b16 %v5461
    %v5615 = vunpack.c.h.b16 %v5461
    %v5616 = vunpack.c.l.b16 %v5462
    %v5617 = vunpack.c.h.b16 %v5462
    %v5618 = vunpack.c.l.b16 %v5463
    %v5619 = vunpack.c.h.b16 %v5463
    %v5620 = vunpack.c.l.b16 %v5464
    %v5621 = vunpack.c.h.b16 %v5464
    %v5622 = vunpack.c.l.b16 %v5465
    %v5623 = vunpack.c.h.b16 %v5465
    %v5624 = vunpack.c.l.b16 %v5466
    %v5625 = vunpack.c.h.b16 %v5466
    %v5626 = vunpack.c.l.b16 %v5467
    %v5627 = vunpack.c.h.b16 %v5467
    %v5628 = vunpack.c.l.b16 %v5468
    %v5629 = vunpack.c.h.b16 %v5468
    %v5630 = vunpack.c.l.b16 %v5469
    %v5631 = vunpack.c.h.b16 %v5469
    %v5632 = vunpack.c.l.b16 %v5470
    %v5633 = vunpack.c.h.b16 %v5470
    %v5634 = vunpack.c.l.b16 %v5471
    %v5635 = vunpack.c.h.b16 %v5471
    %v5636 = vunpack.c.l.b16 %v5472
    %v5637 = vunpack.c.h.b16 %v5472
    %v5638 = vunpack.c.l.b16 %v5473
    %v5639 = vunpack.c.h.b16 %v5473
    %v5640 = vunpack.c.l.b16 %v5474
    %v5641 = vunpack.c.h.b16 %v5474
    %v5642 = vunpack.c.l.b16 %v5475
    %v5643 = vunpack.c.h.b16 %v5475
    %v5644 = vunpack.c.l.b16 %v5476
    %v5645 = vunpack.c.h.b16 %v5476
    %v5646 = vunpack.c.l.b16 %v5477
    %v5647 = vunpack.c.h.b16 %v5477
    %v5648 = vunpack.c.l.b16 %v5478
    %v5649 = vunpack.c.h.b16 %v5478
    %v5650 = vunpack.c.l.b16 %v5479
    %v5651 = vunpack.c.h.b16 %v5479
    %v5652 = vunpack.c.l.b16 %v5480
    %v5653 = vunpack.c.h.b16 %v5480
    %v5654 = vunpack.c.l.b16 %v5481
    %v5655 = vunpack.c.h.b16 %v5481
    %v5656 = vunpack.c.l.b16 %v5482
    %v5657 = vunpack.c.h.b16 %v5482
    %v5658 = vunpack.c.l.b16 %v5483
    %v5659 = vunpack.c.h.b16 %v5483
    %v5660 = vunpack.c.l.b16 %v5484
    %v5661 = vunpack.c.h.b16 %v5484
    %v5662 = vunpack.c.l.b16 %v5485
    %v5663 = vunpack.c.h.b16 %v5485
    %v5664 = vunpack.c.l.b16 %v5486
    %v5665 = vunpack.c.h.b16 %v5486
    %v5666 = vunpack.c.l.b16 %v5487
    %v5667 = vunpack.c.h.b16 %v5487
    %v5668 = vunpack.c.l.b16 %v5488
    %v5669 = vunpack.c.h.b16 %v5488
    %v5670 = vunpack.c.l.b16 %v5489
    %v5671 = vunpack.c.h.b16 %v5489
    %v5672 = vunpack.c.l.b16 %v5490
    %v5673 = vunpack.c.h.b16 %v5490
    %v5674 = vunpack.c.l.b16 %v5491
    %v5675 = vunpack.c.h.b16 %v5491
    %v5676 = vunpack.c.l.b16 %v5492
    %v5677 = vunpack.c.h.b16 %v5492
    %v5678 = vunpack.c.l.b16 %v5493
    %v5679 = vunpack.c.h.b16 %v5493
    %v5680 = vunpack.c.l.b16 %v5494
    %v5681 = vunpack.c.h.b16 %v5494
    %v5682 = vunpack.c.l.b16 %v5495
    %v5683 = vunpack.c.h.b16 %v5495
    %v5684 = vunpack.c.l.b16 %v5496
    %v5685 = vunpack.c.h.b16 %v5496
    %v5686 = vunpack.c.l.b16 %v5497
    %v5687 = vunpack.c.h.b16 %v5497
    %v5688 = vunpack.c.l.b16 %v5498
    %v5689 = vunpack.c.h.b16 %v5498
    %v5690 = vunpack.c.l.b16 %v5499
    %v5691 = vunpack.c.h.b16 %v5499
    %v5692 = vunpack.c.l.b16 %v5500
    %v5693 = vunpack.c.h.b16 %v5500
    %v5694 = vunpack.c.l.b16 %v5501
    %v5695 = vunpack.c.h.b16 %v5501
    %v5696 = vunpack.c.l.b16 %v5502
    %v5697 = vunpack.c.h.b16 %v5502
    %v5698 = vunpack.c.l.b16 %v5503
    %v5699 = vunpack.c.h.b16 %v5503
    %v5700 = vunpack.c.l.b16 %v5504
    %v5701 = vunpack.c.h.b16 %v5504
    %v5702 = vunpack.c.l.b16 %v5505
    %v5703 = vunpack.c.h.b16 %v5505
    %v5704 = vunpack.c.l.b16 %v5506
    %v5705 = vunpack.c.h.b16 %v5506
    %v5706 = vunpack.c.l.b16 %v5507
    %v5707 = vunpack.c.h.b16 %v5507
    %v5708 = vunpack.c.l.b16 %v5508
    %v5709 = vunpack.c.h.b16 %v5508
    %v5710 = vunpack.c.l.b16 %v5509
    %v5711 = vunpack.c.h.b16 %v5509
    %v5712 = vunpack.c.l.b16 %v5510
    %v5713 = vunpack.c.h.b16 %v5510
    %v5714 = vunpack.c.l.b16 %v5511
    %v5715 = vunpack.c.h.b16 %v5511
    %v5716 = vpack.c.b16 %v5590, %v5588
    %v5717 = vpack.c.b16 %v5591, %v5589
    %v5718 = vpack.c.b16 %v5594, %v5592
    %v5719 = vpack.c.b16 %v5595, %v5593
    %v5720 = vpack.c.b16 %v5598, %v5596
    %v5721 = vpack.c.b16 %v5599, %v5597
    %v5722 = vpack.c.b16 %v5602, %v5600
    %v5723 = vpack.c.b16 %v5603, %v5601
    %v5724 = vpack.c.b16 %v5606, %v5604
    %v5725 = vpack.c.b16 %v5607, %v5605
    %v5726 = vpack.c.b16 %v5610, %v5608
    %v5727 = vpack.c.b16 %v5611, %v5609
    %v5728 = vpack.c.b16 %v5614, %v5612
    %v5729 = vpack.c.b16 %v5615, %v5613
    %v5730 = vpack.c.b16 %v5618, %v5616
    %v5731 = vpack.c.b16 %v5619, %v5617
    %v5732 = vpack.c.b16 %v5622, %v5620
    %v5733 = vpack.c.b16 %v5623, %v5621
    %v5734 = vpack.c.b16 %v5626, %v5624
    %v5735 = vpack.c.b16 %v5627, %v5625
    %v5736 = vpack.c.b16 %v5630, %v5628
    %v5737 = vpack.c.b16 %v5631, %v5629
    %v5738 = vpack.c.b16 %v5634, %v5632
    %v5739 = vpack.c.b16 %v5635, %v5633
    %v5740 = vpack.c.b16 %v5638, %v5636
    %v5741 = vpack.c.b16 %v5639, %v5637
    %v5742 = vpack.c.b16 %v5642, %v5640
    %v5743 = vpack.c.b16 %v5643, %v5641
    %v5744 = vpack.c.b16 %v5646, %v5644
    %v5745 = vpack.c.b16 %v5647, %v5645
    %v5746 = vpack.c.b16 %v5650, %v5648
    %v5747 = vpack.c.b16 %v5651, %v5649
    %v5748 = vpack.c.b16 %v5654, %v5652
    %v5749 = vpack.c.b16 %v5655, %v5653
    %v5750 = vpack.c.b16 %v5658, %v5656
    %v5751 = vpack.c.b16 %v5659, %v5657
    %v5752 = vpack.c.b16 %v5662, %v5660
    %v5753 = vpack.c.b16 %v5663, %v5661
    %v5754 = vpack.c.b16 %v5666, %v5664
    %v5755 = vpack.c.b16 %v5667, %v5665
    %v5756 = vpack.c.b16 %v5670, %v5668
    %v5757 = vpack.c.b16 %v5671, %v5669
    %v5758 = vpack.c.b16 %v5674, %v5672
    %v5759 = vpack.c.b16 %v5675, %v5673
    %v5760 = vpack.c.b16 %v5678, %v5676
    %v5761 = vpack.c.b16 %v5679, %v5677
    %v5762 = vpack.c.b16 %v5682, %v5680
    %v5763 = vpack.c.b16 %v5683, %v5681
    %v5764 = vpack.c.b16 %v5686, %v5684
    %v5765 = vpack.c.b16 %v5687, %v5685
    %v5766 = vpack.c.b16 %v5690, %v5688
    %v5767 = vpack.c.b16 %v5691, %v5689
    %v5768 = vpack.c.b16 %v5694, %v5692
    %v5769 = vpack.c.b16 %v5695, %v5693
    %v5770 = vpack.c.b16 %v5698, %v5696
    %v5771 = vpack.c.b16 %v5699, %v5697
    %v5772 = vpack.c.b16 %v5702, %v5700
    %v5773 = vpack.c.b16 %v5703, %v5701
    %v5774 = vpack.c.b16 %v5706, %v5704
    %v5775 = vpack.c.b16 %v5707, %v5705
    %v5776 = vpack.c.b16 %v5710, %v5708
    %v5777 = vpack.c.b16 %v5711, %v5709
    %v5778 = vpack.c.b16 %v5714, %v5712
    %v5779 = vpack.c.b16 %v5715, %v5713
    %5844 = vmatprep.subr.bf16.mxu0 %v5717
    %5845 = vmatpush1.bf16.msra.mxu0 %v5716
    %5846 = vmatprep.subr.bf16.mxu0 %v5719
    %5847 = vmatpush1.bf16.msra.mxu0 %v5718
    %5848 = vmatprep.subr.bf16.mxu0 %v5721
    %5849 = vmatpush1.bf16.msra.mxu0 %v5720
    %5850 = vmatprep.subr.bf16.mxu0 %v5723
    %5851 = vmatpush1.bf16.msra.mxu0 %v5722
    %5852 = vmatprep.subr.bf16.mxu0 %v5725
    %5853 = vmatpush1.bf16.msra.mxu0 %v5724
    %5854 = vmatprep.subr.bf16.mxu0 %v5727
    %5855 = vmatpush1.bf16.msra.mxu0 %v5726
    %5856 = vmatprep.subr.bf16.mxu0 %v5729
    %5857 = vmatpush1.bf16.msra.mxu0 %v5728
    %5858 = vmatprep.subr.bf16.mxu0 %v5731
    %5859 = vmatpush1.bf16.msra.mxu0 %v5730
    %5860 = vmatprep.subr.bf16.mxu0 %v5733
    %5861 = vmatpush1.bf16.msra.mxu0 %v5732
    %5862 = vmatprep.subr.bf16.mxu0 %v5735
    %5863 = vmatpush1.bf16.msra.mxu0 %v5734
    %5864 = vmatprep.subr.bf16.mxu0 %v5737
    %5865 = vmatpush1.bf16.msra.mxu0 %v5736
    %5866 = vmatprep.subr.bf16.mxu0 %v5739
    %5867 = vmatpush1.bf16.msra.mxu0 %v5738
    %5868 = vmatprep.subr.bf16.mxu0 %v5741
    %5869 = vmatpush1.bf16.msra.mxu0 %v5740
    %5870 = vmatprep.subr.bf16.mxu0 %v5743
    %5871 = vmatpush1.bf16.msra.mxu0 %v5742
    %5872 = vmatprep.subr.bf16.mxu0 %v5745
    %5873 = vmatpush1.bf16.msra.mxu0 %v5744
    %5874 = vmatprep.subr.bf16.mxu0 %v5747
    %5875 = vmatpush1.bf16.msra.mxu0 %v5746
    %5876 = vmatprep.mubr.bf16.mxu0 %v5445
    %5877 = vmatmul.mubr.bf16.gmra.mrb[0].mxu0 %v5444
    %v5878 = vpop.f32.mrb[0].mxu0
    %v5879 = vadd.f32 %v5517, %v5878
    %v5880 = vpop.f32.mrb[0].mxu0
    %v5881 = vadd.f32 %v5521, %v5880
    %v5882 = vpop.f32.mrb[0].mxu0
    %v5883 = vpop.f32.mrb[0].mxu0
    %5884 = vdwg.mxu0
    %5885 = vmatprep.subr.bf16.mxu0 %v5749
    %5886 = vmatpush1.bf16.msra.mxu0 %v5748
    %5887 = vmatprep.subr.bf16.mxu0 %v5751
    %5888 = vmatpush1.bf16.msra.mxu0 %v5750
    %5889 = vmatprep.subr.bf16.mxu0 %v5753
    %5890 = vmatpush1.bf16.msra.mxu0 %v5752
    %5891 = vmatprep.subr.bf16.mxu0 %v5755
    %5892 = vmatpush1.bf16.msra.mxu0 %v5754
    %5893 = vmatprep.subr.bf16.mxu0 %v5757
    %5894 = vmatpush1.bf16.msra.mxu0 %v5756
    %5895 = vmatprep.subr.bf16.mxu0 %v5759
    %5896 = vmatpush1.bf16.msra.mxu0 %v5758
    %5897 = vmatprep.subr.bf16.mxu0 %v5761
    %5898 = vmatpush1.bf16.msra.mxu0 %v5760
    %5899 = vmatprep.subr.bf16.mxu0 %v5763
    %5900 = vmatpush1.bf16.msra.mxu0 %v5762
    %5901 = vmatprep.subr.bf16.mxu0 %v5765
    %5902 = vmatpush1.bf16.msra.mxu0 %v5764
    %5903 = vmatprep.subr.bf16.mxu0 %v5767
    %5904 = vmatpush1.bf16.msra.mxu0 %v5766
    %5905 = vmatprep.subr.bf16.mxu0 %v5769
    %5906 = vmatpush1.bf16.msra.mxu0 %v5768
    %5907 = vmatprep.subr.bf16.mxu0 %v5771
    %5908 = vmatpush1.bf16.msra.mxu0 %v5770
    %5909 = vmatprep.subr.bf16.mxu0 %v5773
    %5910 = vmatpush1.bf16.msra.mxu0 %v5772
    %5911 = vmatprep.subr.bf16.mxu0 %v5775
    %5912 = vmatpush1.bf16.msra.mxu0 %v5774
    %5913 = vmatprep.subr.bf16.mxu0 %v5777
    %5914 = vmatpush1.bf16.msra.mxu0 %v5776
    %5915 = vmatprep.subr.bf16.mxu0 %v5779
    %5916 = vmatpush1.bf16.msra.mxu0 %v5778
    %5917 = vmatprep.mubr.bf16.mxu0 %v5447
    %5918 = vmatmul.mubr.bf16.gmra.mrb[0].mxu0 %v5446
    %v5919 = vpop.f32.mrb[0].mxu0
    %v5920 = vadd.f32 %v5879, %v5919
    %v5921 = vpop.f32.mrb[0].mxu0
    %v5922 = vadd.f32 %v5881, %v5921
    %v5923 = vpop.f32.mrb[0].mxu0
    %v5924 = vpop.f32.mrb[0].mxu0
    %5925 = vdwg.mxu0
    %v5926 = vmax.f32 %v5920, 0.0
    %v5927 = vmax.f32 %v5922, 0.0
    %v5928 = vpack.c.bf16 %v5926, %v5926
    %v5929 = vpack.c.bf16 %v5927, %v5927
    %v5930 = vld [vmem:[%s9] sm:$0xf]
    %v5931 = vld [vmem:[%s9 + $0x4] sm:$0xf]
    %v5932 = vld [vmem:[%s9 + $0x8] sm:$0xf]
    %v5933 = vld [vmem:[%s9 + $0xc] sm:$0xf]
    %v5934 = vld [vmem:[%s9 + $0x10] sm:$0xf]
    %v5935 = vld [vmem:[%s9 + $0x14] sm:$0xf]
    %v5936 = vld [vmem:[%s9 + $0x18] sm:$0xf]
    %v5937 = vld [vmem:[%s9 + $0x1c] sm:$0xf]
    %v5938 = vld [vmem:[%s9 + $0x20] sm:$0xf]
    %v5939 = vld [vmem:[%s9 + $0x24] sm:$0xf]
    %v5940 = vld [vmem:[%s9 + $0x28] sm:$0xf]
    %v5941 = vld [vmem:[%s9 + $0x2c] sm:$0xf]
    %v5942 = vld [vmem:[%s9 + $0x30] sm:$0xf]
    %v5943 = vld [vmem:[%s9 + $0x34] sm:$0xf]
    %v5944 = vld [vmem:[%s9 + $0x38] sm:$0xf]
    %v5945 = vld [vmem:[%s9 + $0x3c] sm:$0xf]
    %v5946 = vld [vmem:[%s9 + $0x40] sm:$0xf]
    %v5947 = vld [vmem:[%s9 + $0x44] sm:$0xf]
    %v5948 = vld [vmem:[%s9 + $0x48] sm:$0xf]
    %v5949 = vld [vmem:[%s9 + $0x4c] sm:$0xf]
    %v5950 = vld [vmem:[%s9 + $0x50] sm:$0xf]
    %v5951 = vld [vmem:[%s9 + $0x54] sm:$0xf]
    %v5952 = vld [vmem:[%s9 + $0x58] sm:$0xf]
    %v5953 = vld [vmem:[%s9 + $0x5c] sm:$0xf]
    %v5954 = vld [vmem:[%s9 + $0x60] sm:$0xf]
    %v5955 = vld [vmem:[%s9 + $0x64] sm:$0xf]
    %v5956 = vld [vmem:[%s9 + $0x68] sm:$0xf]
    %v5957 = vld [vmem:[%s9 + $0x6c] sm:$0xf]
    %v5958 = vld [vmem:[%s9 + $0x70] sm:$0xf]
    %v5959 = vld [vmem:[%s9 + $0x74] sm:$0xf]
    %v5960 = vld [vmem:[%s9 + $0x78] sm:$0xf]
    %v5961 = vld [vmem:[%s9 + $0x7c] sm:$0xf]
    %v5962 = vld [vmem:[%s10] sm:$0x1]
    %v5964 = vlaneseq
    %v5965 = vshrl.u32 %v5964, 7
    %v5966 = vsub.s32 0, %v5965
    %v5967 = vrot.slane %v5962, %v5966
    %v6001 = vunpack.c.l.b16 %v5930
    %v6002 = vunpack.c.l.b16 %v5931
    %v6003 = vunpack.c.l.b16 %v5932
    %v6004 = vunpack.c.l.b16 %v5933
    %v6005 = vunpack.c.l.b16 %v5934
    %v6006 = vunpack.c.l.b16 %v5935
    %v6007 = vunpack.c.l.b16 %v5936
    %v6008 = vunpack.c.l.b16 %v5937
    %v6009 = vunpack.c.l.b16 %v5938
    %v6010 = vunpack.c.l.b16 %v5939
    %v6011 = vunpack.c.l.b16 %v5940
    %v6012 = vunpack.c.l.b16 %v5941
    %v6013 = vunpack.c.l.b16 %v5942
    %v6014 = vunpack.c.l.b16 %v5943
    %v6015 = vunpack.c.l.b16 %v5944
    %v6016 = vunpack.c.l.b16 %v5945
    %v6017 = vunpack.c.l.b16 %v5946
    %v6018 = vunpack.c.l.b16 %v5947
    %v6019 = vunpack.c.l.b16 %v5948
    %v6020 = vunpack.c.l.b16 %v5949
    %v6021 = vunpack.c.l.b16 %v5950
    %v6022 = vunpack.c.l.b16 %v5951
    %v6023 = vunpack.c.l.b16 %v5952
    %v6024 = vunpack.c.l.b16 %v5953
    %v6025 = vunpack.c.l.b16 %v5954
    %v6026 = vunpack.c.l.b16 %v5955
    %v6027 = vunpack.c.l.b16 %v5956
    %v6028 = vunpack.c.l.b16 %v5957
    %v6029 = vunpack.c.l.b16 %v5958
    %v6030 = vunpack.c.l.b16 %v5959
    %v6031 = vunpack.c.l.b16 %v5960
    %v6032 = vunpack.c.l.b16 %v5961
    %v6033 = vpack.c.b16 %v6002, %v6001
    %v6034 = vpack.c.b16 %v6004, %v6003
    %v6035 = vpack.c.b16 %v6006, %v6005
    %v6036 = vpack.c.b16 %v6008, %v6007
    %v6037 = vpack.c.b16 %v6010, %v6009
    %v6038 = vpack.c.b16 %v6012, %v6011
    %v6039 = vpack.c.b16 %v6014, %v6013
    %v6040 = vpack.c.b16 %v6016, %v6015
    %v6041 = vpack.c.b16 %v6018, %v6017
    %v6042 = vpack.c.b16 %v6020, %v6019
    %v6043 = vpack.c.b16 %v6022, %v6021
    %v6044 = vpack.c.b16 %v6024, %v6023
    %v6045 = vpack.c.b16 %v6026, %v6025
    %v6046 = vpack.c.b16 %v6028, %v6027
    %v6047 = vpack.c.b16 %v6030, %v6029
    %v6048 = vpack.c.b16 %v6032, %v6031
    %6065 = vmatprep.subr.bf16.mxu0 0
    %6066 = vmatpush1.bf16.msra.mxu0 %v6033
    %6067 = vmatprep.subr.bf16.mxu0 0
    %6068 = vmatpush1.bf16.msra.mxu0 %v6034
    %6069 = vmatprep.subr.bf16.mxu0 0
    %6070 = vmatpush1.bf16.msra.mxu0 %v6035
    %6071 = vmatprep.subr.bf16.mxu0 0
    %6072 = vmatpush1.bf16.msra.mxu0 %v6036
    %6073 = vmatprep.subr.bf16.mxu0 0
    %6074 = vmatpush1.bf16.msra.mxu0 %v6037
    %6075 = vmatprep.subr.bf16.mxu0 0
    %6076 = vmatpush1.bf16.msra.mxu0 %v6038
    %6077 = vmatprep.subr.bf16.mxu0 0
    %6078 = vmatpush1.bf16.msra.mxu0 %v6039
    %6079 = vmatprep.subr.bf16.mxu0 0
    %6080 = vmatpush1.bf16.msra.mxu0 %v6040
    %6081 = vmatprep.subr.bf16.mxu0 0
    %6082 = vmatpush1.bf16.msra.mxu0 %v6041
    %6083 = vmatprep.subr.bf16.mxu0 0
    %6084 = vmatpush1.bf16.msra.mxu0 %v6042
    %6085 = vmatprep.subr.bf16.mxu0 0
    %6086 = vmatpush1.bf16.msra.mxu0 %v6043
    %6087 = vmatprep.subr.bf16.mxu0 0
    %6088 = vmatpush1.bf16.msra.mxu0 %v6044
    %6089 = vmatprep.subr.bf16.mxu0 0
    %6090 = vmatpush1.bf16.msra.mxu0 %v6045
    %6091 = vmatprep.subr.bf16.mxu0 0
    %6092 = vmatpush1.bf16.msra.mxu0 %v6046
    %6093 = vmatprep.subr.bf16.mxu0 0
    %6094 = vmatpush1.bf16.msra.mxu0 %v6047
    %6095 = vmatprep.subr.bf16.mxu0 0
    %6096 = vmatpush1.bf16.msra.mxu0 %v6048
    %6097 = vmatprep.mubr.bf16.mxu0 %v5929
    %6098 = vmatmul.mubr.bf16.gmra.mrb[0].mxu0 %v5928
    %v6099 = vpop.f32.mrb[0].mxu0
    %v6100 = vadd.f32 %v5967, %v6099
    %v6101 = vpop.f32.mrb[0].mxu0
    %v6102 = vpop.f32.mrb[0].mxu0
    %v6103 = vpop.f32.mrb[0].mxu0
    %6104 = vdwg.mxu0
    %6105 = vmax.xlane.f32.xlu0 %v6100
    %v6106 = vpop.xlane.xlu0 %6105
    %v6107 = vsub.f32 %v6100, %v6106
    %v6108 = vmul.f32 %v6107, 1.442695
    %v6109 = vpow.pop %v6108
    %6110 = vadd.xlane.f32.xlu0 %v6109
    %v6111 = vpop.xlane.xlu0 %6110
    %v6112 = vlog2.pop %v6111
    %v6113 = vmul.f32 %v6112, 0.6931472
    %v6114 = vsub.f32 %v6107, %v6113
    %6115 = vst [vmem:[%s11] sm:$0xff] %v6114
    // Predicated region
    $region58: #{mlp_forward.1} parent=1 // pred_check
      _
    $region59: #{mlp_forward.1} parent=1 // pred_check_branch
      %6117 = sbr.rel (0) target = $region61
    $region60: #{mlp_forward.1} parent=1 // pred_region
      _
    $region61: #{mlp_forward.1} parent=1 // pred_fallthru
      _
    // Predicated region
    $region62: #{mlp_forward.1} parent=1 // pred_check
      _
    $region63: #{mlp_forward.1} parent=1 // pred_check_branch
      %6119 = sbr.rel (0) target = $region65
    $region64: #{mlp_forward.1} parent=1 // pred_region
      _
    $region65: #{mlp_forward.1} parent=1 // pred_fallthru
      _
    %6120 = vsyncpa [#allocation3], 1
    %6121 = vsyncpa [#allocation5], 1

</llo_original>
